<compile_context>
chip_gen: v7x
topology: tpu7x:2x2x1
jax: 0.10.0
libtpu: 0.0.40
codegen_flags: <defaults>
</compile_context>

<pallas_src>
import functools

import numpy as np
import jax
import jax.numpy as jnp
from jax import lax
from jax.experimental import pallas as pl
from jax.experimental.pallas import tpu as pltpu


# ----------------------- fused CBAM + residual-add kernel -----------------------
def _cbam_kernel(x_ref, sc_ref, w1t_ref, b1_ref, w2_ref, b2_ref, wmat_ref, mask_ref,
                 p_ref, o_ref, pool_pad_ref, sw14_pad_ref, sw_ref, t_pad_ref,
                 *, D, H, W, K, CR, HALO_P, HALO_A, HALO_T):
    S = D * H * W
    P = (K - 1) // 2
    K2 = 2 * K

    x = x_ref[0]                                              # (C, S), lane-dense

    # ------------------------------ ChannelGate ------------------------------
    avg = jnp.mean(x, axis=1, keepdims=True)                  # (C, 1)
    mx = jnp.max(x, axis=1, keepdims=True)                    # (C, 1)
    # Shared 32->CR->32 MLP on both pooled stats, evaluated on the VPU only
    # (no MXU push/pop latency for a matmul with <1% utilization).  CR is tiny.
    att = b2_ref[...] * 2.0                                   # b2 appears in both branches
    for v in (avg, mx):
        for j in range(CR):                                   # static unroll (CR == 2)
            hj = jnp.sum(w1t_ref[:, j:j + 1] * v, axis=0, keepdims=True)   # (1, 1)
            hj = jnp.maximum(hj + b1_ref[j:j + 1, :], 0.0)
            att = att + w2_ref[:, j:j + 1] * hj               # (C, 1)
    cscale = jax.nn.sigmoid(att)                              # (C, 1)

    # ------------------------------ SpatialGate ------------------------------
    y = x * cscale                                            # channel-gated activation
    cmax = jnp.max(y, axis=0, keepdims=True)                  # (1, S)
    cmean = jnp.mean(y, axis=0, keepdims=True)                # (1, S)

    # zero halos (a handful of small stores; interiors are fully rewritten each step;
    # kept per-step so megacore grid splitting cannot skip the init)
    pool_pad_ref[:, :HALO_P] = jnp.zeros((2, HALO_P), jnp.float32)
    pool_pad_ref[:, HALO_P + S:] = jnp.zeros((2, HALO_P), jnp.float32)
    sw14_pad_ref[:, :HALO_A] = jnp.zeros((K2, HALO_A), jnp.float32)
    sw14_pad_ref[:, HALO_A + S:] = jnp.zeros((K2, HALO_A), jnp.float32)
    t_pad_ref[:, :HALO_T] = jnp.zeros((K, HALO_T), jnp.float32)
    t_pad_ref[:, HALO_T + S:] = jnp.zeros((K, HALO_T), jnp.float32)

    pool_pad_ref[0:1, HALO_P:HALO_P + S] = cmax
    pool_pad_ref[1:2, HALO_P:HALO_P + S] = cmean

    # Stage A1: 7 w-shifts of the (2, S) pooled block, wmask applied block-wide.
    for kw in range(K):
        dw = kw - P
        blk = pool_pad_ref[:, HALO_P + dw:HALO_P + dw + S]             # (2, S)
        sw14_pad_ref[kw * 2:kw * 2 + 2, HALO_A:HALO_A + S] = (
            blk * mask_ref[kw:kw + 1, :])

    # Stage A2: 7 h-shifts of the whole (2K, S) block, hmask applied block-wide,
    # building the full (2*K*K, S) tap block for the matmul.
    for kh in range(K):
        dh = kh - P
        blk = sw14_pad_ref[:, HALO_A + dh * W:HALO_A + dh * W + S]     # (2K, S)
        sw_ref[kh * K2:(kh + 1) * K2, :] = blk * mask_ref[K + kh:K + kh + 1, :]

    # Stage B: single MXU matmul, contraction over all (kh, kw, c) taps (2*K*K = 98).
    # (SpatialGate BatchNorm scale is pre-folded into wmat by the wrapper.)
    t_pad_ref[:, HALO_T:HALO_T + S] = jnp.dot(
        wmat_ref[...], sw_ref[...], preferred_element_type=jnp.float32)

    # Stage C: 7 d-shifted reads (zero halo supplies the conv d-padding, no masks),
    # tree-summed to avoid one long dependent add chain.
    rows = []
    for kd in range(K):
        off = (kd - P) * H * W
        rows.append(t_pad_ref[kd:kd + 1, HALO_T + off:HALO_T + off + S])
    acc = (((rows[0] + rows[1]) + (rows[2] + rows[3]))
           + ((rows[4] + rows[5]) + (rows[6] + p_ref[0])))    # + folded conv bias / BN shift
    sscale = jax.nn.sigmoid(acc)                              # (1, S)

    # spatial attention + residual shortcut; y is recomputed from x_ref so it is not
    # kept live across the SpatialGate region (vreg pressure).
    o_ref[0] = x_ref[0] * cscale * sscale + sc_ref[0]


# ------------------------------- wrappers -------------------------------
def _fold_bn(gamma, beta, running_mean=0.0, running_var=1.0, eps=1e-5):
    scale = gamma / jnp.sqrt(running_var + eps)
    return scale, beta - running_mean * scale


def _conv3d(x, w, b, pad):
    out = lax.conv_general_dilated(
        x, w, window_strides=(1, 1, 1), padding=[(pad, pad)] * 3,
        dimension_numbers=("NCDHW", "OIDHW", "NCDHW"))
    return out + b[None, :, None, None, None]


def cbam_residual_add(h, shortcut, p):
    """Fused CBAM (ChannelGate + SpatialGate) + residual add as one Pallas kernel."""
    N, C, D, H, W = h.shape
    S = D * H * W
    K = 7
    P = (K - 1) // 2
    Cr = p["w1"].shape[0]
    assert S % 128 == 0, "flattened spatial size must be lane-aligned (multiple of 128)"
    HALO_P = 128                                   # >= P, lane-aligned
    HALO_A = 128                                   # >= P*W, lane-aligned
    HALO_T = pl.cdiv(P * H * W, 128) * 128         # >= max kd offset, lane-aligned

    # fold SpatialGate BatchNorm (inference) into the 7^3 conv weights / bias
    sbn_scale, sbn_shift = _fold_bn(p["sbn_gamma"][0], p["sbn_beta"][0])
    wblk = p["sconv_w"][0] * sbn_scale                         # (2, K, K, K)  [c, kd, kh, kw]
    # -> (K, 2*K*K) with column index kh*(2K) + kw*2 + c  (matches sw_ref row ordering)
    wmat = jnp.transpose(wblk, (1, 2, 3, 0)).reshape(K, K * K * 2).astype(jnp.float32)
    pvec = (p["sconv_b"] * sbn_scale + sbn_shift).astype(jnp.float32)   # (1,)

    # h/w validity masks for the lane-shifted reads (constant, computed once; the block
    # index never changes so it is DMA'd once, not per grid step)
    sidx = jnp.arange(S, dtype=jnp.int32)
    wc = sidx % W
    hc = (sidx // W) % H
    wmask = jnp.stack([(wc + (kw - P) >= 0) & (wc + (kw - P) < W) for kw in range(K)])
    hmask = jnp.stack([(hc + (kh - P) >= 0) & (hc + (kh - P) < H) for kh in range(K)])
    masks = jnp.concatenate([wmask, hmask], axis=0).astype(jnp.float32)   # (2K, S)

    kern = functools.partial(_cbam_kernel, D=D, H=H, W=W, K=K, CR=Cr,
                             HALO_P=HALO_P, HALO_A=HALO_A, HALO_T=HALO_T)
    out = pl.pallas_call(
        kern,
        out_shape=jax.ShapeDtypeStruct((N, C, S), jnp.float32),
        grid=(N,),
        in_specs=[
            pl.BlockSpec((1, C, S), lambda n: (n, 0, 0)),          # conv-block activation
            pl.BlockSpec((1, C, S), lambda n: (n, 0, 0)),          # shortcut branch
            pl.BlockSpec((C, Cr), lambda n: (0, 0)),               # MLP W1^T
            pl.BlockSpec((Cr, 1), lambda n: (0, 0)),               # MLP b1
            pl.BlockSpec((C, Cr), lambda n: (0, 0)),               # MLP W2
            pl.BlockSpec((C, 1), lambda n: (0, 0)),                # MLP b2
            pl.BlockSpec((K, K * K * 2), lambda n: (0, 0)),        # folded spatial conv weights
            pl.BlockSpec((2 * K, S), lambda n: (0, 0)),            # h/w validity masks
            pl.BlockSpec(memory_space=pltpu.MemorySpace.SMEM),     # folded conv bias + BN shift
        ],
        out_specs=pl.BlockSpec((1, C, S), lambda n: (n, 0, 0)),
        scratch_shapes=[
            pltpu.VMEM((2, HALO_P + S + HALO_P), jnp.float32),          # zero-haloed pooled rows
            pltpu.VMEM((2 * K, HALO_A + S + HALO_A), jnp.float32),      # w-shifted rows (haloed)
            pltpu.VMEM((2 * K * K, S), jnp.float32),                    # full (kh,kw,c) tap block
            pltpu.VMEM((K, HALO_T + S + HALO_T), jnp.float32),          # per-kd partials (haloed)
        ],
        compiler_params=pltpu.CompilerParams(
            dimension_semantics=("parallel",)),   # v7x: independent batch items / TC
    )(
        h.reshape(N, C, S), shortcut.reshape(N, C, S),
        jnp.transpose(p["w1"]).astype(jnp.float32),
        p["b1"].reshape(Cr, 1).astype(jnp.float32),
        p["w2"].astype(jnp.float32),
        p["b2"].reshape(C, 1).astype(jnp.float32),
        wmat, masks, pvec,
    )
    return out.reshape(N, C, D, H, W)


def first_layer_forward(x, params):
    bn1_s, bn1_b = _fold_bn(params["bn1_gamma"], params["bn1_beta"])
    scbn_s, scbn_b = _fold_bn(params["scbn_gamma"], params["scbn_beta"])

    # conv_block head: Conv3d(3^3) -> BN -> ReLU -> Conv3d(3^3)   (XLA conv)
    h = _conv3d(x, params["conv1_w"], params["conv1_b"], 1)
    h = h * bn1_s[None, :, None, None, None] + bn1_b[None, :, None, None, None]
    h = jnp.maximum(h, 0.0)
    h = _conv3d(h, params["conv2_w"], params["conv2_b"], 1)

    # shortcut: Conv3d(1^3) -> BN   (XLA conv)
    sc = _conv3d(x, params["sc_w"], params["sc_b"], 0)
    sc = sc * scbn_s[None, :, None, None, None] + scbn_b[None, :, None, None, None]

    # fused CBAM + residual addition (Pallas)
    return cbam_residual_add(h, sc, params)


# --------------------------- pure-JAX reference ---------------------------
def first_layer_reference(x, params):
    bn1_s, bn1_b = _fold_bn(params["bn1_gamma"], params["bn1_beta"])
    scbn_s, scbn_b = _fold_bn(params["scbn_gamma"], params["scbn_beta"])
    sbn_s, sbn_b = _fold_bn(params["sbn_gamma"], params["sbn_beta"])

    h = _conv3d(x, params["conv1_w"], params["conv1_b"], 1)
    h = h * bn1_s[None, :, None, None, None] + bn1_b[None, :, None, None, None]
    h = jnp.maximum(h, 0.0)
    h = _conv3d(h, params["conv2_w"], params["conv2_b"], 1)

    # CBAM / ChannelGate
    avg = jnp.mean(h, axis=(2, 3, 4))
    mx = jnp.max(h, axis=(2, 3, 4))

    def mlp(v):
        hid = jnp.maximum(v @ params["w1"].T + params["b1"], 0.0)
        return hid @ params["w2"].T + params["b2"]

    cscale = jax.nn.sigmoid(mlp(avg) + mlp(mx))[:, :, None, None, None]
    y = h * cscale

    # CBAM / SpatialGate
    comp = jnp.stack([jnp.max(y, axis=1), jnp.mean(y, axis=1)], axis=1)
    sconv = _conv3d(comp, params["sconv_w"], params["sconv_b"], 3)
    sbn = sconv * sbn_s[None, :, None, None, None] + sbn_b[None, :, None, None, None]
    y = y * jax.nn.sigmoid(sbn)

    # shortcut branch + addition
    sc = _conv3d(x, params["sc_w"], params["sc_b"], 0)
    sc = sc * scbn_s[None, :, None, None, None] + scbn_b[None, :, None, None, None]
    return y + sc


if __name__ == "__main__":
    N, C_IN, C_OUT = 2, 16, 32
    D = H = W = 8
    REDUCTION = 16
    CR = C_OUT // REDUCTION
    K = 7

    key = jax.random.PRNGKey(0)
    ks = jax.random.split(key, 17)

    def rnd(k, shape, scale):
        return (scale * jax.random.normal(k, shape)).astype(jnp.float32)

    params = {
        # conv_block: Conv3d(3^3) -> BN -> ReLU -> Conv3d(3^3)
        "conv1_w": rnd(ks[0], (C_OUT, C_IN, 3, 3, 3), (C_IN * 27) ** -0.5),
        "conv1_b": rnd(ks[1], (C_OUT,), 0.1),
        "bn1_gamma": 1.0 + rnd(ks[2], (C_OUT,), 0.1),
        "bn1_beta": rnd(ks[3], (C_OUT,), 0.1),
        "conv2_w": rnd(ks[4], (C_OUT, C_OUT, 3, 3, 3), (C_OUT * 27) ** -0.5),
        "conv2_b": rnd(ks[5], (C_OUT,), 0.1),
        # CBAM ChannelGate MLP (PyTorch nn.Linear layout (out_features, in_features))
        "w1": rnd(ks[6], (CR, C_OUT), C_OUT ** -0.5),
        "b1": rnd(ks[7], (CR,), 0.1),
        "w2": rnd(ks[8], (C_OUT, CR), CR ** -0.5),
        "b2": rnd(ks[9], (C_OUT,), 0.1),
        # CBAM SpatialGate: Conv3d(2 -> 1, k=7, pad=3) + BatchNorm3d(1)
        "sconv_w": rnd(ks[10], (1, 2, K, K, K), (2 * K ** 3) ** -0.5),
        "sconv_b": rnd(ks[11], (1,), 0.1),
        "sbn_gamma": 1.0 + rnd(ks[12], (1,), 0.1),
        "sbn_beta": rnd(ks[13], (1,), 0.1),
        # shortcut: Conv3d(1^3) + BatchNorm3d
        "sc_w": rnd(ks[14], (C_OUT, C_IN, 1, 1, 1), C_IN ** -0.5),
        "sc_b": rnd(ks[15], (C_OUT,), 0.1),
        "scbn_gamma": jnp.ones((C_OUT,), jnp.float32),
        "scbn_beta": jnp.zeros((C_OUT,), jnp.float32),
    }
    x = jax.random.normal(ks[16], (N, C_IN, D, H, W), jnp.float32)

    out = jax.block_until_ready(jax.jit(first_layer_forward)(x, params))
    ref = jax.block_until_ready(first_layer_reference(x, params))

    assert out.shape == (N, C_OUT, D, H, W) and out.dtype == jnp.float32
    np.testing.assert_allclose(np.asarray(out), np.asarray(ref), rtol=5e-4, atol=5e-4)
    print("KERNEL_OK")
</pallas_src>

<mosaic_0001>
module attributes {stable_mosaic.version = 11 : i64} {
  func.func @_cbam_kernel(%arg0: i32, %arg1: memref<1x32x512xf32, #tpu.memory_space<vmem>>, %arg2: memref<1x32x512xf32, #tpu.memory_space<vmem>>, %arg3: memref<32x2xf32, #tpu.memory_space<vmem>>, %arg4: memref<2x1xf32, #tpu.memory_space<vmem>>, %arg5: memref<32x2xf32, #tpu.memory_space<vmem>>, %arg6: memref<32x1xf32, #tpu.memory_space<vmem>>, %arg7: memref<7x98xf32, #tpu.memory_space<vmem>>, %arg8: memref<14x512xf32, #tpu.memory_space<vmem>>, %arg9: memref<1xf32, #tpu.memory_space<smem>>, %arg10: memref<1x32x512xf32, #tpu.memory_space<vmem>>, %arg11: memref<2x768xf32, #tpu.memory_space<vmem>>, %arg12: memref<14x768xf32, #tpu.memory_space<vmem>>, %arg13: memref<98x512xf32, #tpu.memory_space<vmem>>, %arg14: memref<7x1024xf32, #tpu.memory_space<vmem>>) attributes {dimension_semantics = [#tpu.dimension_semantics<parallel>], iteration_bounds = array<i64: 2>, scalar_prefetch = 0 : i64, scratch_operands = 4 : i64, tpu.core_type = #tpu.core_type<tc>, window_params = [{transform_indices = @transform_0, window_bounds = array<i64: 1, 32, 512>}, {transform_indices = @transform_1, window_bounds = array<i64: 1, 32, 512>}, {pipeline_mode = #tpu.pipeline_mode<synchronous>, transform_indices = @transform_2, window_bounds = array<i64: 32, 2>}, {pipeline_mode = #tpu.pipeline_mode<synchronous>, transform_indices = @transform_3, window_bounds = array<i64: 2, 1>}, {pipeline_mode = #tpu.pipeline_mode<synchronous>, transform_indices = @transform_4, window_bounds = array<i64: 32, 2>}, {pipeline_mode = #tpu.pipeline_mode<synchronous>, transform_indices = @transform_5, window_bounds = array<i64: 32, 1>}, {pipeline_mode = #tpu.pipeline_mode<synchronous>, transform_indices = @transform_6, window_bounds = array<i64: 7, 98>}, {pipeline_mode = #tpu.pipeline_mode<synchronous>, transform_indices = @transform_7, window_bounds = array<i64: 14, 512>}, {transform_indices = @transform_8, window_bounds = array<i64: 1>}, {transform_indices = @transform_9, window_bounds = array<i64: 1, 32, 512>}]} {
    %c0 = arith.constant 0 : index
    %c0_0 = arith.constant 0 : index
    %c0_1 = arith.constant 0 : index
    %0 = vector.load %arg1[%c0, %c0_0, %c0_1] : memref<1x32x512xf32, #tpu.memory_space<vmem>>, vector<1x32x512xf32>
    %1 = vector.shape_cast %0 : vector<1x32x512xf32> to vector<32x512xf32>
    %cst = arith.constant dense<0.000000e+00> : vector<32xf32>
    %2 = vector.multi_reduction <add>, %1, %cst [1] : vector<32x512xf32> to vector<32xf32>
    %3 = vector.shape_cast %2 : vector<32xf32> to vector<32x1xf32>
    %cst_2 = arith.constant 5.120000e+02 : f32
    %4 = vector.broadcast %cst_2 : f32 to vector<32x1xf32>
    %5 = arith.divf %3, %4 : vector<32x1xf32>
    %cst_3 = arith.constant dense<0xFF800000> : vector<32xf32>
    %6 = vector.multi_reduction <maximumf>, %1, %cst_3 [1] : vector<32x512xf32> to vector<32xf32>
    %7 = vector.shape_cast %6 : vector<32xf32> to vector<32x1xf32>
    %c0_4 = arith.constant 0 : index
    %c0_5 = arith.constant 0 : index
    %8 = vector.load %arg6[%c0_4, %c0_5] : memref<32x1xf32, #tpu.memory_space<vmem>>, vector<32x1xf32>
    %cst_6 = arith.constant 2.000000e+00 : f32
    %9 = vector.broadcast %cst_6 : f32 to vector<32x1xf32>
    %10 = arith.mulf %8, %9 : vector<32x1xf32>
    %c0_7 = arith.constant 0 : index
    %c0_8 = arith.constant 0 : index
    %11 = vector.load %arg3[%c0_7, %c0_8] : memref<32x2xf32, #tpu.memory_space<vmem>>, vector<32x1xf32>
    %12 = arith.mulf %11, %5 : vector<32x1xf32>
    %cst_9 = arith.constant dense<0.000000e+00> : vector<1xf32>
    %13 = vector.multi_reduction <add>, %12, %cst_9 [0] : vector<32x1xf32> to vector<1xf32>
    %14 = vector.shape_cast %13 : vector<1xf32> to vector<1x1xf32>
    %c0_10 = arith.constant 0 : index
    %c0_11 = arith.constant 0 : index
    %15 = vector.load %arg4[%c0_10, %c0_11] : memref<2x1xf32, #tpu.memory_space<vmem>>, vector<1x1xf32>
    %16 = arith.addf %14, %15 : vector<1x1xf32>
    %cst_12 = arith.constant 0.000000e+00 : f32
    %17 = vector.broadcast %cst_12 : f32 to vector<1x1xf32>
    %18 = arith.maximumf %16, %17 : vector<1x1xf32>
    %c0_13 = arith.constant 0 : index
    %c0_14 = arith.constant 0 : index
    %19 = vector.load %arg5[%c0_13, %c0_14] : memref<32x2xf32, #tpu.memory_space<vmem>>, vector<32x1xf32>
    %20 = vector.broadcast %18 : vector<1x1xf32> to vector<32x1xf32>
    %21 = arith.mulf %19, %20 : vector<32x1xf32>
    %22 = arith.addf %10, %21 : vector<32x1xf32>
    %c0_15 = arith.constant 0 : index
    %c1 = arith.constant 1 : index
    %23 = vector.load %arg3[%c0_15, %c1] : memref<32x2xf32, #tpu.memory_space<vmem>>, vector<32x1xf32>
    %24 = arith.mulf %23, %5 : vector<32x1xf32>
    %cst_16 = arith.constant dense<0.000000e+00> : vector<1xf32>
    %25 = vector.multi_reduction <add>, %24, %cst_16 [0] : vector<32x1xf32> to vector<1xf32>
    %26 = vector.shape_cast %25 : vector<1xf32> to vector<1x1xf32>
    %c1_17 = arith.constant 1 : index
    %c0_18 = arith.constant 0 : index
    %27 = vector.load %arg4[%c1_17, %c0_18] : memref<2x1xf32, #tpu.memory_space<vmem>>, vector<1x1xf32>
    %28 = arith.addf %26, %27 : vector<1x1xf32>
    %cst_19 = arith.constant 0.000000e+00 : f32
    %29 = vector.broadcast %cst_19 : f32 to vector<1x1xf32>
    %30 = arith.maximumf %28, %29 : vector<1x1xf32>
    %c0_20 = arith.constant 0 : index
    %c1_21 = arith.constant 1 : index
    %31 = vector.load %arg5[%c0_20, %c1_21] : memref<32x2xf32, #tpu.memory_space<vmem>>, vector<32x1xf32>
    %32 = vector.broadcast %30 : vector<1x1xf32> to vector<32x1xf32>
    %33 = arith.mulf %31, %32 : vector<32x1xf32>
    %34 = arith.addf %22, %33 : vector<32x1xf32>
    %c0_22 = arith.constant 0 : index
    %c0_23 = arith.constant 0 : index
    %35 = vector.load %arg3[%c0_22, %c0_23] : memref<32x2xf32, #tpu.memory_space<vmem>>, vector<32x1xf32>
    %36 = arith.mulf %35, %7 : vector<32x1xf32>
    %cst_24 = arith.constant dense<0.000000e+00> : vector<1xf32>
    %37 = vector.multi_reduction <add>, %36, %cst_24 [0] : vector<32x1xf32> to vector<1xf32>
    %38 = vector.shape_cast %37 : vector<1xf32> to vector<1x1xf32>
    %c0_25 = arith.constant 0 : index
    %c0_26 = arith.constant 0 : index
    %39 = vector.load %arg4[%c0_25, %c0_26] : memref<2x1xf32, #tpu.memory_space<vmem>>, vector<1x1xf32>
    %40 = arith.addf %38, %39 : vector<1x1xf32>
    %cst_27 = arith.constant 0.000000e+00 : f32
    %41 = vector.broadcast %cst_27 : f32 to vector<1x1xf32>
    %42 = arith.maximumf %40, %41 : vector<1x1xf32>
    %c0_28 = arith.constant 0 : index
    %c0_29 = arith.constant 0 : index
    %43 = vector.load %arg5[%c0_28, %c0_29] : memref<32x2xf32, #tpu.memory_space<vmem>>, vector<32x1xf32>
    %44 = vector.broadcast %42 : vector<1x1xf32> to vector<32x1xf32>
    %45 = arith.mulf %43, %44 : vector<32x1xf32>
    %46 = arith.addf %34, %45 : vector<32x1xf32>
    %c0_30 = arith.constant 0 : index
    %c1_31 = arith.constant 1 : index
    %47 = vector.load %arg3[%c0_30, %c1_31] : memref<32x2xf32, #tpu.memory_space<vmem>>, vector<32x1xf32>
    %48 = arith.mulf %47, %7 : vector<32x1xf32>
    %cst_32 = arith.constant dense<0.000000e+00> : vector<1xf32>
    %49 = vector.multi_reduction <add>, %48, %cst_32 [0] : vector<32x1xf32> to vector<1xf32>
    %50 = vector.shape_cast %49 : vector<1xf32> to vector<1x1xf32>
    %c1_33 = arith.constant 1 : index
    %c0_34 = arith.constant 0 : index
    %51 = vector.load %arg4[%c1_33, %c0_34] : memref<2x1xf32, #tpu.memory_space<vmem>>, vector<1x1xf32>
    %52 = arith.addf %50, %51 : vector<1x1xf32>
    %cst_35 = arith.constant 0.000000e+00 : f32
    %53 = vector.broadcast %cst_35 : f32 to vector<1x1xf32>
    %54 = arith.maximumf %52, %53 : vector<1x1xf32>
    %c0_36 = arith.constant 0 : index
    %c1_37 = arith.constant 1 : index
    %55 = vector.load %arg5[%c0_36, %c1_37] : memref<32x2xf32, #tpu.memory_space<vmem>>, vector<32x1xf32>
    %56 = vector.broadcast %54 : vector<1x1xf32> to vector<32x1xf32>
    %57 = arith.mulf %55, %56 : vector<32x1xf32>
    %58 = arith.addf %46, %57 : vector<32x1xf32>
    %59 = arith.negf %58 : vector<32x1xf32>
    %60 = math.exp %59 : vector<32x1xf32>
    %cst_38 = arith.constant 1.000000e+00 : f32
    %61 = vector.broadcast %cst_38 : f32 to vector<32x1xf32>
    %62 = arith.addf %61, %60 : vector<32x1xf32>
    %63 = arith.divf %61, %62 : vector<32x1xf32>
    %64 = vector.broadcast %63 : vector<32x1xf32> to vector<32x512xf32>
    %65 = arith.mulf %1, %64 : vector<32x512xf32>
    %cst_39 = arith.constant dense<0xFF800000> : vector<512xf32>
    %66 = vector.multi_reduction <maximumf>, %65, %cst_39 [0] : vector<32x512xf32> to vector<512xf32>
    %67 = vector.shape_cast %66 : vector<512xf32> to vector<1x512xf32>
    %cst_40 = arith.constant dense<0.000000e+00> : vector<512xf32>
    %68 = vector.multi_reduction <add>, %65, %cst_40 [0] : vector<32x512xf32> to vector<512xf32>
    %69 = vector.shape_cast %68 : vector<512xf32> to vector<1x512xf32>
    %cst_41 = arith.constant 3.200000e+01 : f32
    %70 = vector.broadcast %cst_41 : f32 to vector<1x512xf32>
    %71 = arith.divf %69, %70 : vector<1x512xf32>
    %cst_42 = arith.constant 0.000000e+00 : f32
    %72 = vector.broadcast %cst_42 : f32 to vector<2x128xf32>
    %c0_43 = arith.constant 0 : index
    %c0_44 = arith.constant 0 : index
    %73 = vector.load %arg11[%c0_43, %c0_44] : memref<2x768xf32, #tpu.memory_space<vmem>>, vector<2x128xf32>
    tpu.vector_store %arg11[%c0_43, %c0_44], %72 {strides = array<i32>} : memref<2x768xf32, #tpu.memory_space<vmem>>, vector<2x128xf32>,
    %cst_45 = arith.constant 0.000000e+00 : f32
    %74 = vector.broadcast %cst_45 : f32 to vector<2x128xf32>
    %c0_46 = arith.constant 0 : index
    %c640 = arith.constant 640 : index
    %75 = vector.load %arg11[%c0_46, %c640] : memref<2x768xf32, #tpu.memory_space<vmem>>, vector<2x128xf32>
    tpu.vector_store %arg11[%c0_46, %c640], %74 {strides = array<i32>} : memref<2x768xf32, #tpu.memory_space<vmem>>, vector<2x128xf32>,
    %cst_47 = arith.constant 0.000000e+00 : f32
    %76 = vector.broadcast %cst_47 : f32 to vector<14x128xf32>
    %c0_48 = arith.constant 0 : index
    %c0_49 = arith.constant 0 : index
    %77 = vector.load %arg12[%c0_48, %c0_49] : memref<14x768xf32, #tpu.memory_space<vmem>>, vector<14x128xf32>
    tpu.vector_store %arg12[%c0_48, %c0_49], %76 {strides = array<i32>} : memref<14x768xf32, #tpu.memory_space<vmem>>, vector<14x128xf32>,
    %cst_50 = arith.constant 0.000000e+00 : f32
    %78 = vector.broadcast %cst_50 : f32 to vector<14x128xf32>
    %c0_51 = arith.constant 0 : index
    %c640_52 = arith.constant 640 : index
    %79 = vector.load %arg12[%c0_51, %c640_52] : memref<14x768xf32, #tpu.memory_space<vmem>>, vector<14x128xf32>
    tpu.vector_store %arg12[%c0_51, %c640_52], %78 {strides = array<i32>} : memref<14x768xf32, #tpu.memory_space<vmem>>, vector<14x128xf32>,
    %cst_53 = arith.constant 0.000000e+00 : f32
    %80 = vector.broadcast %cst_53 : f32 to vector<7x256xf32>
    %c0_54 = arith.constant 0 : index
    %c0_55 = arith.constant 0 : index
    %81 = vector.load %arg14[%c0_54, %c0_55] : memref<7x1024xf32, #tpu.memory_space<vmem>>, vector<7x256xf32>
    tpu.vector_store %arg14[%c0_54, %c0_55], %80 {strides = array<i32>} : memref<7x1024xf32, #tpu.memory_space<vmem>>, vector<7x256xf32>,
    %cst_56 = arith.constant 0.000000e+00 : f32
    %82 = vector.broadcast %cst_56 : f32 to vector<7x256xf32>
    %c0_57 = arith.constant 0 : index
    %c768 = arith.constant 768 : index
    %83 = vector.load %arg14[%c0_57, %c768] : memref<7x1024xf32, #tpu.memory_space<vmem>>, vector<7x256xf32>
    tpu.vector_store %arg14[%c0_57, %c768], %82 {strides = array<i32>} : memref<7x1024xf32, #tpu.memory_space<vmem>>, vector<7x256xf32>,
    %c0_58 = arith.constant 0 : index
    %c128 = arith.constant 128 : index
    %84 = vector.load %arg11[%c0_58, %c128] : memref<2x768xf32, #tpu.memory_space<vmem>>, vector<1x512xf32>
    tpu.vector_store %arg11[%c0_58, %c128], %67 {strides = array<i32>} : memref<2x768xf32, #tpu.memory_space<vmem>>, vector<1x512xf32>,
    %c1_59 = arith.constant 1 : index
    %c128_60 = arith.constant 128 : index
    %85 = vector.load %arg11[%c1_59, %c128_60] : memref<2x768xf32, #tpu.memory_space<vmem>>, vector<1x512xf32>
    tpu.vector_store %arg11[%c1_59, %c128_60], %71 {strides = array<i32>} : memref<2x768xf32, #tpu.memory_space<vmem>>, vector<1x512xf32>,
    %c0_61 = arith.constant 0 : index
    %c125 = arith.constant 125 : index
    %86 = vector.load %arg11[%c0_61, %c125] : memref<2x768xf32, #tpu.memory_space<vmem>>, vector<2x512xf32>
    %c0_62 = arith.constant 0 : index
    %c0_63 = arith.constant 0 : index
    %87 = vector.load %arg8[%c0_62, %c0_63] : memref<14x512xf32, #tpu.memory_space<vmem>>, vector<1x512xf32>
    %88 = vector.broadcast %87 : vector<1x512xf32> to vector<2x512xf32>
    %89 = arith.mulf %86, %88 : vector<2x512xf32>
    %c0_64 = arith.constant 0 : index
    %c128_65 = arith.constant 128 : index
    %90 = vector.load %arg12[%c0_64, %c128_65] : memref<14x768xf32, #tpu.memory_space<vmem>>, vector<2x512xf32>
    tpu.vector_store %arg12[%c0_64, %c128_65], %89 {strides = array<i32>} : memref<14x768xf32, #tpu.memory_space<vmem>>, vector<2x512xf32>,
    %c0_66 = arith.constant 0 : index
    %c126 = arith.constant 126 : index
    %91 = vector.load %arg11[%c0_66, %c126] : memref<2x768xf32, #tpu.memory_space<vmem>>, vector<2x512xf32>
    %c1_67 = arith.constant 1 : index
    %c0_68 = arith.constant 0 : index
    %92 = vector.load %arg8[%c1_67, %c0_68] : memref<14x512xf32, #tpu.memory_space<vmem>>, vector<1x512xf32>
    %93 = vector.broadcast %92 : vector<1x512xf32> to vector<2x512xf32>
    %94 = arith.mulf %91, %93 : vector<2x512xf32>
    %c2 = arith.constant 2 : index
    %c128_69 = arith.constant 128 : index
    %95 = vector.load %arg12[%c2, %c128_69] : memref<14x768xf32, #tpu.memory_space<vmem>>, vector<2x512xf32>
    tpu.vector_store %arg12[%c2, %c128_69], %94 {strides = array<i32>} : memref<14x768xf32, #tpu.memory_space<vmem>>, vector<2x512xf32>,
    %c0_70 = arith.constant 0 : index
    %c127 = arith.constant 127 : index
    %96 = vector.load %arg11[%c0_70, %c127] : memref<2x768xf32, #tpu.memory_space<vmem>>, vector<2x512xf32>
    %c2_71 = arith.constant 2 : index
    %c0_72 = arith.constant 0 : index
    %97 = vector.load %arg8[%c2_71, %c0_72] : memref<14x512xf32, #tpu.memory_space<vmem>>, vector<1x512xf32>
    %98 = vector.broadcast %97 : vector<1x512xf32> to vector<2x512xf32>
    %99 = arith.mulf %96, %98 : vector<2x512xf32>
    %c4 = arith.constant 4 : index
    %c128_73 = arith.constant 128 : index
    %100 = vector.load %arg12[%c4, %c128_73] : memref<14x768xf32, #tpu.memory_space<vmem>>, vector<2x512xf32>
    tpu.vector_store %arg12[%c4, %c128_73], %99 {strides = array<i32>} : memref<14x768xf32, #tpu.memory_space<vmem>>, vector<2x512xf32>,
    %c0_74 = arith.constant 0 : index
    %c128_75 = arith.constant 128 : index
    %101 = vector.load %arg11[%c0_74, %c128_75] : memref<2x768xf32, #tpu.memory_space<vmem>>, vector<2x512xf32>
    %c3 = arith.constant 3 : index
    %c0_76 = arith.constant 0 : index
    %102 = vector.load %arg8[%c3, %c0_76] : memref<14x512xf32, #tpu.memory_space<vmem>>, vector<1x512xf32>
    %103 = vector.broadcast %102 : vector<1x512xf32> to vector<2x512xf32>
    %104 = arith.mulf %101, %103 : vector<2x512xf32>
    %c6 = arith.constant 6 : index
    %c128_77 = arith.constant 128 : index
    %105 = vector.load %arg12[%c6, %c128_77] : memref<14x768xf32, #tpu.memory_space<vmem>>, vector<2x512xf32>
    tpu.vector_store %arg12[%c6, %c128_77], %104 {strides = array<i32>} : memref<14x768xf32, #tpu.memory_space<vmem>>, vector<2x512xf32>,
    %c0_78 = arith.constant 0 : index
    %c129 = arith.constant 129 : index
    %106 = vector.load %arg11[%c0_78, %c129] : memref<2x768xf32, #tpu.memory_space<vmem>>, vector<2x512xf32>
    %c4_79 = arith.constant 4 : index
    %c0_80 = arith.constant 0 : index
    %107 = vector.load %arg8[%c4_79, %c0_80] : memref<14x512xf32, #tpu.memory_space<vmem>>, vector<1x512xf32>
    %108 = vector.broadcast %107 : vector<1x512xf32> to vector<2x512xf32>
    %109 = arith.mulf %106, %108 : vector<2x512xf32>
    %c8 = arith.constant 8 : index
    %c128_81 = arith.constant 128 : index
    %110 = vector.load %arg12[%c8, %c128_81] : memref<14x768xf32, #tpu.memory_space<vmem>>, vector<2x512xf32>
    tpu.vector_store %arg12[%c8, %c128_81], %109 {strides = array<i32>} : memref<14x768xf32, #tpu.memory_space<vmem>>, vector<2x512xf32>,
    %c0_82 = arith.constant 0 : index
    %c130 = arith.constant 130 : index
    %111 = vector.load %arg11[%c0_82, %c130] : memref<2x768xf32, #tpu.memory_space<vmem>>, vector<2x512xf32>
    %c5 = arith.constant 5 : index
    %c0_83 = arith.constant 0 : index
    %112 = vector.load %arg8[%c5, %c0_83] : memref<14x512xf32, #tpu.memory_space<vmem>>, vector<1x512xf32>
    %113 = vector.broadcast %112 : vector<1x512xf32> to vector<2x512xf32>
    %114 = arith.mulf %111, %113 : vector<2x512xf32>
    %c10 = arith.constant 10 : index
    %c128_84 = arith.constant 128 : index
    %115 = vector.load %arg12[%c10, %c128_84] : memref<14x768xf32, #tpu.memory_space<vmem>>, vector<2x512xf32>
    tpu.vector_store %arg12[%c10, %c128_84], %114 {strides = array<i32>} : memref<14x768xf32, #tpu.memory_space<vmem>>, vector<2x512xf32>,
    %c0_85 = arith.constant 0 : index
    %c131 = arith.constant 131 : index
    %116 = vector.load %arg11[%c0_85, %c131] : memref<2x768xf32, #tpu.memory_space<vmem>>, vector<2x512xf32>
    %c6_86 = arith.constant 6 : index
    %c0_87 = arith.constant 0 : index
    %117 = vector.load %arg8[%c6_86, %c0_87] : memref<14x512xf32, #tpu.memory_space<vmem>>, vector<1x512xf32>
    %118 = vector.broadcast %117 : vector<1x512xf32> to vector<2x512xf32>
    %119 = arith.mulf %116, %118 : vector<2x512xf32>
    %c12 = arith.constant 12 : index
    %c128_88 = arith.constant 128 : index
    %120 = vector.load %arg12[%c12, %c128_88] : memref<14x768xf32, #tpu.memory_space<vmem>>, vector<2x512xf32>
    tpu.vector_store %arg12[%c12, %c128_88], %119 {strides = array<i32>} : memref<14x768xf32, #tpu.memory_space<vmem>>, vector<2x512xf32>,
    %c0_89 = arith.constant 0 : index
    %c104 = arith.constant 104 : index
    %121 = vector.load %arg12[%c0_89, %c104] : memref<14x768xf32, #tpu.memory_space<vmem>>, vector<14x512xf32>
    %c7 = arith.constant 7 : index
    %c0_90 = arith.constant 0 : index
    %122 = vector.load %arg8[%c7, %c0_90] : memref<14x512xf32, #tpu.memory_space<vmem>>, vector<1x512xf32>
    %123 = vector.broadcast %122 : vector<1x512xf32> to vector<14x512xf32>
    %124 = arith.mulf %121, %123 : vector<14x512xf32>
    %c0_91 = arith.constant 0 : index
    %c0_92 = arith.constant 0 : index
    %125 = vector.load %arg13[%c0_91, %c0_92] : memref<98x512xf32, #tpu.memory_space<vmem>>, vector<14x512xf32>
    tpu.vector_store %arg13[%c0_91, %c0_92], %124 {strides = array<i32>} : memref<98x512xf32, #tpu.memory_space<vmem>>, vector<14x512xf32>,
    %c0_93 = arith.constant 0 : index
    %c112 = arith.constant 112 : index
    %126 = vector.load %arg12[%c0_93, %c112] : memref<14x768xf32, #tpu.memory_space<vmem>>, vector<14x512xf32>
    %c8_94 = arith.constant 8 : index
    %c0_95 = arith.constant 0 : index
    %127 = vector.load %arg8[%c8_94, %c0_95] : memref<14x512xf32, #tpu.memory_space<vmem>>, vector<1x512xf32>
    %128 = vector.broadcast %127 : vector<1x512xf32> to vector<14x512xf32>
    %129 = arith.mulf %126, %128 : vector<14x512xf32>
    %c14 = arith.constant 14 : index
    %c0_96 = arith.constant 0 : index
    %130 = vector.load %arg13[%c14, %c0_96] : memref<98x512xf32, #tpu.memory_space<vmem>>, vector<14x512xf32>
    tpu.vector_store %arg13[%c14, %c0_96], %129 {strides = array<i32>} : memref<98x512xf32, #tpu.memory_space<vmem>>, vector<14x512xf32>,
    %c0_97 = arith.constant 0 : index
    %c120 = arith.constant 120 : index
    %131 = vector.load %arg12[%c0_97, %c120] : memref<14x768xf32, #tpu.memory_space<vmem>>, vector<14x512xf32>
    %c9 = arith.constant 9 : index
    %c0_98 = arith.constant 0 : index
    %132 = vector.load %arg8[%c9, %c0_98] : memref<14x512xf32, #tpu.memory_space<vmem>>, vector<1x512xf32>
    %133 = vector.broadcast %132 : vector<1x512xf32> to vector<14x512xf32>
    %134 = arith.mulf %131, %133 : vector<14x512xf32>
    %c28 = arith.constant 28 : index
    %c0_99 = arith.constant 0 : index
    %135 = vector.load %arg13[%c28, %c0_99] : memref<98x512xf32, #tpu.memory_space<vmem>>, vector<14x512xf32>
    tpu.vector_store %arg13[%c28, %c0_99], %134 {strides = array<i32>} : memref<98x512xf32, #tpu.memory_space<vmem>>, vector<14x512xf32>,
    %c0_100 = arith.constant 0 : index
    %c128_101 = arith.constant 128 : index
    %136 = vector.load %arg12[%c0_100, %c128_101] : memref<14x768xf32, #tpu.memory_space<vmem>>, vector<14x512xf32>
    %c10_102 = arith.constant 10 : index
    %c0_103 = arith.constant 0 : index
    %137 = vector.load %arg8[%c10_102, %c0_103] : memref<14x512xf32, #tpu.memory_space<vmem>>, vector<1x512xf32>
    %138 = vector.broadcast %137 : vector<1x512xf32> to vector<14x512xf32>
    %139 = arith.mulf %136, %138 : vector<14x512xf32>
    %c42 = arith.constant 42 : index
    %c0_104 = arith.constant 0 : index
    %140 = vector.load %arg13[%c42, %c0_104] : memref<98x512xf32, #tpu.memory_space<vmem>>, vector<14x512xf32>
    tpu.vector_store %arg13[%c42, %c0_104], %139 {strides = array<i32>} : memref<98x512xf32, #tpu.memory_space<vmem>>, vector<14x512xf32>,
    %c0_105 = arith.constant 0 : index
    %c136 = arith.constant 136 : index
    %141 = vector.load %arg12[%c0_105, %c136] : memref<14x768xf32, #tpu.memory_space<vmem>>, vector<14x512xf32>
    %c11 = arith.constant 11 : index
    %c0_106 = arith.constant 0 : index
    %142 = vector.load %arg8[%c11, %c0_106] : memref<14x512xf32, #tpu.memory_space<vmem>>, vector<1x512xf32>
    %143 = vector.broadcast %142 : vector<1x512xf32> to vector<14x512xf32>
    %144 = arith.mulf %141, %143 : vector<14x512xf32>
    %c56 = arith.constant 56 : index
    %c0_107 = arith.constant 0 : index
    %145 = vector.load %arg13[%c56, %c0_107] : memref<98x512xf32, #tpu.memory_space<vmem>>, vector<14x512xf32>
    tpu.vector_store %arg13[%c56, %c0_107], %144 {strides = array<i32>} : memref<98x512xf32, #tpu.memory_space<vmem>>, vector<14x512xf32>,
    %c0_108 = arith.constant 0 : index
    %c144 = arith.constant 144 : index
    %146 = vector.load %arg12[%c0_108, %c144] : memref<14x768xf32, #tpu.memory_space<vmem>>, vector<14x512xf32>
    %c12_109 = arith.constant 12 : index
    %c0_110 = arith.constant 0 : index
    %147 = vector.load %arg8[%c12_109, %c0_110] : memref<14x512xf32, #tpu.memory_space<vmem>>, vector<1x512xf32>
    %148 = vector.broadcast %147 : vector<1x512xf32> to vector<14x512xf32>
    %149 = arith.mulf %146, %148 : vector<14x512xf32>
    %c70 = arith.constant 70 : index
    %c0_111 = arith.constant 0 : index
    %150 = vector.load %arg13[%c70, %c0_111] : memref<98x512xf32, #tpu.memory_space<vmem>>, vector<14x512xf32>
    tpu.vector_store %arg13[%c70, %c0_111], %149 {strides = array<i32>} : memref<98x512xf32, #tpu.memory_space<vmem>>, vector<14x512xf32>,
    %c0_112 = arith.constant 0 : index
    %c152 = arith.constant 152 : index
    %151 = vector.load %arg12[%c0_112, %c152] : memref<14x768xf32, #tpu.memory_space<vmem>>, vector<14x512xf32>
    %c13 = arith.constant 13 : index
    %c0_113 = arith.constant 0 : index
    %152 = vector.load %arg8[%c13, %c0_113] : memref<14x512xf32, #tpu.memory_space<vmem>>, vector<1x512xf32>
    %153 = vector.broadcast %152 : vector<1x512xf32> to vector<14x512xf32>
    %154 = arith.mulf %151, %153 : vector<14x512xf32>
    %c84 = arith.constant 84 : index
    %c0_114 = arith.constant 0 : index
    %155 = vector.load %arg13[%c84, %c0_114] : memref<98x512xf32, #tpu.memory_space<vmem>>, vector<14x512xf32>
    tpu.vector_store %arg13[%c84, %c0_114], %154 {strides = array<i32>} : memref<98x512xf32, #tpu.memory_space<vmem>>, vector<14x512xf32>,
    %c0_115 = arith.constant 0 : index
    %c0_116 = arith.constant 0 : index
    %156 = vector.load %arg7[%c0_115, %c0_116] : memref<7x98xf32, #tpu.memory_space<vmem>>, vector<7x98xf32>
    %c0_117 = arith.constant 0 : index
    %c0_118 = arith.constant 0 : index
    %157 = vector.load %arg13[%c0_117, %c0_118] : memref<98x512xf32, #tpu.memory_space<vmem>>, vector<98x512xf32>
    %cst_119 = arith.constant dense<0.000000e+00> : vector<7x512xf32>
    %158 = tpu.matmul %156, %157, %cst_119 {dimension_numbers = #tpu.dot_dimension_numbers<[1], [0], [0], [1], [0, 0, 1, 1], [], []>} : vector<7x98xf32>, vector<98x512xf32>, vector<7x512xf32> -> vector<7x512xf32>
    %c0_120 = arith.constant 0 : index
    %c256 = arith.constant 256 : index
    %159 = vector.load %arg14[%c0_120, %c256] : memref<7x1024xf32, #tpu.memory_space<vmem>>, vector<7x512xf32>
    tpu.vector_store %arg14[%c0_120, %c256], %158 {strides = array<i32>} : memref<7x1024xf32, #tpu.memory_space<vmem>>, vector<7x512xf32>,
    %c0_121 = arith.constant 0 : index
    %c64 = arith.constant 64 : index
    %160 = vector.load %arg14[%c0_121, %c64] : memref<7x1024xf32, #tpu.memory_space<vmem>>, vector<1x512xf32>
    %c1_122 = arith.constant 1 : index
    %c128_123 = arith.constant 128 : index
    %161 = vector.load %arg14[%c1_122, %c128_123] : memref<7x1024xf32, #tpu.memory_space<vmem>>, vector<1x512xf32>
    %c2_124 = arith.constant 2 : index
    %c192 = arith.constant 192 : index
    %162 = vector.load %arg14[%c2_124, %c192] : memref<7x1024xf32, #tpu.memory_space<vmem>>, vector<1x512xf32>
    %c3_125 = arith.constant 3 : index
    %c256_126 = arith.constant 256 : index
    %163 = vector.load %arg14[%c3_125, %c256_126] : memref<7x1024xf32, #tpu.memory_space<vmem>>, vector<1x512xf32>
    %c4_127 = arith.constant 4 : index
    %c320 = arith.constant 320 : index
    %164 = vector.load %arg14[%c4_127, %c320] : memref<7x1024xf32, #tpu.memory_space<vmem>>, vector<1x512xf32>
    %c5_128 = arith.constant 5 : index
    %c384 = arith.constant 384 : index
    %165 = vector.load %arg14[%c5_128, %c384] : memref<7x1024xf32, #tpu.memory_space<vmem>>, vector<1x512xf32>
    %c6_129 = arith.constant 6 : index
    %c448 = arith.constant 448 : index
    %166 = vector.load %arg14[%c6_129, %c448] : memref<7x1024xf32, #tpu.memory_space<vmem>>, vector<1x512xf32>
    %167 = arith.addf %160, %161 : vector<1x512xf32>
    %168 = arith.addf %162, %163 : vector<1x512xf32>
    %169 = arith.addf %167, %168 : vector<1x512xf32>
    %170 = arith.addf %164, %165 : vector<1x512xf32>
    %c0_130 = arith.constant 0 : index
    %171 = memref.load %arg9[%c0_130] : memref<1xf32, #tpu.memory_space<smem>>
    %172 = vector.broadcast %171 : f32 to vector<1x512xf32>
    %173 = arith.addf %166, %172 : vector<1x512xf32>
    %174 = arith.addf %170, %173 : vector<1x512xf32>
    %175 = arith.addf %169, %174 : vector<1x512xf32>
    %176 = arith.negf %175 : vector<1x512xf32>
    %177 = math.exp %176 : vector<1x512xf32>
    %cst_131 = arith.constant 1.000000e+00 : f32
    %178 = vector.broadcast %cst_131 : f32 to vector<1x512xf32>
    %179 = arith.addf %178, %177 : vector<1x512xf32>
    %180 = arith.divf %178, %179 : vector<1x512xf32>
    %c0_132 = arith.constant 0 : index
    %c0_133 = arith.constant 0 : index
    %c0_134 = arith.constant 0 : index
    %181 = vector.load %arg1[%c0_132, %c0_133, %c0_134] : memref<1x32x512xf32, #tpu.memory_space<vmem>>, vector<1x32x512xf32>
    %182 = vector.shape_cast %181 : vector<1x32x512xf32> to vector<32x512xf32>
    %183 = vector.broadcast %63 : vector<32x1xf32> to vector<32x512xf32>
    %184 = arith.mulf %182, %183 : vector<32x512xf32>
    %185 = vector.broadcast %180 : vector<1x512xf32> to vector<32x512xf32>
    %186 = arith.mulf %184, %185 : vector<32x512xf32>
    %c0_135 = arith.constant 0 : index
    %c0_136 = arith.constant 0 : index
    %c0_137 = arith.constant 0 : index
    %187 = vector.load %arg2[%c0_135, %c0_136, %c0_137] : memref<1x32x512xf32, #tpu.memory_space<vmem>>, vector<1x32x512xf32>
    %188 = vector.shape_cast %187 : vector<1x32x512xf32> to vector<32x512xf32>
    %189 = arith.addf %186, %188 : vector<32x512xf32>
    %c0_138 = arith.constant 0 : index
    %c0_139 = arith.constant 0 : index
    %c0_140 = arith.constant 0 : index
    %190 = vector.load %arg10[%c0_138, %c0_139, %c0_140] : memref<1x32x512xf32, #tpu.memory_space<vmem>>, vector<1x32x512xf32>
    %191 = vector.shape_cast %190 : vector<1x32x512xf32> to vector<32x512xf32>
    %192 = vector.shape_cast %189 : vector<32x512xf32> to vector<1x32x512xf32>
    tpu.vector_store %arg10[%c0_138, %c0_139, %c0_140], %192 {strides = array<i32>} : memref<1x32x512xf32, #tpu.memory_space<vmem>>, vector<1x32x512xf32>,
    return
  }
  func.func @transform_0(%arg0: i32) -> (i32, i32, i32) {
    %c0_i32 = arith.constant 0 : i32
    %c0_i32_0 = arith.constant 0 : i32
    %c0_i32_1 = arith.constant 0 : i32
    return %arg0, %c0_i32, %c0_i32_0 : i32, i32, i32
  }
  func.func @transform_1(%arg0: i32) -> (i32, i32, i32) {
    %c0_i32 = arith.constant 0 : i32
    %c0_i32_0 = arith.constant 0 : i32
    %c0_i32_1 = arith.constant 0 : i32
    return %arg0, %c0_i32, %c0_i32_0 : i32, i32, i32
  }
  func.func @transform_2(%arg0: i32) -> (i32, i32) {
    %c0_i32 = arith.constant 0 : i32
    %c0_i32_0 = arith.constant 0 : i32
    %c0_i32_1 = arith.constant 0 : i32
    return %c0_i32, %c0_i32_0 : i32, i32
  }
  func.func @transform_3(%arg0: i32) -> (i32, i32) {
    %c0_i32 = arith.constant 0 : i32
    %c0_i32_0 = arith.constant 0 : i32
    %c0_i32_1 = arith.constant 0 : i32
    return %c0_i32, %c0_i32_0 : i32, i32
  }
  func.func @transform_4(%arg0: i32) -> (i32, i32) {
    %c0_i32 = arith.constant 0 : i32
    %c0_i32_0 = arith.constant 0 : i32
    %c0_i32_1 = arith.constant 0 : i32
    return %c0_i32, %c0_i32_0 : i32, i32
  }
  func.func @transform_5(%arg0: i32) -> (i32, i32) {
    %c0_i32 = arith.constant 0 : i32
    %c0_i32_0 = arith.constant 0 : i32
    %c0_i32_1 = arith.constant 0 : i32
    return %c0_i32, %c0_i32_0 : i32, i32
  }
  func.func @transform_6(%arg0: i32) -> (i32, i32) {
    %c0_i32 = arith.constant 0 : i32
    %c0_i32_0 = arith.constant 0 : i32
    %c0_i32_1 = arith.constant 0 : i32
    return %c0_i32, %c0_i32_0 : i32, i32
  }
  func.func @transform_7(%arg0: i32) -> (i32, i32) {
    %c0_i32 = arith.constant 0 : i32
    %c0_i32_0 = arith.constant 0 : i32
    %c0_i32_1 = arith.constant 0 : i32
    return %c0_i32, %c0_i32_0 : i32, i32
  }
  func.func @transform_8(%arg0: i32) -> i32 {
    %c0_i32 = arith.constant 0 : i32
    %c0_i32_0 = arith.constant 0 : i32
    return %c0_i32 : i32
  }
  func.func @transform_9(%arg0: i32) -> (i32, i32, i32) {
    %c0_i32 = arith.constant 0 : i32
    %c0_i32_0 = arith.constant 0 : i32
    %c0_i32_1 = arith.constant 0 : i32
    return %arg0, %c0_i32, %c0_i32_0 : i32, i32, i32
  }
}

</mosaic_0001>

<llo_original>
// kernel: first_layer_forward.1
$region0: #{first_layer_forward.1}
  #allocation0 [shape = 'u32[]', space=smem, size = 0x4, offset = 0x4, fixed_abs, tag = 'smem constant byte address 0x4 - core index']
  #allocation1 [shape = 'u32[144,128]{1,0:T(1,128)}', space=vmem, size = 0x12000, scoped, tag = 'internal scratch']
  #allocation2 [shape = 'f32[2,768]{1,0:T(2,128)}', space=vmem, size = 0x1800, scoped, tag = 'scratch operand']
  #allocation3 [shape = 'f32[14,768]{1,0:T(8,128)}', space=vmem, size = 0xc000, scoped, tag = 'scratch operand']
  #allocation4 [shape = 'f32[98,512]{1,0:T(8,128)}', space=vmem, size = 0x34000, scoped, tag = 'scratch operand']
  #allocation5 [shape = 'f32[7,1024]{1,0:T(8,128)}', space=vmem, size = 0x8000, scoped, tag = 'scratch operand']
  #allocation6 [shape = 'f32[1]{0:T(128)S(6)}', space=smem, size = 0x200, scoped, tag = 'scoped memory for first_layer_forward.1']
  %s0 = inlined_call_operand.vmem [shape: f32[2,32,512], index: 0, kind: input, shape index: {}]
  %s1 = inlined_call_operand.vmem [shape: f32[2,32,512], index: 1, kind: input, shape index: {}]
  %s2 = inlined_call_operand.vmem [shape: f32[32,2], index: 2, kind: input, shape index: {}]
  %s3 = inlined_call_operand.vmem [shape: f32[2,1], index: 3, kind: input, shape index: {}]
  %s4 = inlined_call_operand.vmem [shape: f32[32,2], index: 4, kind: input, shape index: {}]
  %s5 = inlined_call_operand.vmem [shape: f32[32,1], index: 5, kind: input, shape index: {}]
  %s6 = inlined_call_operand.vmem [shape: f32[7,98], index: 6, kind: input, shape index: {}]
  %s7 = inlined_call_operand.vmem [shape: f32[14,512], index: 7, kind: input, shape index: {}]
  %s8 = inlined_call_operand.<no memory space> [shape: f32[1], index: 8, kind: input, shape index: {}]
  %s9 = inlined_call_operand.vmem [shape: f32[2,32,512], index: 9, kind: output, shape index: {}]
  %s10 = sld [smem:[#allocation0]]
  $region69: #{first_layer_forward.1} parent=0
    _
  %s12 = ssub.s32 1, %s10
  %s13 = scalar_select 0, %s12, %s10
  %14 = sst [smem:[#allocation6]] %s8
  loop: start=0, step=1, limit=4
  $region2: #{first_layer_forward.1} parent=0 // loop_pre_header
    _
  $region3: #{first_layer_forward.1} parent=0 // loop_header
    %s16 = sphi 0, %s20
    %p17 = scmp.ge.s32.totalorder %s16, 4
    %s26 = sphi 0, %s28
    %s29 = sphi 0, %s26
    %s30 = sphi 0, %s29
    %s46 = sphi 0, %s30
    %s52 = sphi 0, %s54
    %s55 = sphi 0, %s52
    %s56 = sphi 0, %s55
    %s72 = sphi 0, %s56
    %s76 = sphi 0, %s76
    %s78 = sphi 0, %s76
    %s79 = sphi 0, %s78
    %s93 = sphi 0, %s79
    %s97 = sphi 0, %s97
    %s99 = sphi 0, %s97
    %s100 = sphi 0, %s99
    %s114 = sphi 0, %s100
    %s118 = sphi 0, %s118
    %s120 = sphi 0, %s118
    %s121 = sphi 0, %s120
    %s135 = sphi 0, %s121
    %s139 = sphi 0, %s139
    %s141 = sphi 0, %s139
    %s142 = sphi 0, %s141
    %s156 = sphi 0, %s142
    %s160 = sphi 0, %s160
    %s162 = sphi 0, %s160
    %s163 = sphi 0, %s162
    %s177 = sphi 0, %s163
    %s181 = sphi 0, %s181
    %s183 = sphi 0, %s181
    %s184 = sphi 0, %s183
    %s198 = sphi 0, %s184
    %s202 = sphi 0, %s202
    %s204 = sphi 0, %s202
    %s205 = sphi 0, %s204
    %s219 = sphi 0, %s205
    %s225 = sphi 0, %s227
    %s228 = sphi 0, %s225
    %s229 = sphi 0, %s228
    %s245 = sphi 0, %s229
  $region4: #{first_layer_forward.1} parent=0 // loop_header_branch
    %19 = sbr.rel (%p17) target = $region8
  $region5: #{first_layer_forward.1} parent=0 // loop_body
    %s21 = ssub.s32 %s16, 1
    %s22 = ssub.s32 %s16, 2
    %s23 = sadd.s32 %s16, 1
    %s24 = ssub.s32 %s16, %s23
    %p25 = scmp.eq.s32.totalorder %s24, 0
    %s27 = sadd.s32 %s26, 1
    %s28 = scalar_select %p25, %s26, %s27
    %p31 = pneg %p25
    %p32 = scmp.eq.s32.totalorder %s16, 1
    %p33 = por %p31, %p32
    %p34 = scmp.ne.s32.totalorder %s26, %s29
    %p35 = scmp.eq.s32.totalorder %s16, 0
    %p36 = por %p34, %p35
    %p37 = scmp.ne.s32.totalorder %s26, %s29
    %p38 = scmp.eq.s32.totalorder %s21, 1
    %p39 = por %p37, %p38
    %p40 = scmp.ne.s32.totalorder %s29, %s30
    %p41 = scmp.eq.s32.totalorder %s21, 0
    %p42 = por %p40, %p41
    %p43 = scmp.ne.s32.totalorder %s29, %s30
    %p44 = scmp.eq.s32.totalorder %s22, 1
    %p45 = por %p43, %p44
    %p47 = scmp.ne.s32.totalorder %s30, %s46
    %p48 = scmp.eq.s32.totalorder %s22, 0
    %p49 = por %p47, %p48
    %s50 = ssub.s32 %s16, %s23
    %p51 = scmp.eq.s32.totalorder %s50, 0
    %s53 = sadd.s32 %s52, 1
    %s54 = scalar_select %p51, %s52, %s53
    %p57 = pneg %p51
    %p58 = scmp.eq.s32.totalorder %s16, 1
    %p59 = por %p57, %p58
    %p60 = scmp.ne.s32.totalorder %s52, %s55
    %p61 = scmp.eq.s32.totalorder %s16, 0
    %p62 = por %p60, %p61
    %p63 = scmp.ne.s32.totalorder %s52, %s55
    %p64 = scmp.eq.s32.totalorder %s21, 1
    %p65 = por %p63, %p64
    %p66 = scmp.ne.s32.totalorder %s55, %s56
    %p67 = scmp.eq.s32.totalorder %s21, 0
    %p68 = por %p66, %p67
    %p69 = scmp.ne.s32.totalorder %s55, %s56
    %p70 = scmp.eq.s32.totalorder %s22, 1
    %p71 = por %p69, %p70
    %p73 = scmp.ne.s32.totalorder %s56, %s72
    %p74 = scmp.eq.s32.totalorder %s22, 0
    %p75 = por %p73, %p74
    %s77 = sadd.s32 %s76, 1
    %p80 = scmp.eq.s32.totalorder %s16, 1
    %p81 = scmp.ne.s32.totalorder %s76, %s78
    %p82 = scmp.eq.s32.totalorder %s16, 0
    %p83 = por %p81, %p82
    %p84 = scmp.ne.s32.totalorder %s76, %s78
    %p85 = scmp.eq.s32.totalorder %s21, 1
    %p86 = por %p84, %p85
    %p87 = scmp.ne.s32.totalorder %s78, %s79
    %p88 = scmp.eq.s32.totalorder %s21, 0
    %p89 = por %p87, %p88
    %p90 = scmp.ne.s32.totalorder %s78, %s79
    %p91 = scmp.eq.s32.totalorder %s22, 1
    %p92 = por %p90, %p91
    %p94 = scmp.ne.s32.totalorder %s79, %s93
    %p95 = scmp.eq.s32.totalorder %s22, 0
    %p96 = por %p94, %p95
    %s98 = sadd.s32 %s97, 1
    %p101 = scmp.eq.s32.totalorder %s16, 1
    %p102 = scmp.ne.s32.totalorder %s97, %s99
    %p103 = scmp.eq.s32.totalorder %s16, 0
    %p104 = por %p102, %p103
    %p105 = scmp.ne.s32.totalorder %s97, %s99
    %p106 = scmp.eq.s32.totalorder %s21, 1
    %p107 = por %p105, %p106
    %p108 = scmp.ne.s32.totalorder %s99, %s100
    %p109 = scmp.eq.s32.totalorder %s21, 0
    %p110 = por %p108, %p109
    %p111 = scmp.ne.s32.totalorder %s99, %s100
    %p112 = scmp.eq.s32.totalorder %s22, 1
    %p113 = por %p111, %p112
    %p115 = scmp.ne.s32.totalorder %s100, %s114
    %p116 = scmp.eq.s32.totalorder %s22, 0
    %p117 = por %p115, %p116
    %s119 = sadd.s32 %s118, 1
    %p122 = scmp.eq.s32.totalorder %s16, 1
    %p123 = scmp.ne.s32.totalorder %s118, %s120
    %p124 = scmp.eq.s32.totalorder %s16, 0
    %p125 = por %p123, %p124
    %p126 = scmp.ne.s32.totalorder %s118, %s120
    %p127 = scmp.eq.s32.totalorder %s21, 1
    %p128 = por %p126, %p127
    %p129 = scmp.ne.s32.totalorder %s120, %s121
    %p130 = scmp.eq.s32.totalorder %s21, 0
    %p131 = por %p129, %p130
    %p132 = scmp.ne.s32.totalorder %s120, %s121
    %p133 = scmp.eq.s32.totalorder %s22, 1
    %p134 = por %p132, %p133
    %p136 = scmp.ne.s32.totalorder %s121, %s135
    %p137 = scmp.eq.s32.totalorder %s22, 0
    %p138 = por %p136, %p137
    %s140 = sadd.s32 %s139, 1
    %p143 = scmp.eq.s32.totalorder %s16, 1
    %p144 = scmp.ne.s32.totalorder %s139, %s141
    %p145 = scmp.eq.s32.totalorder %s16, 0
    %p146 = por %p144, %p145
    %p147 = scmp.ne.s32.totalorder %s139, %s141
    %p148 = scmp.eq.s32.totalorder %s21, 1
    %p149 = por %p147, %p148
    %p150 = scmp.ne.s32.totalorder %s141, %s142
    %p151 = scmp.eq.s32.totalorder %s21, 0
    %p152 = por %p150, %p151
    %p153 = scmp.ne.s32.totalorder %s141, %s142
    %p154 = scmp.eq.s32.totalorder %s22, 1
    %p155 = por %p153, %p154
    %p157 = scmp.ne.s32.totalorder %s142, %s156
    %p158 = scmp.eq.s32.totalorder %s22, 0
    %p159 = por %p157, %p158
    %s161 = sadd.s32 %s160, 1
    %p164 = scmp.eq.s32.totalorder %s16, 1
    %p165 = scmp.ne.s32.totalorder %s160, %s162
    %p166 = scmp.eq.s32.totalorder %s16, 0
    %p167 = por %p165, %p166
    %p168 = scmp.ne.s32.totalorder %s160, %s162
    %p169 = scmp.eq.s32.totalorder %s21, 1
    %p170 = por %p168, %p169
    %p171 = scmp.ne.s32.totalorder %s162, %s163
    %p172 = scmp.eq.s32.totalorder %s21, 0
    %p173 = por %p171, %p172
    %p174 = scmp.ne.s32.totalorder %s162, %s163
    %p175 = scmp.eq.s32.totalorder %s22, 1
    %p176 = por %p174, %p175
    %p178 = scmp.ne.s32.totalorder %s163, %s177
    %p179 = scmp.eq.s32.totalorder %s22, 0
    %p180 = por %p178, %p179
    %s182 = sadd.s32 %s181, 1
    %p185 = scmp.eq.s32.totalorder %s16, 1
    %p186 = scmp.ne.s32.totalorder %s181, %s183
    %p187 = scmp.eq.s32.totalorder %s16, 0
    %p188 = por %p186, %p187
    %p189 = scmp.ne.s32.totalorder %s181, %s183
    %p190 = scmp.eq.s32.totalorder %s21, 1
    %p191 = por %p189, %p190
    %p192 = scmp.ne.s32.totalorder %s183, %s184
    %p193 = scmp.eq.s32.totalorder %s21, 0
    %p194 = por %p192, %p193
    %p195 = scmp.ne.s32.totalorder %s183, %s184
    %p196 = scmp.eq.s32.totalorder %s22, 1
    %p197 = por %p195, %p196
    %p199 = scmp.ne.s32.totalorder %s184, %s198
    %p200 = scmp.eq.s32.totalorder %s22, 0
    %p201 = por %p199, %p200
    %s203 = sadd.s32 %s202, 1
    %p206 = scmp.eq.s32.totalorder %s16, 1
    %p207 = scmp.ne.s32.totalorder %s202, %s204
    %p208 = scmp.eq.s32.totalorder %s16, 0
    %p209 = por %p207, %p208
    %p210 = scmp.ne.s32.totalorder %s202, %s204
    %p211 = scmp.eq.s32.totalorder %s21, 1
    %p212 = por %p210, %p211
    %p213 = scmp.ne.s32.totalorder %s204, %s205
    %p214 = scmp.eq.s32.totalorder %s21, 0
    %p215 = por %p213, %p214
    %p216 = scmp.ne.s32.totalorder %s204, %s205
    %p217 = scmp.eq.s32.totalorder %s22, 1
    %p218 = por %p216, %p217
    %p220 = scmp.ne.s32.totalorder %s205, %s219
    %p221 = scmp.eq.s32.totalorder %s22, 0
    %p222 = por %p220, %p221
    %s223 = ssub.s32 %s16, %s23
    %p224 = scmp.eq.s32.totalorder %s223, 0
    %s226 = sadd.s32 %s225, 1
    %s227 = scalar_select %p224, %s225, %s226
    %p230 = pneg %p224
    %p231 = scmp.eq.s32.totalorder %s16, 1
    %p232 = por %p230, %p231
    %p233 = scmp.ne.s32.totalorder %s225, %s228
    %p234 = scmp.eq.s32.totalorder %s16, 0
    %p235 = por %p233, %p234
    %p236 = scmp.ne.s32.totalorder %s225, %s228
    %p237 = scmp.eq.s32.totalorder %s21, 1
    %p238 = por %p236, %p237
    %p239 = scmp.ne.s32.totalorder %s228, %s229
    %p240 = scmp.eq.s32.totalorder %s21, 0
    %p241 = por %p239, %p240
    %p242 = scmp.ne.s32.totalorder %s228, %s229
    %p243 = scmp.eq.s32.totalorder %s22, 1
    %p244 = por %p242, %p243
    %p246 = scmp.ne.s32.totalorder %s229, %s245
    %p247 = scmp.eq.s32.totalorder %s22, 0
    %p248 = por %p246, %p247
    %p249 = scmp.le.s32.totalorder 1, %s16
    %p250 = scmp.lt.s32.totalorder %s16, 3
    %p251 = pnand %p249, %p250
    %p252 = pneg %p251
    // Predicated region
    $region9: #{first_layer_forward.1} parent=5 // pred_check
      _
    $region10: #{first_layer_forward.1} parent=5 // pred_check_branch
      %254 = sbr.rel (%p251) target = $region12
    $region11: #{first_layer_forward.1} parent=5 // pred_region
      %s255 = ssub.s32 %s16, 1
      // Predicated region
      $region13: #{first_layer_forward.1} parent=11 // pred_check
        %p256 = pneg %p89
      $region14: #{first_layer_forward.1} parent=11 // pred_check_branch
        %258 = sbr.rel (%p256) target = $region16
      $region15: #{first_layer_forward.1} parent=11 // pred_region
        _
      $region16: #{first_layer_forward.1} parent=11 // pred_fallthru
        _
      // Predicated region
      $region17: #{first_layer_forward.1} parent=11 // pred_check
        %p259 = pneg %p110
      $region18: #{first_layer_forward.1} parent=11 // pred_check_branch
        %261 = sbr.rel (%p259) target = $region20
      $region19: #{first_layer_forward.1} parent=11 // pred_region
        _
      $region20: #{first_layer_forward.1} parent=11 // pred_fallthru
        _
      // Predicated region
      $region21: #{first_layer_forward.1} parent=11 // pred_check
        %p262 = pneg %p131
      $region22: #{first_layer_forward.1} parent=11 // pred_check_branch
        %264 = sbr.rel (%p262) target = $region24
      $region23: #{first_layer_forward.1} parent=11 // pred_region
        _
      $region24: #{first_layer_forward.1} parent=11 // pred_fallthru
        _
      // Predicated region
      $region25: #{first_layer_forward.1} parent=11 // pred_check
        %p265 = pneg %p152
      $region26: #{first_layer_forward.1} parent=11 // pred_check_branch
        %267 = sbr.rel (%p265) target = $region28
      $region27: #{first_layer_forward.1} parent=11 // pred_region
        _
      $region28: #{first_layer_forward.1} parent=11 // pred_fallthru
        _
      // Predicated region
      $region29: #{first_layer_forward.1} parent=11 // pred_check
        %p268 = pneg %p173
      $region30: #{first_layer_forward.1} parent=11 // pred_check_branch
        %270 = sbr.rel (%p268) target = $region32
      $region31: #{first_layer_forward.1} parent=11 // pred_region
        _
      $region32: #{first_layer_forward.1} parent=11 // pred_fallthru
        _
      // Predicated region
      $region33: #{first_layer_forward.1} parent=11 // pred_check
        %p271 = pneg %p194
      $region34: #{first_layer_forward.1} parent=11 // pred_check_branch
        %273 = sbr.rel (%p271) target = $region36
      $region35: #{first_layer_forward.1} parent=11 // pred_region
        _
      $region36: #{first_layer_forward.1} parent=11 // pred_fallthru
        _
      // Predicated region
      $region37: #{first_layer_forward.1} parent=11 // pred_check
        %p274 = pneg %p215
      $region38: #{first_layer_forward.1} parent=11 // pred_check_branch
        %276 = sbr.rel (%p274) target = $region40
      $region39: #{first_layer_forward.1} parent=11 // pred_region
        _
      $region40: #{first_layer_forward.1} parent=11 // pred_fallthru
        _
    $region12: #{first_layer_forward.1} parent=5 // pred_fallthru
      _
    %p277 = scmp.lt.s32.totalorder %s16, 2
    // Predicated region
    $region41: #{first_layer_forward.1} parent=5 // pred_check
      %p278 = pneg %p277
    $region42: #{first_layer_forward.1} parent=5 // pred_check_branch
      %280 = sbr.rel (%p278) target = $region44
    $region43: #{first_layer_forward.1} parent=5 // pred_region
      // Predicated region
      $region45: #{first_layer_forward.1} parent=43 // pred_check
        %p281 = pneg %p36
      $region46: #{first_layer_forward.1} parent=43 // pred_check_branch
        %283 = sbr.rel (%p281) target = $region48
      $region47: #{first_layer_forward.1} parent=43 // pred_region
        %p284 = scmp.lt.s32.totalorder %s16, 1
        %s285 = scalar_select %p284, %s16, 1
        %s286 = smul.addr %s285, 16
        %s287 = smul.addr %s286, 8
        %s288 = scalar_lea.vmem %s0, %s287
      $region48: #{first_layer_forward.1} parent=43 // pred_fallthru
        _
      // Predicated region
      $region49: #{first_layer_forward.1} parent=43 // pred_check
        %p289 = pneg %p62
      $region50: #{first_layer_forward.1} parent=43 // pred_check_branch
        %291 = sbr.rel (%p289) target = $region52
      $region51: #{first_layer_forward.1} parent=43 // pred_region
        %p292 = scmp.lt.s32.totalorder %s16, 1
        %s293 = scalar_select %p292, %s16, 1
        %s294 = smul.addr %s293, 16
        %s295 = smul.addr %s294, 8
        %s296 = scalar_lea.vmem %s1, %s295
      $region52: #{first_layer_forward.1} parent=43 // pred_fallthru
        _
    $region44: #{first_layer_forward.1} parent=5 // pred_fallthru
      _
    %p297 = scmp.le.s32.totalorder 1, %s16
    %p298 = scmp.lt.s32.totalorder %s16, 3
    %p299 = pnand %p297, %p298
    %p300 = pneg %p299
    // Predicated region
    $region53: #{first_layer_forward.1} parent=5 // pred_check
      _
    $region54: #{first_layer_forward.1} parent=5 // pred_check_branch
      %302 = sbr.rel (%p299) target = $region56
    $region55: #{first_layer_forward.1} parent=5 // pred_region
      %s303 = ssub.s32 %s16, 1
      %p304 = scmp.lt.s32.totalorder %s21, 1
      %s305 = scalar_select %p304, %s21, 1
      %s306 = smul.addr %s305, 16
      %s307 = smul.addr %s306, 8
      %s308 = scalar_lea.vmem %s0, %s307
      %p309 = pneg %p42
      %p310 = pneg %p39
      %p311 = scmp.lt.s32.totalorder %s21, 1
      %s312 = scalar_select %p311, %s21, 1
      %s313 = smul.addr %s312, 16
      %s314 = smul.addr %s313, 8
      %s315 = scalar_lea.vmem %s1, %s314
      %p316 = pneg %p68
      %p317 = pneg %p65
      %p318 = pneg %p89
      %p319 = pneg %p86
      %p320 = pneg %p110
      %p321 = pneg %p107
      %p322 = pneg %p131
      %p323 = pneg %p128
      %p324 = pneg %p152
      %p325 = pneg %p149
      %p326 = pneg %p173
      %p327 = pneg %p170
      %p328 = pneg %p194
      %p329 = pneg %p191
      %p330 = pneg %p215
      %p331 = pneg %p212
      %p332 = pneg %p241
      %p333 = pneg %p238
      %p334 = scmp.lt.s32.totalorder %s21, 1
      %s335 = scalar_select %p334, %s21, 1
      %s336 = smul.addr %s335, 16
      %s337 = smul.addr %s336, 8
      %s338 = scalar_lea.vmem %s9, %s337
      %p339 = scmp.lt.s32.totalorder %s21, 1
      %s340 = scalar_select %p339, %s21, 1
      %s341 = smul.addr %s340, 16
      %s342 = smul.addr %s341, 8
      %s343 = scalar_lea.vmem %s0, %s342
      %p344 = scmp.lt.s32.totalorder %s21, 1
      %s345 = scalar_select %p344, %s21, 1
      %s346 = smul.addr %s345, 16
      %s347 = smul.addr %s346, 8
      %s348 = scalar_lea.vmem %s1, %s347
      %p349 = scmp.lt.s32.totalorder %s21, 1
      %s350 = scalar_select %p349, %s21, 1
      %s351 = smul.addr %s350, 16
      %s352 = smul.addr %s351, 8
      %s353 = scalar_lea.vmem %s9, %s352
      %v354 = vld [vmem:[%s343] sm:$0xff]
      %v355 = vld [vmem:[%s343 + $0x8] sm:$0xff]
      %v356 = vld [vmem:[%s343 + $0x10] sm:$0xff]
      %v357 = vld [vmem:[%s343 + $0x18] sm:$0xff]
      %v358 = vld [vmem:[%s343 + $0x20] sm:$0xff]
      %v359 = vld [vmem:[%s343 + $0x28] sm:$0xff]
      %v360 = vld [vmem:[%s343 + $0x30] sm:$0xff]
      %v361 = vld [vmem:[%s343 + $0x38] sm:$0xff]
      %v362 = vld [vmem:[%s343 + $0x40] sm:$0xff]
      %v363 = vld [vmem:[%s343 + $0x48] sm:$0xff]
      %v364 = vld [vmem:[%s343 + $0x50] sm:$0xff]
      %v365 = vld [vmem:[%s343 + $0x58] sm:$0xff]
      %v366 = vld [vmem:[%s343 + $0x60] sm:$0xff]
      %v367 = vld [vmem:[%s343 + $0x68] sm:$0xff]
      %v368 = vld [vmem:[%s343 + $0x70] sm:$0xff]
      %v369 = vld [vmem:[%s343 + $0x78] sm:$0xff]
      %v370 = vadd.f32 %v354, %v355
      %v371 = vadd.f32 %v370, %v356
      %v372 = vadd.f32 %v371, %v357
      %373 = vadd.xlane.f32.xlu0 %v372
      %v374 = vpop.xlane.xlu0 %373
      %v375 = vadd.f32 %v358, %v359
      %v376 = vadd.f32 %v375, %v360
      %v377 = vadd.f32 %v376, %v361
      %378 = vadd.xlane.f32.xlu0 %v377
      %v379 = vpop.xlane.xlu0 %378
      %v380 = vadd.f32 %v362, %v363
      %v381 = vadd.f32 %v380, %v364
      %v382 = vadd.f32 %v381, %v365
      %383 = vadd.xlane.f32.xlu0 %v382
      %v384 = vpop.xlane.xlu0 %383
      %v385 = vadd.f32 %v366, %v367
      %v386 = vadd.f32 %v385, %v368
      %v387 = vadd.f32 %v386, %v369
      %388 = vadd.xlane.f32.xlu0 %v387
      %v389 = vpop.xlane.xlu0 %388
      %v390 = vrcp.pop 512.0
      %v391 = vmul.f32 %v374, %v390
      %v392 = vmul.f32 %v379, %v390
      %v393 = vmul.f32 %v384, %v390
      %v394 = vmul.f32 %v389, %v390
      %v395 = vmax.f32 %v354, %v355
      %v396 = vmax.f32 %v395, %v356
      %v397 = vmax.f32 %v396, %v357
      %398 = vmax.xlane.f32.xlu0 %v397
      %v399 = vpop.xlane.xlu0 %398
      %v400 = vmax.f32 %v358, %v359
      %v401 = vmax.f32 %v400, %v360
      %v402 = vmax.f32 %v401, %v361
      %403 = vmax.xlane.f32.xlu0 %v402
      %v404 = vpop.xlane.xlu0 %403
      %v405 = vmax.f32 %v362, %v363
      %v406 = vmax.f32 %v405, %v364
      %v407 = vmax.f32 %v406, %v365
      %408 = vmax.xlane.f32.xlu0 %v407
      %v409 = vpop.xlane.xlu0 %408
      %v410 = vmax.f32 %v366, %v367
      %v411 = vmax.f32 %v410, %v368
      %v412 = vmax.f32 %v411, %v369
      %413 = vmax.xlane.f32.xlu0 %v412
      %v414 = vpop.xlane.xlu0 %413
      %v415 = vld [vmem:[%s5] sm:$0xff]
      %v416 = vld [vmem:[%s5 + $0x8] sm:$0xff]
      %v417 = vld [vmem:[%s5 + $0x10] sm:$0xff]
      %v418 = vld [vmem:[%s5 + $0x18] sm:$0xff]
      %v419 = vmul.f32 %v415, 2.0
      %v420 = vmul.f32 %v416, 2.0
      %v421 = vmul.f32 %v417, 2.0
      %v422 = vmul.f32 %v418, 2.0
      %v423 = vld [vmem:[%s2] sm:$0xff]
      %v424 = vld [vmem:[%s2 + $0x8] sm:$0xff]
      %v425 = vld [vmem:[%s2 + $0x10] sm:$0xff]
      %v426 = vld [vmem:[%s2 + $0x18] sm:$0xff]
      %v427 = vmul.f32 %v423, %v391
      %v428 = vmul.f32 %v424, %v392
      %v429 = vmul.f32 %v425, %v393
      %v430 = vmul.f32 %v426, %v394
      %vm431 = vcmask 7168
      %v432 = vsel %vm431, %v427, 0.0
      %v433 = vsel %vm431, %v428, 0.0
      %v434 = vadd.f32 %v432, %v433
      %v435 = vsel %vm431, %v429, 0.0
      %v436 = vadd.f32 %v434, %v435
      %v437 = vsel %vm431, %v430, 0.0
      %v438 = vadd.f32 %v436, %v437
      %v439 = vrot.slane %v438, 4
      %v440 = vadd.f32 %v438, %v439
      %v441 = vrot.slane %v440, 2
      %v442 = vadd.f32 %v440, %v441
      %v443 = vrot.slane %v442, 1
      %v444 = vadd.f32 %v442, %v443
      %v445 = vld [vmem:[%s3] sm:$0x1]
      %v446 = vadd.f32 %v444, %v445
      %v447 = vmax.f32 %v446, 0.0
      %v448 = vld [vmem:[%s4] sm:$0xff]
      %v449 = vld [vmem:[%s4 + $0x8] sm:$0xff]
      %v450 = vld [vmem:[%s4 + $0x10] sm:$0xff]
      %v451 = vld [vmem:[%s4 + $0x18] sm:$0xff]
      %v452 = vlaneseq
      %v453 = vshrl.u32 %v452, 7
      %v454 = vsub.s32 0, %v453
      %v455 = vrot.slane %v447, %v454
      %v456 = vmul.f32 %v448, %v455
      %v457 = vmul.f32 %v449, %v455
      %v458 = vmul.f32 %v450, %v455
      %v459 = vmul.f32 %v451, %v455
      %v460 = vadd.f32 %v419, %v456
      %v461 = vadd.f32 %v420, %v457
      %v462 = vadd.f32 %v421, %v458
      %v463 = vadd.f32 %v422, %v459
      %vm464 = vcmask 15368
      %v465 = vsel %vm464, %v427, 0.0
      %v466 = vsel %vm464, %v428, 0.0
      %v467 = vadd.f32 %v465, %v466
      %v468 = vsel %vm464, %v429, 0.0
      %v469 = vadd.f32 %v467, %v468
      %v470 = vsel %vm464, %v430, 0.0
      %v471 = vadd.f32 %v469, %v470
      %v472 = vrot.slane %v471, 4
      %v473 = vadd.f32 %v471, %v472
      %v474 = vrot.slane %v473, 2
      %v475 = vadd.f32 %v473, %v474
      %v476 = vrot.slane %v475, 1
      %v477 = vadd.f32 %v475, %v476
      %v478 = vld [vmem:[%s3 + $0x1] sm:$0x1]
      %480 = vrot.lane.b32.xlu0 %v478, 1
      %v481 = vpop.permute.xlu0 %480
      %v483 = vadd.f32 %v477, %v481
      %v484 = vmax.f32 %v483, 0.0
      %v485 = vlaneseq
      %v486 = vshrl.u32 %v485, 7
      %v487 = vsub.s32 0, %v486
      %v488 = vrot.slane %v484, %v487
      %v489 = vmul.f32 %v448, %v488
      %v490 = vmul.f32 %v449, %v488
      %v491 = vmul.f32 %v450, %v488
      %v492 = vmul.f32 %v451, %v488
      %497 = vrot.lane.b32.xlu0 %v489, 127
      %v498 = vpop.permute.xlu0 %497
      %499 = vrot.lane.b32.xlu0 %v490, 127
      %v500 = vpop.permute.xlu0 %499
      %501 = vrot.lane.b32.xlu0 %v491, 127
      %v502 = vpop.permute.xlu0 %501
      %503 = vrot.lane.b32.xlu0 %v492, 127
      %v504 = vpop.permute.xlu0 %503
      %v509 = vadd.f32 %v460, %v498
      %v510 = vadd.f32 %v461, %v500
      %v511 = vadd.f32 %v462, %v502
      %v512 = vadd.f32 %v463, %v504
      %v513 = vmul.f32 %v423, %v399
      %v514 = vmul.f32 %v424, %v404
      %v515 = vmul.f32 %v425, %v409
      %v516 = vmul.f32 %v426, %v414
      %v517 = vsel %vm431, %v513, 0.0
      %v518 = vsel %vm431, %v514, 0.0
      %v519 = vadd.f32 %v517, %v518
      %v520 = vsel %vm431, %v515, 0.0
      %v521 = vadd.f32 %v519, %v520
      %v522 = vsel %vm431, %v516, 0.0
      %v523 = vadd.f32 %v521, %v522
      %v524 = vrot.slane %v523, 4
      %v525 = vadd.f32 %v523, %v524
      %v526 = vrot.slane %v525, 2
      %v527 = vadd.f32 %v525, %v526
      %v528 = vrot.slane %v527, 1
      %v529 = vadd.f32 %v527, %v528
      %v530 = vadd.f32 %v529, %v445
      %v531 = vmax.f32 %v530, 0.0
      %v532 = vlaneseq
      %v533 = vshrl.u32 %v532, 7
      %v534 = vsub.s32 0, %v533
      %v535 = vrot.slane %v531, %v534
      %v536 = vmul.f32 %v448, %v535
      %v537 = vmul.f32 %v449, %v535
      %v538 = vmul.f32 %v450, %v535
      %v539 = vmul.f32 %v451, %v535
      %v540 = vadd.f32 %v509, %v536
      %v541 = vadd.f32 %v510, %v537
      %v542 = vadd.f32 %v511, %v538
      %v543 = vadd.f32 %v512, %v539
      %v544 = vsel %vm464, %v513, 0.0
      %v545 = vsel %vm464, %v514, 0.0
      %v546 = vadd.f32 %v544, %v545
      %v547 = vsel %vm464, %v515, 0.0
      %v548 = vadd.f32 %v546, %v547
      %v549 = vsel %vm464, %v516, 0.0
      %v550 = vadd.f32 %v548, %v549
      %v551 = vrot.slane %v550, 4
      %v552 = vadd.f32 %v550, %v551
      %v553 = vrot.slane %v552, 2
      %v554 = vadd.f32 %v552, %v553
      %v555 = vrot.slane %v554, 1
      %v556 = vadd.f32 %v554, %v555
      %v557 = vadd.f32 %v556, %v481
      %v558 = vmax.f32 %v557, 0.0
      %v559 = vlaneseq
      %v560 = vshrl.u32 %v559, 7
      %v561 = vsub.s32 0, %v560
      %v562 = vrot.slane %v558, %v561
      %v563 = vmul.f32 %v448, %v562
      %v564 = vmul.f32 %v449, %v562
      %v565 = vmul.f32 %v450, %v562
      %v566 = vmul.f32 %v451, %v562
      %571 = vrot.lane.b32.xlu0 %v563, 127
      %v572 = vpop.permute.xlu0 %571
      %573 = vrot.lane.b32.xlu0 %v564, 127
      %v574 = vpop.permute.xlu0 %573
      %575 = vrot.lane.b32.xlu0 %v565, 127
      %v576 = vpop.permute.xlu0 %575
      %577 = vrot.lane.b32.xlu0 %v566, 127
      %v578 = vpop.permute.xlu0 %577
      %v583 = vadd.f32 %v540, %v572
      %v584 = vadd.f32 %v541, %v574
      %v585 = vadd.f32 %v542, %v576
      %v586 = vadd.f32 %v543, %v578
      %v587 = vxor.u32 %v583, 2147483648
      %v588 = vxor.u32 %v584, 2147483648
      %v589 = vxor.u32 %v585, 2147483648
      %v590 = vxor.u32 %v586, 2147483648
      %v591 = vmul.f32 %v587, 1.442695
      %v592 = vpow.pop %v591
      %v593 = vmul.f32 %v588, 1.442695
      %v594 = vpow.pop %v593
      %v595 = vmul.f32 %v589, 1.442695
      %v596 = vpow.pop %v595
      %v597 = vmul.f32 %v590, 1.442695
      %v598 = vpow.pop %v597
      %v599 = vadd.f32 %v592, 1.0
      %v600 = vadd.f32 %v594, 1.0
      %v601 = vadd.f32 %v596, 1.0
      %v602 = vadd.f32 %v598, 1.0
      %v603 = vrcp.pop %v599
      %v604 = vmul.f32 1.0, %v603
      %v605 = vrcp.pop %v600
      %v606 = vmul.f32 1.0, %v605
      %v607 = vrcp.pop %v601
      %v608 = vmul.f32 1.0, %v607
      %v609 = vrcp.pop %v602
      %v610 = vmul.f32 1.0, %v609
      %612 = vset.pattern.permute.xlu0 0
      %613 = vperm.xlu0 %612, %v604
      %v614 = vpop.permute.xlu0 %613
      %617 = vset.pattern.permute.xlu0 0
      %618 = vperm.xlu0 %617, %v606
      %v619 = vpop.permute.xlu0 %618
      %622 = vset.pattern.permute.xlu0 0
      %623 = vperm.xlu0 %622, %v608
      %v624 = vpop.permute.xlu0 %623
      %627 = vset.pattern.permute.xlu0 0
      %628 = vperm.xlu0 %627, %v610
      %v629 = vpop.permute.xlu0 %628
      %v631 = vmul.f32 %v354, %v614
      %v632 = vmul.f32 %v355, %v614
      %v633 = vmul.f32 %v356, %v614
      %v634 = vmul.f32 %v357, %v614
      %v635 = vmul.f32 %v358, %v619
      %v636 = vmul.f32 %v359, %v619
      %v637 = vmul.f32 %v360, %v619
      %v638 = vmul.f32 %v361, %v619
      %v639 = vmul.f32 %v362, %v624
      %v640 = vmul.f32 %v363, %v624
      %v641 = vmul.f32 %v364, %v624
      %v642 = vmul.f32 %v365, %v624
      %v643 = vmul.f32 %v366, %v629
      %v644 = vmul.f32 %v367, %v629
      %v645 = vmul.f32 %v368, %v629
      %v646 = vmul.f32 %v369, %v629
      %v647 = vmax.f32 %v631, %v635
      %v648 = vmax.f32 %v647, %v639
      %v649 = vmax.f32 %v648, %v643
      %v650 = vrot.slane %v649, 4
      %v651 = vmax.f32 %v649, %v650
      %v652 = vrot.slane %v651, 2
      %v653 = vmax.f32 %v651, %v652
      %v654 = vrot.slane %v653, 1
      %v655 = vmax.f32 %v653, %v654
      %v656 = vmax.f32 %v632, %v636
      %v657 = vmax.f32 %v656, %v640
      %v658 = vmax.f32 %v657, %v644
      %v659 = vrot.slane %v658, 4
      %v660 = vmax.f32 %v658, %v659
      %v661 = vrot.slane %v660, 2
      %v662 = vmax.f32 %v660, %v661
      %v663 = vrot.slane %v662, 1
      %v664 = vmax.f32 %v662, %v663
      %v665 = vmax.f32 %v633, %v637
      %v666 = vmax.f32 %v665, %v641
      %v667 = vmax.f32 %v666, %v645
      %v668 = vrot.slane %v667, 4
      %v669 = vmax.f32 %v667, %v668
      %v670 = vrot.slane %v669, 2
      %v671 = vmax.f32 %v669, %v670
      %v672 = vrot.slane %v671, 1
      %v673 = vmax.f32 %v671, %v672
      %v674 = vmax.f32 %v634, %v638
      %v675 = vmax.f32 %v674, %v642
      %v676 = vmax.f32 %v675, %v646
      %v677 = vrot.slane %v676, 4
      %v678 = vmax.f32 %v676, %v677
      %v679 = vrot.slane %v678, 2
      %v680 = vmax.f32 %v678, %v679
      %v681 = vrot.slane %v680, 1
      %v682 = vmax.f32 %v680, %v681
      %v683 = vadd.f32 %v631, %v635
      %v684 = vadd.f32 %v683, %v639
      %v685 = vadd.f32 %v684, %v643
      %v686 = vrot.slane %v685, 4
      %v687 = vadd.f32 %v685, %v686
      %v688 = vrot.slane %v687, 2
      %v689 = vadd.f32 %v687, %v688
      %v690 = vrot.slane %v689, 1
      %v691 = vadd.f32 %v689, %v690
      %v692 = vadd.f32 %v632, %v636
      %v693 = vadd.f32 %v692, %v640
      %v694 = vadd.f32 %v693, %v644
      %v695 = vrot.slane %v694, 4
      %v696 = vadd.f32 %v694, %v695
      %v697 = vrot.slane %v696, 2
      %v698 = vadd.f32 %v696, %v697
      %v699 = vrot.slane %v698, 1
      %v700 = vadd.f32 %v698, %v699
      %v701 = vadd.f32 %v633, %v637
      %v702 = vadd.f32 %v701, %v641
      %v703 = vadd.f32 %v702, %v645
      %v704 = vrot.slane %v703, 4
      %v705 = vadd.f32 %v703, %v704
      %v706 = vrot.slane %v705, 2
      %v707 = vadd.f32 %v705, %v706
      %v708 = vrot.slane %v707, 1
      %v709 = vadd.f32 %v707, %v708
      %v710 = vadd.f32 %v634, %v638
      %v711 = vadd.f32 %v710, %v642
      %v712 = vadd.f32 %v711, %v646
      %v713 = vrot.slane %v712, 4
      %v714 = vadd.f32 %v712, %v713
      %v715 = vrot.slane %v714, 2
      %v716 = vadd.f32 %v714, %v715
      %v717 = vrot.slane %v716, 1
      %v718 = vadd.f32 %v716, %v717
      %v719 = vrcp.pop 32.0
      %v720 = vmul.f32 %v691, %v719
      %v721 = vmul.f32 %v700, %v719
      %v722 = vmul.f32 %v709, %v719
      %v723 = vmul.f32 %v718, %v719
      %724 = vst [vmem:[#allocation2] sm:$0x3] 0.0
      %725 = vst [vmem:[#allocation2 + $0xa] sm:$0x3] 0.0
      %726 = vst [vmem:[#allocation3] sm:$0xff] 0.0
      %727 = vst [vmem:[#allocation3 + $0x30] sm:$0x3f] 0.0
      %728 = vst [vmem:[#allocation3 + $0x28] sm:$0xff] 0.0
      %729 = vst [vmem:[#allocation3 + $0x58] sm:$0x3f] 0.0
      %730 = vst [vmem:[#allocation5] sm:$0x7f] 0.0
      %731 = vst [vmem:[#allocation5 + $0x8] sm:$0x7f] 0.0
      %732 = vst [vmem:[#allocation5 + $0x30] sm:$0x7f] 0.0
      %733 = vst [vmem:[#allocation5 + $0x38] sm:$0x7f] 0.0
      %v738 = vcombine.low %v655, %v664
      %v739 = vcombine.low %v673, %v682
      %v741 = vunpack.c.l.s4 1966171168
      %v742 = vunpack.c.0.s8 %v741
      %v743 = vlaneseq
      %v744 = vshrl.u32 %v743, 7
      %v745 = vsub.s32 %v742, %v744
      %v746 = vrot.slane %v738, %v745
      %v748 = vunpack.c.l.s4 1966171168
      %v749 = vunpack.c.0.s8 %v748
      %v750 = vlaneseq
      %v751 = vshrl.u32 %v750, 7
      %v752 = vsub.s32 %v749, %v751
      %v753 = vrot.slane %v739, %v752
      %v754 = vcombine.low %v746, %v753
      %v756 = vunpack.c.l.s4 1966171168
      %v757 = vunpack.c.0.s8 %v756
      %v758 = vlaneseq
      %v759 = vshrl.u32 %v758, 7
      %v760 = vsub.s32 %v757, %v759
      %v761 = vrot.slane %v754, %v760
      %v763 = vlaneseq
      %vm764 = vcmp.ge.s32.totalorder %v763, 0
      %vm765 = vcmp.lt.s32.totalorder %v763, 512
      %vm766 = vmand %vm764, %vm765
      %s767 = scalar_lea.vmem [#allocation2], 2
      %768 = vst.msk [vmem:[%s767] ss:$2 sm:$0xf] %vm766, %v761
      %v773 = vcombine.low %v720, %v721
      %v774 = vcombine.low %v722, %v723
      %v776 = vunpack.c.l.s4 1966171168
      %v777 = vunpack.c.0.s8 %v776
      %v778 = vlaneseq
      %v779 = vshrl.u32 %v778, 7
      %v780 = vsub.s32 %v777, %v779
      %v781 = vrot.slane %v773, %v780
      %v783 = vunpack.c.l.s4 1966171168
      %v784 = vunpack.c.0.s8 %v783
      %v785 = vlaneseq
      %v786 = vshrl.u32 %v785, 7
      %v787 = vsub.s32 %v784, %v786
      %v788 = vrot.slane %v774, %v787
      %v789 = vcombine.low %v781, %v788
      %v791 = vunpack.c.l.s4 1966171168
      %v792 = vunpack.c.0.s8 %v791
      %v793 = vlaneseq
      %v794 = vshrl.u32 %v793, 7
      %v795 = vsub.s32 %v792, %v794
      %v796 = vrot.slane %v789, %v795
      %s798 = scalar_lea.vmem [#allocation2], 3
      %799 = vst.msk [vmem:[%s798] ss:$2 sm:$0xf] %vm766, %v796
      %v800 = vld [vmem:[#allocation2] sm:$0xff]
      %v801 = vld [vmem:[#allocation2 + $0x8] sm:$0x3]
      %v802 = vld [vmem:[%s7] ss:$8 sm:$0xf]
      %v804 = vlaneseq
      %v805 = vshrl.u32 %v804, 7
      %v806 = vsub.s32 0, %v805
      %v807 = vrot.slane %v802, %v806
      %v808 = vlaneseq
      %v809 = vshrl.u32 %v808, 7
      %v810 = vsub.s32 1, %v809
      %v811 = vrot.slane %v802, %v810
      %v812 = vlaneseq
      %v813 = vshrl.u32 %v812, 7
      %v814 = vsub.s32 2, %v813
      %v815 = vrot.slane %v802, %v814
      %v816 = vlaneseq
      %v817 = vshrl.u32 %v816, 7
      %v818 = vsub.s32 3, %v817
      %v819 = vrot.slane %v802, %v818
      %v820 = vcombine.low %v807, %v811
      %v821 = vcombine.low %v815, %v819
      %v823 = vunpack.c.l.s4 1983009808
      %v824 = vunpack.c.0.s8 %v823
      %v825 = vlaneseq
      %v826 = vshrl.u32 %v825, 7
      %v827 = vsub.s32 %v824, %v826
      %v828 = vrot.slane %v820, %v827
      %v830 = vunpack.c.l.s4 1983009808
      %v831 = vunpack.c.0.s8 %v830
      %v832 = vlaneseq
      %v833 = vshrl.u32 %v832, 7
      %v834 = vsub.s32 %v831, %v833
      %v835 = vrot.slane %v821, %v834
      %v836 = vcombine.low %v828, %v835
      %837 = vrot.lane.b32.xlu0 %v836, 125
      %v838 = vpop.permute.xlu0 %837
      %v839 = vrot.slane %v838, 6
      %vm840 = vcmask 1022976
      %v841 = vsel %vm840, %v839, %v838
      %v844 = vmul.f32 %v800, %v841
      %v845 = vmul.f32 %v801, %v839
      %v848 = vcombine.high %v844, %v844
      %v850 = vunpack.c.l.s4 1983009808
      %v851 = vunpack.c.0.s8 %v850
      %v852 = vlaneseq
      %v853 = vshrl.u32 %v852, 7
      %v854 = vsub.s32 %v851, %v853
      %v855 = vrot.slane %v844, %v854
      %v857 = vunpack.c.l.s4 1983009808
      %v858 = vunpack.c.0.s8 %v857
      %v859 = vlaneseq
      %v860 = vshrl.u32 %v859, 7
      %v861 = vsub.s32 %v858, %v860
      %v862 = vrot.slane %v848, %v861
      %v863 = vcombine.high %v855, %v855
      %v864 = vcombine.high %v862, %v862
      %v866 = vunpack.c.l.s4 1983009808
      %v867 = vunpack.c.0.s8 %v866
      %v868 = vlaneseq
      %v869 = vshrl.u32 %v868, 7
      %v870 = vsub.s32 %v867, %v869
      %v871 = vrot.slane %v845, %v870
      %872 = vrot.lane.b32.xlu0 %v855, 3
      %v873 = vpop.permute.xlu0 %872
      %874 = vrot.lane.b32.xlu0 %v863, 3
      %v875 = vpop.permute.xlu0 %874
      %876 = vrot.lane.b32.xlu0 %v862, 3
      %v877 = vpop.permute.xlu0 %876
      %878 = vrot.lane.b32.xlu0 %v864, 3
      %v879 = vpop.permute.xlu0 %878
      %880 = vrot.lane.b32.xlu0 %v871, 3
      %v881 = vpop.permute.xlu0 %880
      %vm882 = vcmask 23552
      %v883 = vsel %vm882, %v873, %v875
      %v884 = vsel %vm882, %v875, %v877
      %v885 = vsel %vm882, %v877, %v879
      %v886 = vsel %vm882, %v879, %v881
      %891 = vst [vmem:[#allocation3 + $0x8] sm:$0x3] %v883
      %892 = vst [vmem:[#allocation3 + $0x10] sm:$0x3] %v884
      %893 = vst [vmem:[#allocation3 + $0x18] sm:$0x3] %v885
      %894 = vst [vmem:[#allocation3 + $0x20] sm:$0x3] %v886
      %v895 = vld [vmem:[#allocation2] sm:$0xff]
      %v896 = vld [vmem:[#allocation2 + $0x8] sm:$0x3]
      %s897 = scalar_lea.vmem %s7, 1
      %v898 = vld [vmem:[%s897] ss:$8 sm:$0xf]
      %v900 = vlaneseq
      %v901 = vshrl.u32 %v900, 7
      %v902 = vsub.s32 0, %v901
      %v903 = vrot.slane %v898, %v902
      %v904 = vlaneseq
      %v905 = vshrl.u32 %v904, 7
      %v906 = vsub.s32 1, %v905
      %v907 = vrot.slane %v898, %v906
      %v908 = vlaneseq
      %v909 = vshrl.u32 %v908, 7
      %v910 = vsub.s32 2, %v909
      %v911 = vrot.slane %v898, %v910
      %v912 = vlaneseq
      %v913 = vshrl.u32 %v912, 7
      %v914 = vsub.s32 3, %v913
      %v915 = vrot.slane %v898, %v914
      %v916 = vcombine.low %v903, %v907
      %v917 = vcombine.low %v911, %v915
      %v919 = vunpack.c.l.s4 1983009808
      %v920 = vunpack.c.0.s8 %v919
      %v921 = vlaneseq
      %v922 = vshrl.u32 %v921, 7
      %v923 = vsub.s32 %v920, %v922
      %v924 = vrot.slane %v916, %v923
      %v926 = vunpack.c.l.s4 1983009808
      %v927 = vunpack.c.0.s8 %v926
      %v928 = vlaneseq
      %v929 = vshrl.u32 %v928, 7
      %v930 = vsub.s32 %v927, %v929
      %v931 = vrot.slane %v917, %v930
      %v932 = vcombine.low %v924, %v931
      %933 = vrot.lane.b32.xlu0 %v932, 126
      %v934 = vpop.permute.xlu0 %933
      %v935 = vrot.slane %v934, 6
      %vm936 = vcmask 1031168
      %v937 = vsel %vm936, %v935, %v934
      %v940 = vmul.f32 %v895, %v937
      %v941 = vmul.f32 %v896, %v935
      %v944 = vcombine.low %v940, %v940
      %v946 = vunpack.c.l.s4 1983009808
      %v947 = vunpack.c.0.s8 %v946
      %v948 = vlaneseq
      %v949 = vshrl.u32 %v948, 7
      %v950 = vsub.s32 %v947, %v949
      %v951 = vrot.slane %v944, %v950
      %v953 = vunpack.c.l.s4 1983009808
      %v954 = vunpack.c.0.s8 %v953
      %v955 = vlaneseq
      %v956 = vshrl.u32 %v955, 7
      %v957 = vsub.s32 %v954, %v956
      %v958 = vrot.slane %v940, %v957
      %v959 = vcombine.high %v951, %v951
      %v960 = vcombine.high %v958, %v958
      %v961 = vcombine.low %v941, %v941
      %v963 = vunpack.c.l.s4 1983009808
      %v964 = vunpack.c.0.s8 %v963
      %v965 = vlaneseq
      %v966 = vshrl.u32 %v965, 7
      %v967 = vsub.s32 %v964, %v966
      %v968 = vrot.slane %v961, %v967
      %969 = vrot.lane.b32.xlu0 %v951, 2
      %v970 = vpop.permute.xlu0 %969
      %971 = vrot.lane.b32.xlu0 %v959, 2
      %v972 = vpop.permute.xlu0 %971
      %973 = vrot.lane.b32.xlu0 %v958, 2
      %v974 = vpop.permute.xlu0 %973
      %975 = vrot.lane.b32.xlu0 %v960, 2
      %v976 = vpop.permute.xlu0 %975
      %977 = vrot.lane.b32.xlu0 %v968, 2
      %v978 = vpop.permute.xlu0 %977
      %vm979 = vcmask 15360
      %v980 = vsel %vm979, %v970, %v972
      %v981 = vsel %vm979, %v972, %v974
      %v982 = vsel %vm979, %v974, %v976
      %v983 = vsel %vm979, %v976, %v978
      %988 = vst [vmem:[#allocation3 + $0x8] sm:$0xc] %v980
      %989 = vst [vmem:[#allocation3 + $0x10] sm:$0xc] %v981
      %990 = vst [vmem:[#allocation3 + $0x18] sm:$0xc] %v982
      %991 = vst [vmem:[#allocation3 + $0x20] sm:$0xc] %v983
      %v992 = vld [vmem:[#allocation2] sm:$0xff]
      %v993 = vld [vmem:[#allocation2 + $0x8] sm:$0x3]
      %s994 = scalar_lea.vmem %s7, 2
      %v995 = vld [vmem:[%s994] ss:$8 sm:$0xf]
      %v997 = vlaneseq
      %v998 = vshrl.u32 %v997, 7
      %v999 = vsub.s32 0, %v998
      %v1000 = vrot.slane %v995, %v999
      %v1001 = vlaneseq
      %v1002 = vshrl.u32 %v1001, 7
      %v1003 = vsub.s32 1, %v1002
      %v1004 = vrot.slane %v995, %v1003
      %v1005 = vlaneseq
      %v1006 = vshrl.u32 %v1005, 7
      %v1007 = vsub.s32 2, %v1006
      %v1008 = vrot.slane %v995, %v1007
      %v1009 = vlaneseq
      %v1010 = vshrl.u32 %v1009, 7
      %v1011 = vsub.s32 3, %v1010
      %v1012 = vrot.slane %v995, %v1011
      %v1013 = vcombine.low %v1000, %v1004
      %v1014 = vcombine.low %v1008, %v1012
      %v1016 = vunpack.c.l.s4 1983009808
      %v1017 = vunpack.c.0.s8 %v1016
      %v1018 = vlaneseq
      %v1019 = vshrl.u32 %v1018, 7
      %v1020 = vsub.s32 %v1017, %v1019
      %v1021 = vrot.slane %v1013, %v1020
      %v1023 = vunpack.c.l.s4 1983009808
      %v1024 = vunpack.c.0.s8 %v1023
      %v1025 = vlaneseq
      %v1026 = vshrl.u32 %v1025, 7
      %v1027 = vsub.s32 %v1024, %v1026
      %v1028 = vrot.slane %v1014, %v1027
      %v1029 = vcombine.low %v1021, %v1028
      %1030 = vrot.lane.b32.xlu0 %v1029, 127
      %v1031 = vpop.permute.xlu0 %1030
      %v1032 = vrot.slane %v1031, 6
      %vm1033 = vcmask 1039360
      %v1034 = vsel %vm1033, %v1032, %v1031
      %v1037 = vmul.f32 %v992, %v1034
      %v1038 = vmul.f32 %v993, %v1032
      %v1041 = vcombine.high %v1037, %v1037
      %v1043 = vunpack.c.l.s4 1983009808
      %v1044 = vunpack.c.0.s8 %v1043
      %v1045 = vlaneseq
      %v1046 = vshrl.u32 %v1045, 7
      %v1047 = vsub.s32 %v1044, %v1046
      %v1048 = vrot.slane %v1037, %v1047
      %v1050 = vunpack.c.l.s4 1983009808
      %v1051 = vunpack.c.0.s8 %v1050
      %v1052 = vlaneseq
      %v1053 = vshrl.u32 %v1052, 7
      %v1054 = vsub.s32 %v1051, %v1053
      %v1055 = vrot.slane %v1041, %v1054
      %v1056 = vcombine.low %v1048, %v1048
      %v1057 = vcombine.low %v1055, %v1055
      %v1059 = vunpack.c.l.s4 1983009808
      %v1060 = vunpack.c.0.s8 %v1059
      %v1061 = vlaneseq
      %v1062 = vshrl.u32 %v1061, 7
      %v1063 = vsub.s32 %v1060, %v1062
      %v1064 = vrot.slane %v1038, %v1063
      %v1065 = vcombine.low %v1064, %v1064
      %1066 = vrot.lane.b32.xlu0 %v1056, 1
      %v1067 = vpop.permute.xlu0 %1066
      %1068 = vrot.lane.b32.xlu0 %v1048, 1
      %v1069 = vpop.permute.xlu0 %1068
      %1070 = vrot.lane.b32.xlu0 %v1057, 1
      %v1071 = vpop.permute.xlu0 %1070
      %1072 = vrot.lane.b32.xlu0 %v1055, 1
      %v1073 = vpop.permute.xlu0 %1072
      %1074 = vrot.lane.b32.xlu0 %v1065, 1
      %v1075 = vpop.permute.xlu0 %1074
      %v1076 = vsel %vm431, %v1067, %v1069
      %v1077 = vsel %vm431, %v1069, %v1071
      %v1078 = vsel %vm431, %v1071, %v1073
      %v1079 = vsel %vm431, %v1073, %v1075
      %1084 = vst [vmem:[#allocation3 + $0x8] sm:$0x30] %v1076
      %1085 = vst [vmem:[#allocation3 + $0x10] sm:$0x30] %v1077
      %1086 = vst [vmem:[#allocation3 + $0x18] sm:$0x30] %v1078
      %1087 = vst [vmem:[#allocation3 + $0x20] sm:$0x30] %v1079
      %v1088 = vld [vmem:[#allocation2 + $0x2] sm:$0xff]
      %s1089 = scalar_lea.vmem %s7, 3
      %v1090 = vld [vmem:[%s1089] ss:$8 sm:$0xf]
      %v1092 = vlaneseq
      %v1093 = vshrl.u32 %v1092, 7
      %v1094 = vsub.s32 0, %v1093
      %v1095 = vrot.slane %v1090, %v1094
      %v1096 = vlaneseq
      %v1097 = vshrl.u32 %v1096, 7
      %v1098 = vsub.s32 1, %v1097
      %v1099 = vrot.slane %v1090, %v1098
      %v1100 = vlaneseq
      %v1101 = vshrl.u32 %v1100, 7
      %v1102 = vsub.s32 2, %v1101
      %v1103 = vrot.slane %v1090, %v1102
      %v1104 = vlaneseq
      %v1105 = vshrl.u32 %v1104, 7
      %v1106 = vsub.s32 3, %v1105
      %v1107 = vrot.slane %v1090, %v1106
      %v1108 = vcombine.low %v1095, %v1099
      %v1109 = vcombine.low %v1103, %v1107
      %v1111 = vunpack.c.l.s4 1983009808
      %v1112 = vunpack.c.0.s8 %v1111
      %v1113 = vlaneseq
      %v1114 = vshrl.u32 %v1113, 7
      %v1115 = vsub.s32 %v1112, %v1114
      %v1116 = vrot.slane %v1108, %v1115
      %v1118 = vunpack.c.l.s4 1983009808
      %v1119 = vunpack.c.0.s8 %v1118
      %v1120 = vlaneseq
      %v1121 = vshrl.u32 %v1120, 7
      %v1122 = vsub.s32 %v1119, %v1121
      %v1123 = vrot.slane %v1109, %v1122
      %v1124 = vcombine.low %v1116, %v1123
      %v1126 = vmul.f32 %v1088, %v1124
      %v1128 = vcombine.low %v1126, %v1126
      %v1130 = vunpack.c.l.s4 1983009808
      %v1131 = vunpack.c.0.s8 %v1130
      %v1132 = vlaneseq
      %v1133 = vshrl.u32 %v1132, 7
      %v1134 = vsub.s32 %v1131, %v1133
      %v1135 = vrot.slane %v1128, %v1134
      %v1137 = vunpack.c.l.s4 1983009808
      %v1138 = vunpack.c.0.s8 %v1137
      %v1139 = vlaneseq
      %v1140 = vshrl.u32 %v1139, 7
      %v1141 = vsub.s32 %v1138, %v1140
      %v1142 = vrot.slane %v1126, %v1141
      %v1143 = vcombine.low %v1135, %v1135
      %v1144 = vcombine.low %v1142, %v1142
      %1149 = vst [vmem:[#allocation3 + $0x8] sm:$0xc0] %v1143
      %1150 = vst [vmem:[#allocation3 + $0x10] sm:$0xc0] %v1135
      %1151 = vst [vmem:[#allocation3 + $0x18] sm:$0xc0] %v1144
      %1152 = vst [vmem:[#allocation3 + $0x20] sm:$0xc0] %v1142
      %v1153 = vld [vmem:[#allocation2 + $0x2] sm:$0xff]
      %v1154 = vld [vmem:[#allocation2 + $0xa] sm:$0x3]
      %s1155 = scalar_lea.vmem %s7, 4
      %v1156 = vld [vmem:[%s1155] ss:$8 sm:$0xf]
      %v1158 = vlaneseq
      %v1159 = vshrl.u32 %v1158, 7
      %v1160 = vsub.s32 0, %v1159
      %v1161 = vrot.slane %v1156, %v1160
      %v1162 = vlaneseq
      %v1163 = vshrl.u32 %v1162, 7
      %v1164 = vsub.s32 1, %v1163
      %v1165 = vrot.slane %v1156, %v1164
      %v1166 = vlaneseq
      %v1167 = vshrl.u32 %v1166, 7
      %v1168 = vsub.s32 2, %v1167
      %v1169 = vrot.slane %v1156, %v1168
      %v1170 = vlaneseq
      %v1171 = vshrl.u32 %v1170, 7
      %v1172 = vsub.s32 3, %v1171
      %v1173 = vrot.slane %v1156, %v1172
      %v1174 = vcombine.low %v1161, %v1165
      %v1175 = vcombine.low %v1169, %v1173
      %v1177 = vunpack.c.l.s4 1983009808
      %v1178 = vunpack.c.0.s8 %v1177
      %v1179 = vlaneseq
      %v1180 = vshrl.u32 %v1179, 7
      %v1181 = vsub.s32 %v1178, %v1180
      %v1182 = vrot.slane %v1174, %v1181
      %v1184 = vunpack.c.l.s4 1983009808
      %v1185 = vunpack.c.0.s8 %v1184
      %v1186 = vlaneseq
      %v1187 = vshrl.u32 %v1186, 7
      %v1188 = vsub.s32 %v1185, %v1187
      %v1189 = vrot.slane %v1175, %v1188
      %v1190 = vcombine.low %v1182, %v1189
      %1191 = vrot.lane.b32.xlu0 %v1190, 1
      %v1192 = vpop.permute.xlu0 %1191
      %v1193 = vrot.slane %v1192, 6
      %v1194 = vsel %vm431, %v1193, %v1192
      %v1197 = vmul.f32 %v1153, %v1194
      %v1198 = vmul.f32 %v1154, %v1193
      %v1201 = vcombine.high %v1197, %v1197
      %v1203 = vunpack.c.l.s4 1983009808
      %v1204 = vunpack.c.0.s8 %v1203
      %v1205 = vlaneseq
      %v1206 = vshrl.u32 %v1205, 7
      %v1207 = vsub.s32 %v1204, %v1206
      %v1208 = vrot.slane %v1197, %v1207
      %v1210 = vunpack.c.l.s4 1983009808
      %v1211 = vunpack.c.0.s8 %v1210
      %v1212 = vlaneseq
      %v1213 = vshrl.u32 %v1212, 7
      %v1214 = vsub.s32 %v1211, %v1213
      %v1215 = vrot.slane %v1201, %v1214
      %v1216 = vcombine.high %v1208, %v1208
      %v1217 = vcombine.high %v1215, %v1215
      %v1219 = vunpack.c.l.s4 1983009808
      %v1220 = vunpack.c.0.s8 %v1219
      %v1221 = vlaneseq
      %v1222 = vshrl.u32 %v1221, 7
      %v1223 = vsub.s32 %v1220, %v1222
      %v1224 = vrot.slane %v1198, %v1223
      %1225 = vrot.lane.b32.xlu0 %v1208, 127
      %v1226 = vpop.permute.xlu0 %1225
      %1227 = vrot.lane.b32.xlu0 %v1216, 127
      %v1228 = vpop.permute.xlu0 %1227
      %1229 = vrot.lane.b32.xlu0 %v1215, 127
      %v1230 = vpop.permute.xlu0 %1229
      %1231 = vrot.lane.b32.xlu0 %v1217, 127
      %v1232 = vpop.permute.xlu0 %1231
      %1233 = vrot.lane.b32.xlu0 %v1224, 127
      %v1234 = vpop.permute.xlu0 %1233
      %v1235 = vsel %vm1033, %v1226, %v1228
      %v1236 = vsel %vm1033, %v1228, %v1230
      %v1237 = vsel %vm1033, %v1230, %v1232
      %v1238 = vsel %vm1033, %v1232, %v1234
      %1243 = vst [vmem:[#allocation3 + $0x38] sm:$0x3] %v1235
      %1244 = vst [vmem:[#allocation3 + $0x40] sm:$0x3] %v1236
      %1245 = vst [vmem:[#allocation3 + $0x48] sm:$0x3] %v1237
      %1246 = vst [vmem:[#allocation3 + $0x50] sm:$0x3] %v1238
      %v1247 = vld [vmem:[#allocation2 + $0x2] sm:$0xff]
      %v1248 = vld [vmem:[#allocation2 + $0xa] sm:$0x3]
      %s1249 = scalar_lea.vmem %s7, 5
      %v1250 = vld [vmem:[%s1249] ss:$8 sm:$0xf]
      %v1252 = vlaneseq
      %v1253 = vshrl.u32 %v1252, 7
      %v1254 = vsub.s32 0, %v1253
      %v1255 = vrot.slane %v1250, %v1254
      %v1256 = vlaneseq
      %v1257 = vshrl.u32 %v1256, 7
      %v1258 = vsub.s32 1, %v1257
      %v1259 = vrot.slane %v1250, %v1258
      %v1260 = vlaneseq
      %v1261 = vshrl.u32 %v1260, 7
      %v1262 = vsub.s32 2, %v1261
      %v1263 = vrot.slane %v1250, %v1262
      %v1264 = vlaneseq
      %v1265 = vshrl.u32 %v1264, 7
      %v1266 = vsub.s32 3, %v1265
      %v1267 = vrot.slane %v1250, %v1266
      %v1268 = vcombine.low %v1255, %v1259
      %v1269 = vcombine.low %v1263, %v1267
      %v1271 = vunpack.c.l.s4 1983009808
      %v1272 = vunpack.c.0.s8 %v1271
      %v1273 = vlaneseq
      %v1274 = vshrl.u32 %v1273, 7
      %v1275 = vsub.s32 %v1272, %v1274
      %v1276 = vrot.slane %v1268, %v1275
      %v1278 = vunpack.c.l.s4 1983009808
      %v1279 = vunpack.c.0.s8 %v1278
      %v1280 = vlaneseq
      %v1281 = vshrl.u32 %v1280, 7
      %v1282 = vsub.s32 %v1279, %v1281
      %v1283 = vrot.slane %v1269, %v1282
      %v1284 = vcombine.low %v1276, %v1283
      %1285 = vrot.lane.b32.xlu0 %v1284, 2
      %v1286 = vpop.permute.xlu0 %1285
      %v1287 = vrot.slane %v1286, 6
      %v1288 = vsel %vm979, %v1287, %v1286
      %v1291 = vmul.f32 %v1247, %v1288
      %v1292 = vmul.f32 %v1248, %v1287
      %v1295 = vcombine.low %v1291, %v1291
      %v1297 = vunpack.c.l.s4 1983009808
      %v1298 = vunpack.c.0.s8 %v1297
      %v1299 = vlaneseq
      %v1300 = vshrl.u32 %v1299, 7
      %v1301 = vsub.s32 %v1298, %v1300
      %v1302 = vrot.slane %v1295, %v1301
      %v1304 = vunpack.c.l.s4 1983009808
      %v1305 = vunpack.c.0.s8 %v1304
      %v1306 = vlaneseq
      %v1307 = vshrl.u32 %v1306, 7
      %v1308 = vsub.s32 %v1305, %v1307
      %v1309 = vrot.slane %v1291, %v1308
      %v1310 = vcombine.high %v1302, %v1302
      %v1311 = vcombine.high %v1309, %v1309
      %v1312 = vcombine.low %v1292, %v1292
      %v1314 = vunpack.c.l.s4 1983009808
      %v1315 = vunpack.c.0.s8 %v1314
      %v1316 = vlaneseq
      %v1317 = vshrl.u32 %v1316, 7
      %v1318 = vsub.s32 %v1315, %v1317
      %v1319 = vrot.slane %v1312, %v1318
      %1320 = vrot.lane.b32.xlu0 %v1302, 126
      %v1321 = vpop.permute.xlu0 %1320
      %1322 = vrot.lane.b32.xlu0 %v1310, 126
      %v1323 = vpop.permute.xlu0 %1322
      %1324 = vrot.lane.b32.xlu0 %v1309, 126
      %v1325 = vpop.permute.xlu0 %1324
      %1326 = vrot.lane.b32.xlu0 %v1311, 126
      %v1327 = vpop.permute.xlu0 %1326
      %1328 = vrot.lane.b32.xlu0 %v1319, 126
      %v1329 = vpop.permute.xlu0 %1328
      %v1330 = vsel %vm936, %v1321, %v1323
      %v1331 = vsel %vm936, %v1323, %v1325
      %v1332 = vsel %vm936, %v1325, %v1327
      %v1333 = vsel %vm936, %v1327, %v1329
      %1338 = vst [vmem:[#allocation3 + $0x38] sm:$0xc] %v1330
      %1339 = vst [vmem:[#allocation3 + $0x40] sm:$0xc] %v1331
      %1340 = vst [vmem:[#allocation3 + $0x48] sm:$0xc] %v1332
      %1341 = vst [vmem:[#allocation3 + $0x50] sm:$0xc] %v1333
      %v1342 = vld [vmem:[#allocation2 + $0x2] sm:$0xff]
      %v1343 = vld [vmem:[#allocation2 + $0xa] sm:$0x3]
      %s1344 = scalar_lea.vmem %s7, 6
      %v1345 = vld [vmem:[%s1344] ss:$8 sm:$0xf]
      %v1347 = vlaneseq
      %v1348 = vshrl.u32 %v1347, 7
      %v1349 = vsub.s32 0, %v1348
      %v1350 = vrot.slane %v1345, %v1349
      %v1351 = vlaneseq
      %v1352 = vshrl.u32 %v1351, 7
      %v1353 = vsub.s32 1, %v1352
      %v1354 = vrot.slane %v1345, %v1353
      %v1355 = vlaneseq
      %v1356 = vshrl.u32 %v1355, 7
      %v1357 = vsub.s32 2, %v1356
      %v1358 = vrot.slane %v1345, %v1357
      %v1359 = vlaneseq
      %v1360 = vshrl.u32 %v1359, 7
      %v1361 = vsub.s32 3, %v1360
      %v1362 = vrot.slane %v1345, %v1361
      %v1363 = vcombine.low %v1350, %v1354
      %v1364 = vcombine.low %v1358, %v1362
      %v1366 = vunpack.c.l.s4 1983009808
      %v1367 = vunpack.c.0.s8 %v1366
      %v1368 = vlaneseq
      %v1369 = vshrl.u32 %v1368, 7
      %v1370 = vsub.s32 %v1367, %v1369
      %v1371 = vrot.slane %v1363, %v1370
      %v1373 = vunpack.c.l.s4 1983009808
      %v1374 = vunpack.c.0.s8 %v1373
      %v1375 = vlaneseq
      %v1376 = vshrl.u32 %v1375, 7
      %v1377 = vsub.s32 %v1374, %v1376
      %v1378 = vrot.slane %v1364, %v1377
      %v1379 = vcombine.low %v1371, %v1378
      %1380 = vrot.lane.b32.xlu0 %v1379, 3
      %v1381 = vpop.permute.xlu0 %1380
      %v1382 = vrot.slane %v1381, 6
      %v1383 = vsel %vm882, %v1382, %v1381
      %v1386 = vmul.f32 %v1342, %v1383
      %v1387 = vmul.f32 %v1343, %v1382
      %v1390 = vcombine.high %v1386, %v1386
      %v1392 = vunpack.c.l.s4 1983009808
      %v1393 = vunpack.c.0.s8 %v1392
      %v1394 = vlaneseq
      %v1395 = vshrl.u32 %v1394, 7
      %v1396 = vsub.s32 %v1393, %v1395
      %v1397 = vrot.slane %v1386, %v1396
      %v1399 = vunpack.c.l.s4 1983009808
      %v1400 = vunpack.c.0.s8 %v1399
      %v1401 = vlaneseq
      %v1402 = vshrl.u32 %v1401, 7
      %v1403 = vsub.s32 %v1400, %v1402
      %v1404 = vrot.slane %v1390, %v1403
      %v1405 = vcombine.low %v1397, %v1397
      %v1406 = vcombine.low %v1404, %v1404
      %v1408 = vunpack.c.l.s4 1983009808
      %v1409 = vunpack.c.0.s8 %v1408
      %v1410 = vlaneseq
      %v1411 = vshrl.u32 %v1410, 7
      %v1412 = vsub.s32 %v1409, %v1411
      %v1413 = vrot.slane %v1387, %v1412
      %v1414 = vcombine.low %v1413, %v1413
      %1415 = vrot.lane.b32.xlu0 %v1405, 125
      %v1416 = vpop.permute.xlu0 %1415
      %1417 = vrot.lane.b32.xlu0 %v1397, 125
      %v1418 = vpop.permute.xlu0 %1417
      %1419 = vrot.lane.b32.xlu0 %v1406, 125
      %v1420 = vpop.permute.xlu0 %1419
      %1421 = vrot.lane.b32.xlu0 %v1404, 125
      %v1422 = vpop.permute.xlu0 %1421
      %1423 = vrot.lane.b32.xlu0 %v1414, 125
      %v1424 = vpop.permute.xlu0 %1423
      %v1425 = vsel %vm840, %v1416, %v1418
      %v1426 = vsel %vm840, %v1418, %v1420
      %v1427 = vsel %vm840, %v1420, %v1422
      %v1428 = vsel %vm840, %v1422, %v1424
      %1433 = vst [vmem:[#allocation3 + $0x38] sm:$0x30] %v1425
      %1434 = vst [vmem:[#allocation3 + $0x40] sm:$0x30] %v1426
      %1435 = vst [vmem:[#allocation3 + $0x48] sm:$0x30] %v1427
      %1436 = vst [vmem:[#allocation3 + $0x50] sm:$0x30] %v1428
      %v1437 = vld [vmem:[#allocation3] sm:$0xff]
      %v1438 = vld [vmem:[#allocation3 + $0x8] sm:$0xff]
      %v1439 = vld [vmem:[#allocation3 + $0x10] sm:$0xff]
      %v1440 = vld [vmem:[#allocation3 + $0x18] sm:$0xff]
      %v1441 = vld [vmem:[#allocation3 + $0x20] sm:$0xff]
      %v1442 = vld [vmem:[#allocation3 + $0x30] sm:$0x3f]
      %v1443 = vld [vmem:[#allocation3 + $0x38] sm:$0x3f]
      %v1444 = vld [vmem:[#allocation3 + $0x40] sm:$0x3f]
      %v1445 = vld [vmem:[#allocation3 + $0x48] sm:$0x3f]
      %v1446 = vld [vmem:[#allocation3 + $0x50] sm:$0x3f]
      %s1447 = scalar_lea.vmem %s7, 7
      %v1448 = vld [vmem:[%s1447] ss:$8 sm:$0xf]
      %v1450 = vlaneseq
      %v1451 = vshrl.u32 %v1450, 7
      %v1452 = vsub.s32 0, %v1451
      %v1453 = vrot.slane %v1448, %v1452
      %v1454 = vlaneseq
      %v1455 = vshrl.u32 %v1454, 7
      %v1456 = vsub.s32 1, %v1455
      %v1457 = vrot.slane %v1448, %v1456
      %v1458 = vlaneseq
      %v1459 = vshrl.u32 %v1458, 7
      %v1460 = vsub.s32 2, %v1459
      %v1461 = vrot.slane %v1448, %v1460
      %v1462 = vlaneseq
      %v1463 = vshrl.u32 %v1462, 7
      %v1464 = vsub.s32 3, %v1463
      %v1465 = vrot.slane %v1448, %v1464
      %1466 = vrot.lane.b32.xlu0 %v1453, 104
      %v1467 = vpop.permute.xlu0 %1466
      %1468 = vrot.lane.b32.xlu0 %v1457, 104
      %v1469 = vpop.permute.xlu0 %1468
      %1470 = vrot.lane.b32.xlu0 %v1461, 104
      %v1471 = vpop.permute.xlu0 %1470
      %1472 = vrot.lane.b32.xlu0 %v1465, 104
      %v1473 = vpop.permute.xlu0 %1472
      %vm1474 = vcmask 850944
      %v1475 = vsel %vm1474, %v1467, %v1469
      %v1476 = vsel %vm1474, %v1469, %v1471
      %v1477 = vsel %vm1474, %v1471, %v1473
      %v1483 = vmul.f32 %v1437, %v1467
      %v1484 = vmul.f32 %v1438, %v1475
      %v1485 = vmul.f32 %v1439, %v1476
      %v1486 = vmul.f32 %v1440, %v1477
      %v1487 = vmul.f32 %v1441, %v1473
      %v1488 = vmul.f32 %v1442, %v1467
      %v1489 = vmul.f32 %v1443, %v1475
      %v1490 = vmul.f32 %v1444, %v1476
      %v1491 = vmul.f32 %v1445, %v1477
      %v1492 = vmul.f32 %v1446, %v1473
      %1503 = vrot.lane.b32.xlu0 %v1483, 24
      %v1504 = vpop.permute.xlu0 %1503
      %1505 = vrot.lane.b32.xlu0 %v1484, 24
      %v1506 = vpop.permute.xlu0 %1505
      %1507 = vrot.lane.b32.xlu0 %v1485, 24
      %v1508 = vpop.permute.xlu0 %1507
      %1509 = vrot.lane.b32.xlu0 %v1486, 24
      %v1510 = vpop.permute.xlu0 %1509
      %1511 = vrot.lane.b32.xlu0 %v1487, 24
      %v1512 = vpop.permute.xlu0 %1511
      %1513 = vrot.lane.b32.xlu0 %v1488, 24
      %v1514 = vpop.permute.xlu0 %1513
      %1515 = vrot.lane.b32.xlu0 %v1489, 24
      %v1516 = vpop.permute.xlu0 %1515
      %1517 = vrot.lane.b32.xlu0 %v1490, 24
      %v1518 = vpop.permute.xlu0 %1517
      %1519 = vrot.lane.b32.xlu0 %v1491, 24
      %v1520 = vpop.permute.xlu0 %1519
      %1521 = vrot.lane.b32.xlu0 %v1492, 24
      %v1522 = vpop.permute.xlu0 %1521
      %vm1523 = vcmask 195584
      %v1524 = vsel %vm1523, %v1504, %v1506
      %v1525 = vsel %vm1523, %v1506, %v1508
      %v1526 = vsel %vm1523, %v1508, %v1510
      %v1527 = vsel %vm1523, %v1510, %v1512
      %v1528 = vsel %vm1523, %v1514, %v1516
      %v1529 = vsel %vm1523, %v1516, %v1518
      %v1530 = vsel %vm1523, %v1518, %v1520
      %v1531 = vsel %vm1523, %v1520, %v1522
      %1540 = vst [vmem:[#allocation4] sm:$0xff] %v1524
      %1541 = vst [vmem:[#allocation4 + $0x8] sm:$0xff] %v1525
      %1542 = vst [vmem:[#allocation4 + $0x10] sm:$0xff] %v1526
      %1543 = vst [vmem:[#allocation4 + $0x18] sm:$0xff] %v1527
      %1544 = vst [vmem:[#allocation4 + $0x20] sm:$0x3f] %v1528
      %1545 = vst [vmem:[#allocation4 + $0x28] sm:$0x3f] %v1529
      %1546 = vst [vmem:[#allocation4 + $0x30] sm:$0x3f] %v1530
      %1547 = vst [vmem:[#allocation4 + $0x38] sm:$0x3f] %v1531
      %v1548 = vld [vmem:[#allocation3] sm:$0xff]
      %v1549 = vld [vmem:[#allocation3 + $0x8] sm:$0xff]
      %v1550 = vld [vmem:[#allocation3 + $0x10] sm:$0xff]
      %v1551 = vld [vmem:[#allocation3 + $0x18] sm:$0xff]
      %v1552 = vld [vmem:[#allocation3 + $0x20] sm:$0xff]
      %v1553 = vld [vmem:[#allocation3 + $0x30] sm:$0x3f]
      %v1554 = vld [vmem:[#allocation3 + $0x38] sm:$0x3f]
      %v1555 = vld [vmem:[#allocation3 + $0x40] sm:$0x3f]
      %v1556 = vld [vmem:[#allocation3 + $0x48] sm:$0x3f]
      %v1557 = vld [vmem:[#allocation3 + $0x50] sm:$0x3f]
      %s1558 = scalar_lea.vmem %s7, 32
      %v1559 = vld [vmem:[%s1558] ss:$8 sm:$0xf]
      %v1561 = vlaneseq
      %v1562 = vshrl.u32 %v1561, 7
      %v1563 = vsub.s32 0, %v1562
      %v1564 = vrot.slane %v1559, %v1563
      %v1565 = vlaneseq
      %v1566 = vshrl.u32 %v1565, 7
      %v1567 = vsub.s32 1, %v1566
      %v1568 = vrot.slane %v1559, %v1567
      %v1569 = vlaneseq
      %v1570 = vshrl.u32 %v1569, 7
      %v1571 = vsub.s32 2, %v1570
      %v1572 = vrot.slane %v1559, %v1571
      %v1573 = vlaneseq
      %v1574 = vshrl.u32 %v1573, 7
      %v1575 = vsub.s32 3, %v1574
      %v1576 = vrot.slane %v1559, %v1575
      %1577 = vrot.lane.b32.xlu0 %v1564, 112
      %v1578 = vpop.permute.xlu0 %1577
      %1579 = vrot.lane.b32.xlu0 %v1568, 112
      %v1580 = vpop.permute.xlu0 %1579
      %1581 = vrot.lane.b32.xlu0 %v1572, 112
      %v1582 = vpop.permute.xlu0 %1581
      %1583 = vrot.lane.b32.xlu0 %v1576, 112
      %v1584 = vpop.permute.xlu0 %1583
      %vm1585 = vcmask 916480
      %v1586 = vsel %vm1585, %v1578, %v1580
      %v1587 = vsel %vm1585, %v1580, %v1582
      %v1588 = vsel %vm1585, %v1582, %v1584
      %v1594 = vmul.f32 %v1548, %v1578
      %v1595 = vmul.f32 %v1549, %v1586
      %v1596 = vmul.f32 %v1550, %v1587
      %v1597 = vmul.f32 %v1551, %v1588
      %v1598 = vmul.f32 %v1552, %v1584
      %v1599 = vmul.f32 %v1553, %v1578
      %v1600 = vmul.f32 %v1554, %v1586
      %v1601 = vmul.f32 %v1555, %v1587
      %v1602 = vmul.f32 %v1556, %v1588
      %v1603 = vmul.f32 %v1557, %v1584
      %vm1614 = vcmask 1045504
      %v1615 = vrot.slane %v1594, 2
      %v1616 = vrot.slane %v1595, 2
      %v1617 = vrot.slane %v1596, 2
      %v1618 = vrot.slane %v1597, 2
      %v1619 = vrot.slane %v1598, 2
      %v1620 = vrot.slane %v1599, 2
      %v1621 = vsel %vm1614, %v1615, %v1620
      %v1622 = vrot.slane %v1600, 2
      %v1623 = vsel %vm1614, %v1616, %v1622
      %v1624 = vrot.slane %v1601, 2
      %v1625 = vsel %vm1614, %v1617, %v1624
      %v1626 = vrot.slane %v1602, 2
      %v1627 = vsel %vm1614, %v1618, %v1626
      %v1628 = vrot.slane %v1603, 2
      %v1629 = vsel %vm1614, %v1619, %v1628
      %1630 = vrot.lane.b32.xlu0 %v1615, 16
      %v1631 = vpop.permute.xlu0 %1630
      %1632 = vrot.lane.b32.xlu0 %v1616, 16
      %v1633 = vpop.permute.xlu0 %1632
      %1634 = vrot.lane.b32.xlu0 %v1617, 16
      %v1635 = vpop.permute.xlu0 %1634
      %1636 = vrot.lane.b32.xlu0 %v1618, 16
      %v1637 = vpop.permute.xlu0 %1636
      %1638 = vrot.lane.b32.xlu0 %v1619, 16
      %v1639 = vpop.permute.xlu0 %1638
      %1640 = vrot.lane.b32.xlu0 %v1621, 16
      %v1641 = vpop.permute.xlu0 %1640
      %1642 = vrot.lane.b32.xlu0 %v1623, 16
      %v1643 = vpop.permute.xlu0 %1642
      %1644 = vrot.lane.b32.xlu0 %v1625, 16
      %v1645 = vpop.permute.xlu0 %1644
      %1646 = vrot.lane.b32.xlu0 %v1627, 16
      %v1647 = vpop.permute.xlu0 %1646
      %1648 = vrot.lane.b32.xlu0 %v1629, 16
      %v1649 = vpop.permute.xlu0 %1648
      %1650 = vrot.lane.b32.xlu0 %v1620, 16
      %v1651 = vpop.permute.xlu0 %1650
      %1652 = vrot.lane.b32.xlu0 %v1622, 16
      %v1653 = vpop.permute.xlu0 %1652
      %1654 = vrot.lane.b32.xlu0 %v1624, 16
      %v1655 = vpop.permute.xlu0 %1654
      %1656 = vrot.lane.b32.xlu0 %v1626, 16
      %v1657 = vpop.permute.xlu0 %1656
      %1658 = vrot.lane.b32.xlu0 %v1628, 16
      %v1659 = vpop.permute.xlu0 %1658
      %vm1660 = vcmask 130048
      %v1661 = vsel %vm1660, %v1631, %v1633
      %v1662 = vsel %vm1660, %v1633, %v1635
      %v1663 = vsel %vm1660, %v1635, %v1637
      %v1664 = vsel %vm1660, %v1637, %v1639
      %v1665 = vsel %vm1660, %v1641, %v1643
      %v1666 = vsel %vm1660, %v1643, %v1645
      %v1667 = vsel %vm1660, %v1645, %v1647
      %v1668 = vsel %vm1660, %v1647, %v1649
      %v1669 = vsel %vm1660, %v1651, %v1653
      %v1670 = vsel %vm1660, %v1653, %v1655
      %v1671 = vsel %vm1660, %v1655, %v1657
      %v1672 = vsel %vm1660, %v1657, %v1659
      %1685 = vst [vmem:[#allocation4 + $0x20] sm:$0xc0] %v1661
      %1686 = vst [vmem:[#allocation4 + $0x28] sm:$0xc0] %v1662
      %1687 = vst [vmem:[#allocation4 + $0x30] sm:$0xc0] %v1663
      %1688 = vst [vmem:[#allocation4 + $0x38] sm:$0xc0] %v1664
      %1689 = vst [vmem:[#allocation4 + $0x40] sm:$0xff] %v1665
      %1690 = vst [vmem:[#allocation4 + $0x48] sm:$0xff] %v1666
      %1691 = vst [vmem:[#allocation4 + $0x50] sm:$0xff] %v1667
      %1692 = vst [vmem:[#allocation4 + $0x58] sm:$0xff] %v1668
      %1693 = vst [vmem:[#allocation4 + $0x60] sm:$0xf] %v1669
      %1694 = vst [vmem:[#allocation4 + $0x68] sm:$0xf] %v1670
      %1695 = vst [vmem:[#allocation4 + $0x70] sm:$0xf] %v1671
      %1696 = vst [vmem:[#allocation4 + $0x78] sm:$0xf] %v1672
      %v1697 = vld [vmem:[#allocation3] sm:$0xff]
      %v1698 = vld [vmem:[#allocation3 + $0x8] sm:$0xff]
      %v1699 = vld [vmem:[#allocation3 + $0x10] sm:$0xff]
      %v1700 = vld [vmem:[#allocation3 + $0x18] sm:$0xff]
      %v1701 = vld [vmem:[#allocation3 + $0x20] sm:$0xff]
      %v1702 = vld [vmem:[#allocation3 + $0x30] sm:$0x3f]
      %v1703 = vld [vmem:[#allocation3 + $0x38] sm:$0x3f]
      %v1704 = vld [vmem:[#allocation3 + $0x40] sm:$0x3f]
      %v1705 = vld [vmem:[#allocation3 + $0x48] sm:$0x3f]
      %v1706 = vld [vmem:[#allocation3 + $0x50] sm:$0x3f]
      %s1707 = scalar_lea.vmem %s7, 33
      %v1708 = vld [vmem:[%s1707] ss:$8 sm:$0xf]
      %v1710 = vlaneseq
      %v1711 = vshrl.u32 %v1710, 7
      %v1712 = vsub.s32 0, %v1711
      %v1713 = vrot.slane %v1708, %v1712
      %v1714 = vlaneseq
      %v1715 = vshrl.u32 %v1714, 7
      %v1716 = vsub.s32 1, %v1715
      %v1717 = vrot.slane %v1708, %v1716
      %v1718 = vlaneseq
      %v1719 = vshrl.u32 %v1718, 7
      %v1720 = vsub.s32 2, %v1719
      %v1721 = vrot.slane %v1708, %v1720
      %v1722 = vlaneseq
      %v1723 = vshrl.u32 %v1722, 7
      %v1724 = vsub.s32 3, %v1723
      %v1725 = vrot.slane %v1708, %v1724
      %1726 = vrot.lane.b32.xlu0 %v1713, 120
      %v1727 = vpop.permute.xlu0 %1726
      %1728 = vrot.lane.b32.xlu0 %v1717, 120
      %v1729 = vpop.permute.xlu0 %1728
      %1730 = vrot.lane.b32.xlu0 %v1721, 120
      %v1731 = vpop.permute.xlu0 %1730
      %1732 = vrot.lane.b32.xlu0 %v1725, 120
      %v1733 = vpop.permute.xlu0 %1732
      %vm1734 = vcmask 982016
      %v1735 = vsel %vm1734, %v1727, %v1729
      %v1736 = vsel %vm1734, %v1729, %v1731
      %v1737 = vsel %vm1734, %v1731, %v1733
      %v1743 = vmul.f32 %v1697, %v1727
      %v1744 = vmul.f32 %v1698, %v1735
      %v1745 = vmul.f32 %v1699, %v1736
      %v1746 = vmul.f32 %v1700, %v1737
      %v1747 = vmul.f32 %v1701, %v1733
      %v1748 = vmul.f32 %v1702, %v1727
      %v1749 = vmul.f32 %v1703, %v1735
      %v1750 = vmul.f32 %v1704, %v1736
      %v1751 = vmul.f32 %v1705, %v1737
      %v1752 = vmul.f32 %v1706, %v1733
      %vm1763 = vcmask 1043456
      %v1764 = vrot.slane %v1743, 4
      %v1765 = vrot.slane %v1744, 4
      %v1766 = vrot.slane %v1745, 4
      %v1767 = vrot.slane %v1746, 4
      %v1768 = vrot.slane %v1747, 4
      %v1769 = vrot.slane %v1748, 4
      %v1770 = vsel %vm1763, %v1764, %v1769
      %v1771 = vrot.slane %v1749, 4
      %v1772 = vsel %vm1763, %v1765, %v1771
      %v1773 = vrot.slane %v1750, 4
      %v1774 = vsel %vm1763, %v1766, %v1773
      %v1775 = vrot.slane %v1751, 4
      %v1776 = vsel %vm1763, %v1767, %v1775
      %v1777 = vrot.slane %v1752, 4
      %v1778 = vsel %vm1763, %v1768, %v1777
      %1779 = vrot.lane.b32.xlu0 %v1764, 8
      %v1780 = vpop.permute.xlu0 %1779
      %1781 = vrot.lane.b32.xlu0 %v1765, 8
      %v1782 = vpop.permute.xlu0 %1781
      %1783 = vrot.lane.b32.xlu0 %v1766, 8
      %v1784 = vpop.permute.xlu0 %1783
      %1785 = vrot.lane.b32.xlu0 %v1767, 8
      %v1786 = vpop.permute.xlu0 %1785
      %1787 = vrot.lane.b32.xlu0 %v1768, 8
      %v1788 = vpop.permute.xlu0 %1787
      %1789 = vrot.lane.b32.xlu0 %v1770, 8
      %v1790 = vpop.permute.xlu0 %1789
      %1791 = vrot.lane.b32.xlu0 %v1772, 8
      %v1792 = vpop.permute.xlu0 %1791
      %1793 = vrot.lane.b32.xlu0 %v1774, 8
      %v1794 = vpop.permute.xlu0 %1793
      %1795 = vrot.lane.b32.xlu0 %v1776, 8
      %v1796 = vpop.permute.xlu0 %1795
      %1797 = vrot.lane.b32.xlu0 %v1778, 8
      %v1798 = vpop.permute.xlu0 %1797
      %1799 = vrot.lane.b32.xlu0 %v1769, 8
      %v1800 = vpop.permute.xlu0 %1799
      %1801 = vrot.lane.b32.xlu0 %v1771, 8
      %v1802 = vpop.permute.xlu0 %1801
      %1803 = vrot.lane.b32.xlu0 %v1773, 8
      %v1804 = vpop.permute.xlu0 %1803
      %1805 = vrot.lane.b32.xlu0 %v1775, 8
      %v1806 = vpop.permute.xlu0 %1805
      %1807 = vrot.lane.b32.xlu0 %v1777, 8
      %v1808 = vpop.permute.xlu0 %1807
      %vm1809 = vcmask 64512
      %v1810 = vsel %vm1809, %v1780, %v1782
      %v1811 = vsel %vm1809, %v1782, %v1784
      %v1812 = vsel %vm1809, %v1784, %v1786
      %v1813 = vsel %vm1809, %v1786, %v1788
      %v1814 = vsel %vm1809, %v1790, %v1792
      %v1815 = vsel %vm1809, %v1792, %v1794
      %v1816 = vsel %vm1809, %v1794, %v1796
      %v1817 = vsel %vm1809, %v1796, %v1798
      %v1818 = vsel %vm1809, %v1800, %v1802
      %v1819 = vsel %vm1809, %v1802, %v1804
      %v1820 = vsel %vm1809, %v1804, %v1806
      %v1821 = vsel %vm1809, %v1806, %v1808
      %1834 = vst [vmem:[#allocation4 + $0x60] sm:$0xf0] %v1810
      %1835 = vst [vmem:[#allocation4 + $0x68] sm:$0xf0] %v1811
      %1836 = vst [vmem:[#allocation4 + $0x70] sm:$0xf0] %v1812
      %1837 = vst [vmem:[#allocation4 + $0x78] sm:$0xf0] %v1813
      %1838 = vst [vmem:[#allocation4 + $0x80] sm:$0xff] %v1814
      %1839 = vst [vmem:[#allocation4 + $0x88] sm:$0xff] %v1815
      %1840 = vst [vmem:[#allocation4 + $0x90] sm:$0xff] %v1816
      %1841 = vst [vmem:[#allocation4 + $0x98] sm:$0xff] %v1817
      %1842 = vst [vmem:[#allocation4 + $0xa0] sm:$0x3] %v1818
      %1843 = vst [vmem:[#allocation4 + $0xa8] sm:$0x3] %v1819
      %1844 = vst [vmem:[#allocation4 + $0xb0] sm:$0x3] %v1820
      %1845 = vst [vmem:[#allocation4 + $0xb8] sm:$0x3] %v1821
      %v1846 = vld [vmem:[#allocation3 + $0x8] sm:$0xff]
      %v1847 = vld [vmem:[#allocation3 + $0x10] sm:$0xff]
      %v1848 = vld [vmem:[#allocation3 + $0x18] sm:$0xff]
      %v1849 = vld [vmem:[#allocation3 + $0x20] sm:$0xff]
      %v1850 = vld [vmem:[#allocation3 + $0x38] sm:$0x3f]
      %v1851 = vld [vmem:[#allocation3 + $0x40] sm:$0x3f]
      %v1852 = vld [vmem:[#allocation3 + $0x48] sm:$0x3f]
      %v1853 = vld [vmem:[#allocation3 + $0x50] sm:$0x3f]
      %s1854 = scalar_lea.vmem %s7, 34
      %v1855 = vld [vmem:[%s1854] ss:$8 sm:$0xf]
      %v1857 = vlaneseq
      %v1858 = vshrl.u32 %v1857, 7
      %v1859 = vsub.s32 0, %v1858
      %v1860 = vrot.slane %v1855, %v1859
      %v1861 = vlaneseq
      %v1862 = vshrl.u32 %v1861, 7
      %v1863 = vsub.s32 1, %v1862
      %v1864 = vrot.slane %v1855, %v1863
      %v1865 = vlaneseq
      %v1866 = vshrl.u32 %v1865, 7
      %v1867 = vsub.s32 2, %v1866
      %v1868 = vrot.slane %v1855, %v1867
      %v1869 = vlaneseq
      %v1870 = vshrl.u32 %v1869, 7
      %v1871 = vsub.s32 3, %v1870
      %v1872 = vrot.slane %v1855, %v1871
      %v1877 = vmul.f32 %v1846, %v1860
      %v1878 = vmul.f32 %v1847, %v1864
      %v1879 = vmul.f32 %v1848, %v1868
      %v1880 = vmul.f32 %v1849, %v1872
      %v1881 = vmul.f32 %v1850, %v1860
      %v1882 = vmul.f32 %v1851, %v1864
      %v1883 = vmul.f32 %v1852, %v1868
      %v1884 = vmul.f32 %v1853, %v1872
      %vm1893 = vcmask 1041408
      %v1894 = vrot.slane %v1877, 6
      %v1895 = vrot.slane %v1878, 6
      %v1896 = vrot.slane %v1879, 6
      %v1897 = vrot.slane %v1880, 6
      %v1898 = vrot.slane %v1881, 6
      %v1899 = vsel %vm1893, %v1894, %v1898
      %v1900 = vrot.slane %v1882, 6
      %v1901 = vsel %vm1893, %v1895, %v1900
      %v1902 = vrot.slane %v1883, 6
      %v1903 = vsel %vm1893, %v1896, %v1902
      %v1904 = vrot.slane %v1884, 6
      %v1905 = vsel %vm1893, %v1897, %v1904
      %1914 = vst [vmem:[#allocation4 + $0xa0] sm:$0xfc] %v1894
      %1915 = vst [vmem:[#allocation4 + $0xa8] sm:$0xfc] %v1895
      %1916 = vst [vmem:[#allocation4 + $0xb0] sm:$0xfc] %v1896
      %1917 = vst [vmem:[#allocation4 + $0xb8] sm:$0xfc] %v1897
      %1918 = vst [vmem:[#allocation4 + $0xc0] sm:$0xff] %v1899
      %1919 = vst [vmem:[#allocation4 + $0xc8] sm:$0xff] %v1901
      %1920 = vst [vmem:[#allocation4 + $0xd0] sm:$0xff] %v1903
      %1921 = vst [vmem:[#allocation4 + $0xd8] sm:$0xff] %v1905
      %v1922 = vld [vmem:[#allocation3 + $0x8] sm:$0xff]
      %v1923 = vld [vmem:[#allocation3 + $0x10] sm:$0xff]
      %v1924 = vld [vmem:[#allocation3 + $0x18] sm:$0xff]
      %v1925 = vld [vmem:[#allocation3 + $0x20] sm:$0xff]
      %v1926 = vld [vmem:[#allocation3 + $0x28] sm:$0xff]
      %v1927 = vld [vmem:[#allocation3 + $0x38] sm:$0x3f]
      %v1928 = vld [vmem:[#allocation3 + $0x40] sm:$0x3f]
      %v1929 = vld [vmem:[#allocation3 + $0x48] sm:$0x3f]
      %v1930 = vld [vmem:[#allocation3 + $0x50] sm:$0x3f]
      %v1931 = vld [vmem:[#allocation3 + $0x58] sm:$0x3f]
      %s1932 = scalar_lea.vmem %s7, 35
      %v1933 = vld [vmem:[%s1932] ss:$8 sm:$0xf]
      %v1935 = vlaneseq
      %v1936 = vshrl.u32 %v1935, 7
      %v1937 = vsub.s32 0, %v1936
      %v1938 = vrot.slane %v1933, %v1937
      %v1939 = vlaneseq
      %v1940 = vshrl.u32 %v1939, 7
      %v1941 = vsub.s32 1, %v1940
      %v1942 = vrot.slane %v1933, %v1941
      %v1943 = vlaneseq
      %v1944 = vshrl.u32 %v1943, 7
      %v1945 = vsub.s32 2, %v1944
      %v1946 = vrot.slane %v1933, %v1945
      %v1947 = vlaneseq
      %v1948 = vshrl.u32 %v1947, 7
      %v1949 = vsub.s32 3, %v1948
      %v1950 = vrot.slane %v1933, %v1949
      %1951 = vrot.lane.b32.xlu0 %v1938, 8
      %v1952 = vpop.permute.xlu0 %1951
      %1953 = vrot.lane.b32.xlu0 %v1942, 8
      %v1954 = vpop.permute.xlu0 %1953
      %1955 = vrot.lane.b32.xlu0 %v1946, 8
      %v1956 = vpop.permute.xlu0 %1955
      %1957 = vrot.lane.b32.xlu0 %v1950, 8
      %v1958 = vpop.permute.xlu0 %1957
      %v1959 = vsel %vm1809, %v1952, %v1954
      %v1960 = vsel %vm1809, %v1954, %v1956
      %v1961 = vsel %vm1809, %v1956, %v1958
      %v1967 = vmul.f32 %v1922, %v1952
      %v1968 = vmul.f32 %v1923, %v1959
      %v1969 = vmul.f32 %v1924, %v1960
      %v1970 = vmul.f32 %v1925, %v1961
      %v1971 = vmul.f32 %v1926, %v1958
      %v1972 = vmul.f32 %v1927, %v1952
      %v1973 = vmul.f32 %v1928, %v1959
      %v1974 = vmul.f32 %v1929, %v1960
      %v1975 = vmul.f32 %v1930, %v1961
      %v1976 = vmul.f32 %v1931, %v1958
      %1987 = vrot.lane.b32.xlu0 %v1967, 120
      %v1988 = vpop.permute.xlu0 %1987
      %1989 = vrot.lane.b32.xlu0 %v1968, 120
      %v1990 = vpop.permute.xlu0 %1989
      %1991 = vrot.lane.b32.xlu0 %v1969, 120
      %v1992 = vpop.permute.xlu0 %1991
      %1993 = vrot.lane.b32.xlu0 %v1970, 120
      %v1994 = vpop.permute.xlu0 %1993
      %1995 = vrot.lane.b32.xlu0 %v1971, 120
      %v1996 = vpop.permute.xlu0 %1995
      %1997 = vrot.lane.b32.xlu0 %v1972, 120
      %v1998 = vpop.permute.xlu0 %1997
      %1999 = vrot.lane.b32.xlu0 %v1973, 120
      %v2000 = vpop.permute.xlu0 %1999
      %2001 = vrot.lane.b32.xlu0 %v1974, 120
      %v2002 = vpop.permute.xlu0 %2001
      %2003 = vrot.lane.b32.xlu0 %v1975, 120
      %v2004 = vpop.permute.xlu0 %2003
      %2005 = vrot.lane.b32.xlu0 %v1976, 120
      %v2006 = vpop.permute.xlu0 %2005
      %v2007 = vsel %vm1734, %v1988, %v1990
      %v2008 = vsel %vm1734, %v1990, %v1992
      %v2009 = vsel %vm1734, %v1992, %v1994
      %v2010 = vsel %vm1734, %v1994, %v1996
      %v2011 = vsel %vm1734, %v1998, %v2000
      %v2012 = vsel %vm1734, %v2000, %v2002
      %v2013 = vsel %vm1734, %v2002, %v2004
      %v2014 = vsel %vm1734, %v2004, %v2006
      %2023 = vst [vmem:[#allocation4 + $0xe0] sm:$0xff] %v2007
      %2024 = vst [vmem:[#allocation4 + $0xe8] sm:$0xff] %v2008
      %2025 = vst [vmem:[#allocation4 + $0xf0] sm:$0xff] %v2009
      %2026 = vst [vmem:[#allocation4 + $0xf8] sm:$0xff] %v2010
      %2027 = vst [vmem:[#allocation4 + $0x100] sm:$0x3f] %v2011
      %2028 = vst [vmem:[#allocation4 + $0x108] sm:$0x3f] %v2012
      %2029 = vst [vmem:[#allocation4 + $0x110] sm:$0x3f] %v2013
      %2030 = vst [vmem:[#allocation4 + $0x118] sm:$0x3f] %v2014
      %v2031 = vld [vmem:[#allocation3 + $0x8] sm:$0xff]
      %v2032 = vld [vmem:[#allocation3 + $0x10] sm:$0xff]
      %v2033 = vld [vmem:[#allocation3 + $0x18] sm:$0xff]
      %v2034 = vld [vmem:[#allocation3 + $0x20] sm:$0xff]
      %v2035 = vld [vmem:[#allocation3 + $0x28] sm:$0xff]
      %v2036 = vld [vmem:[#allocation3 + $0x38] sm:$0x3f]
      %v2037 = vld [vmem:[#allocation3 + $0x40] sm:$0x3f]
      %v2038 = vld [vmem:[#allocation3 + $0x48] sm:$0x3f]
      %v2039 = vld [vmem:[#allocation3 + $0x50] sm:$0x3f]
      %v2040 = vld [vmem:[#allocation3 + $0x58] sm:$0x3f]
      %s2041 = scalar_lea.vmem %s7, 36
      %v2042 = vld [vmem:[%s2041] ss:$8 sm:$0xf]
      %v2044 = vlaneseq
      %v2045 = vshrl.u32 %v2044, 7
      %v2046 = vsub.s32 0, %v2045
      %v2047 = vrot.slane %v2042, %v2046
      %v2048 = vlaneseq
      %v2049 = vshrl.u32 %v2048, 7
      %v2050 = vsub.s32 1, %v2049
      %v2051 = vrot.slane %v2042, %v2050
      %v2052 = vlaneseq
      %v2053 = vshrl.u32 %v2052, 7
      %v2054 = vsub.s32 2, %v2053
      %v2055 = vrot.slane %v2042, %v2054
      %v2056 = vlaneseq
      %v2057 = vshrl.u32 %v2056, 7
      %v2058 = vsub.s32 3, %v2057
      %v2059 = vrot.slane %v2042, %v2058
      %2060 = vrot.lane.b32.xlu0 %v2047, 16
      %v2061 = vpop.permute.xlu0 %2060
      %2062 = vrot.lane.b32.xlu0 %v2051, 16
      %v2063 = vpop.permute.xlu0 %2062
      %2064 = vrot.lane.b32.xlu0 %v2055, 16
      %v2065 = vpop.permute.xlu0 %2064
      %2066 = vrot.lane.b32.xlu0 %v2059, 16
      %v2067 = vpop.permute.xlu0 %2066
      %v2068 = vsel %vm1660, %v2061, %v2063
      %v2069 = vsel %vm1660, %v2063, %v2065
      %v2070 = vsel %vm1660, %v2065, %v2067
      %v2076 = vmul.f32 %v2031, %v2061
      %v2077 = vmul.f32 %v2032, %v2068
      %v2078 = vmul.f32 %v2033, %v2069
      %v2079 = vmul.f32 %v2034, %v2070
      %v2080 = vmul.f32 %v2035, %v2067
      %v2081 = vmul.f32 %v2036, %v2061
      %v2082 = vmul.f32 %v2037, %v2068
      %v2083 = vmul.f32 %v2038, %v2069
      %v2084 = vmul.f32 %v2039, %v2070
      %v2085 = vmul.f32 %v2040, %v2067
      %v2096 = vrot.slane %v2076, 2
      %v2097 = vrot.slane %v2077, 2
      %v2098 = vrot.slane %v2078, 2
      %v2099 = vrot.slane %v2079, 2
      %v2100 = vrot.slane %v2080, 2
      %v2101 = vrot.slane %v2081, 2
      %v2102 = vsel %vm1614, %v2096, %v2101
      %v2103 = vrot.slane %v2082, 2
      %v2104 = vsel %vm1614, %v2097, %v2103
      %v2105 = vrot.slane %v2083, 2
      %v2106 = vsel %vm1614, %v2098, %v2105
      %v2107 = vrot.slane %v2084, 2
      %v2108 = vsel %vm1614, %v2099, %v2107
      %v2109 = vrot.slane %v2085, 2
      %v2110 = vsel %vm1614, %v2100, %v2109
      %2111 = vrot.lane.b32.xlu0 %v2096, 112
      %v2112 = vpop.permute.xlu0 %2111
      %2113 = vrot.lane.b32.xlu0 %v2097, 112
      %v2114 = vpop.permute.xlu0 %2113
      %2115 = vrot.lane.b32.xlu0 %v2098, 112
      %v2116 = vpop.permute.xlu0 %2115
      %2117 = vrot.lane.b32.xlu0 %v2099, 112
      %v2118 = vpop.permute.xlu0 %2117
      %2119 = vrot.lane.b32.xlu0 %v2100, 112
      %v2120 = vpop.permute.xlu0 %2119
      %2121 = vrot.lane.b32.xlu0 %v2102, 112
      %v2122 = vpop.permute.xlu0 %2121
      %2123 = vrot.lane.b32.xlu0 %v2104, 112
      %v2124 = vpop.permute.xlu0 %2123
      %2125 = vrot.lane.b32.xlu0 %v2106, 112
      %v2126 = vpop.permute.xlu0 %2125
      %2127 = vrot.lane.b32.xlu0 %v2108, 112
      %v2128 = vpop.permute.xlu0 %2127
      %2129 = vrot.lane.b32.xlu0 %v2110, 112
      %v2130 = vpop.permute.xlu0 %2129
      %2131 = vrot.lane.b32.xlu0 %v2101, 112
      %v2132 = vpop.permute.xlu0 %2131
      %2133 = vrot.lane.b32.xlu0 %v2103, 112
      %v2134 = vpop.permute.xlu0 %2133
      %2135 = vrot.lane.b32.xlu0 %v2105, 112
      %v2136 = vpop.permute.xlu0 %2135
      %2137 = vrot.lane.b32.xlu0 %v2107, 112
      %v2138 = vpop.permute.xlu0 %2137
      %2139 = vrot.lane.b32.xlu0 %v2109, 112
      %v2140 = vpop.permute.xlu0 %2139
      %v2141 = vsel %vm1585, %v2112, %v2114
      %v2142 = vsel %vm1585, %v2114, %v2116
      %v2143 = vsel %vm1585, %v2116, %v2118
      %v2144 = vsel %vm1585, %v2118, %v2120
      %v2145 = vsel %vm1585, %v2122, %v2124
      %v2146 = vsel %vm1585, %v2124, %v2126
      %v2147 = vsel %vm1585, %v2126, %v2128
      %v2148 = vsel %vm1585, %v2128, %v2130
      %v2149 = vsel %vm1585, %v2132, %v2134
      %v2150 = vsel %vm1585, %v2134, %v2136
      %v2151 = vsel %vm1585, %v2136, %v2138
      %v2152 = vsel %vm1585, %v2138, %v2140
      %2165 = vst [vmem:[#allocation4 + $0x100] sm:$0xc0] %v2141
      %2166 = vst [vmem:[#allocation4 + $0x108] sm:$0xc0] %v2142
      %2167 = vst [vmem:[#allocation4 + $0x110] sm:$0xc0] %v2143
      %2168 = vst [vmem:[#allocation4 + $0x118] sm:$0xc0] %v2144
      %2169 = vst [vmem:[#allocation4 + $0x120] sm:$0xff] %v2145
      %2170 = vst [vmem:[#allocation4 + $0x128] sm:$0xff] %v2146
      %2171 = vst [vmem:[#allocation4 + $0x130] sm:$0xff] %v2147
      %2172 = vst [vmem:[#allocation4 + $0x138] sm:$0xff] %v2148
      %2173 = vst [vmem:[#allocation4 + $0x140] sm:$0xf] %v2149
      %2174 = vst [vmem:[#allocation4 + $0x148] sm:$0xf] %v2150
      %2175 = vst [vmem:[#allocation4 + $0x150] sm:$0xf] %v2151
      %2176 = vst [vmem:[#allocation4 + $0x158] sm:$0xf] %v2152
      %v2177 = vld [vmem:[#allocation3 + $0x8] sm:$0xff]
      %v2178 = vld [vmem:[#allocation3 + $0x10] sm:$0xff]
      %v2179 = vld [vmem:[#allocation3 + $0x18] sm:$0xff]
      %v2180 = vld [vmem:[#allocation3 + $0x20] sm:$0xff]
      %v2181 = vld [vmem:[#allocation3 + $0x28] sm:$0xff]
      %v2182 = vld [vmem:[#allocation3 + $0x38] sm:$0x3f]
      %v2183 = vld [vmem:[#allocation3 + $0x40] sm:$0x3f]
      %v2184 = vld [vmem:[#allocation3 + $0x48] sm:$0x3f]
      %v2185 = vld [vmem:[#allocation3 + $0x50] sm:$0x3f]
      %v2186 = vld [vmem:[#allocation3 + $0x58] sm:$0x3f]
      %s2187 = scalar_lea.vmem %s7, 37
      %v2188 = vld [vmem:[%s2187] ss:$8 sm:$0xf]
      %v2190 = vlaneseq
      %v2191 = vshrl.u32 %v2190, 7
      %v2192 = vsub.s32 0, %v2191
      %v2193 = vrot.slane %v2188, %v2192
      %v2194 = vlaneseq
      %v2195 = vshrl.u32 %v2194, 7
      %v2196 = vsub.s32 1, %v2195
      %v2197 = vrot.slane %v2188, %v2196
      %v2198 = vlaneseq
      %v2199 = vshrl.u32 %v2198, 7
      %v2200 = vsub.s32 2, %v2199
      %v2201 = vrot.slane %v2188, %v2200
      %v2202 = vlaneseq
      %v2203 = vshrl.u32 %v2202, 7
      %v2204 = vsub.s32 3, %v2203
      %v2205 = vrot.slane %v2188, %v2204
      %2206 = vrot.lane.b32.xlu0 %v2193, 24
      %v2207 = vpop.permute.xlu0 %2206
      %2208 = vrot.lane.b32.xlu0 %v2197, 24
      %v2209 = vpop.permute.xlu0 %2208
      %2210 = vrot.lane.b32.xlu0 %v2201, 24
      %v2211 = vpop.permute.xlu0 %2210
      %2212 = vrot.lane.b32.xlu0 %v2205, 24
      %v2213 = vpop.permute.xlu0 %2212
      %v2214 = vsel %vm1523, %v2207, %v2209
      %v2215 = vsel %vm1523, %v2209, %v2211
      %v2216 = vsel %vm1523, %v2211, %v2213
      %v2222 = vmul.f32 %v2177, %v2207
      %v2223 = vmul.f32 %v2178, %v2214
      %v2224 = vmul.f32 %v2179, %v2215
      %v2225 = vmul.f32 %v2180, %v2216
      %v2226 = vmul.f32 %v2181, %v2213
      %v2227 = vmul.f32 %v2182, %v2207
      %v2228 = vmul.f32 %v2183, %v2214
      %v2229 = vmul.f32 %v2184, %v2215
      %v2230 = vmul.f32 %v2185, %v2216
      %v2231 = vmul.f32 %v2186, %v2213
      %v2242 = vrot.slane %v2222, 4
      %v2243 = vrot.slane %v2223, 4
      %v2244 = vrot.slane %v2224, 4
      %v2245 = vrot.slane %v2225, 4
      %v2246 = vrot.slane %v2226, 4
      %v2247 = vrot.slane %v2227, 4
      %v2248 = vsel %vm1763, %v2242, %v2247
      %v2249 = vrot.slane %v2228, 4
      %v2250 = vsel %vm1763, %v2243, %v2249
      %v2251 = vrot.slane %v2229, 4
      %v2252 = vsel %vm1763, %v2244, %v2251
      %v2253 = vrot.slane %v2230, 4
      %v2254 = vsel %vm1763, %v2245, %v2253
      %v2255 = vrot.slane %v2231, 4
      %v2256 = vsel %vm1763, %v2246, %v2255
      %2257 = vrot.lane.b32.xlu0 %v2242, 104
      %v2258 = vpop.permute.xlu0 %2257
      %2259 = vrot.lane.b32.xlu0 %v2243, 104
      %v2260 = vpop.permute.xlu0 %2259
      %2261 = vrot.lane.b32.xlu0 %v2244, 104
      %v2262 = vpop.permute.xlu0 %2261
      %2263 = vrot.lane.b32.xlu0 %v2245, 104
      %v2264 = vpop.permute.xlu0 %2263
      %2265 = vrot.lane.b32.xlu0 %v2246, 104
      %v2266 = vpop.permute.xlu0 %2265
      %2267 = vrot.lane.b32.xlu0 %v2248, 104
      %v2268 = vpop.permute.xlu0 %2267
      %2269 = vrot.lane.b32.xlu0 %v2250, 104
      %v2270 = vpop.permute.xlu0 %2269
      %2271 = vrot.lane.b32.xlu0 %v2252, 104
      %v2272 = vpop.permute.xlu0 %2271
      %2273 = vrot.lane.b32.xlu0 %v2254, 104
      %v2274 = vpop.permute.xlu0 %2273
      %2275 = vrot.lane.b32.xlu0 %v2256, 104
      %v2276 = vpop.permute.xlu0 %2275
      %2277 = vrot.lane.b32.xlu0 %v2247, 104
      %v2278 = vpop.permute.xlu0 %2277
      %2279 = vrot.lane.b32.xlu0 %v2249, 104
      %v2280 = vpop.permute.xlu0 %2279
      %2281 = vrot.lane.b32.xlu0 %v2251, 104
      %v2282 = vpop.permute.xlu0 %2281
      %2283 = vrot.lane.b32.xlu0 %v2253, 104
      %v2284 = vpop.permute.xlu0 %2283
      %2285 = vrot.lane.b32.xlu0 %v2255, 104
      %v2286 = vpop.permute.xlu0 %2285
      %v2287 = vsel %vm1474, %v2258, %v2260
      %v2288 = vsel %vm1474, %v2260, %v2262
      %v2289 = vsel %vm1474, %v2262, %v2264
      %v2290 = vsel %vm1474, %v2264, %v2266
      %v2291 = vsel %vm1474, %v2268, %v2270
      %v2292 = vsel %vm1474, %v2270, %v2272
      %v2293 = vsel %vm1474, %v2272, %v2274
      %v2294 = vsel %vm1474, %v2274, %v2276
      %v2295 = vsel %vm1474, %v2278, %v2280
      %v2296 = vsel %vm1474, %v2280, %v2282
      %v2297 = vsel %vm1474, %v2282, %v2284
      %v2298 = vsel %vm1474, %v2284, %v2286
      %2311 = vst [vmem:[#allocation4 + $0x140] sm:$0xf0] %v2287
      %2312 = vst [vmem:[#allocation4 + $0x148] sm:$0xf0] %v2288
      %2313 = vst [vmem:[#allocation4 + $0x150] sm:$0xf0] %v2289
      %2314 = vst [vmem:[#allocation4 + $0x158] sm:$0xf0] %v2290
      %2315 = vst [vmem:[#allocation4 + $0x160] sm:$0xff] %v2291
      %2316 = vst [vmem:[#allocation4 + $0x168] sm:$0xff] %v2292
      %2317 = vst [vmem:[#allocation4 + $0x170] sm:$0xff] %v2293
      %2318 = vst [vmem:[#allocation4 + $0x178] sm:$0xff] %v2294
      %2319 = vst [vmem:[#allocation4 + $0x180] sm:$0x3] %v2295
      %2320 = vst [vmem:[#allocation4 + $0x188] sm:$0x3] %v2296
      %2321 = vst [vmem:[#allocation4 + $0x190] sm:$0x3] %v2297
      %2322 = vst [vmem:[#allocation4 + $0x198] sm:$0x3] %v2298
      %v2323 = vld [vmem:[%s6] sm:$0x7f]
      %v2324 = vld [vmem:[#allocation4] sm:$0xff]
      %v2325 = vld [vmem:[#allocation4 + $0x8] sm:$0xff]
      %v2326 = vld [vmem:[#allocation4 + $0x10] sm:$0xff]
      %v2327 = vld [vmem:[#allocation4 + $0x18] sm:$0xff]
      %v2328 = vld [vmem:[#allocation4 + $0x20] sm:$0xff]
      %v2329 = vld [vmem:[#allocation4 + $0x28] sm:$0xff]
      %v2330 = vld [vmem:[#allocation4 + $0x30] sm:$0xff]
      %v2331 = vld [vmem:[#allocation4 + $0x38] sm:$0xff]
      %v2332 = vld [vmem:[#allocation4 + $0x40] sm:$0xff]
      %v2333 = vld [vmem:[#allocation4 + $0x48] sm:$0xff]
      %v2334 = vld [vmem:[#allocation4 + $0x50] sm:$0xff]
      %v2335 = vld [vmem:[#allocation4 + $0x58] sm:$0xff]
      %v2336 = vld [vmem:[#allocation4 + $0x60] sm:$0xff]
      %v2337 = vld [vmem:[#allocation4 + $0x68] sm:$0xff]
      %v2338 = vld [vmem:[#allocation4 + $0x70] sm:$0xff]
      %v2339 = vld [vmem:[#allocation4 + $0x78] sm:$0xff]
      %v2340 = vld [vmem:[#allocation4 + $0x80] sm:$0xff]
      %v2341 = vld [vmem:[#allocation4 + $0x88] sm:$0xff]
      %v2342 = vld [vmem:[#allocation4 + $0x90] sm:$0xff]
      %v2343 = vld [vmem:[#allocation4 + $0x98] sm:$0xff]
      %v2344 = vld [vmem:[#allocation4 + $0xa0] sm:$0xff]
      %v2345 = vld [vmem:[#allocation4 + $0xa8] sm:$0xff]
      %v2346 = vld [vmem:[#allocation4 + $0xb0] sm:$0xff]
      %v2347 = vld [vmem:[#allocation4 + $0xb8] sm:$0xff]
      %v2348 = vld [vmem:[#allocation4 + $0xc0] sm:$0xff]
      %v2349 = vld [vmem:[#allocation4 + $0xc8] sm:$0xff]
      %v2350 = vld [vmem:[#allocation4 + $0xd0] sm:$0xff]
      %v2351 = vld [vmem:[#allocation4 + $0xd8] sm:$0xff]
      %v2352 = vld [vmem:[#allocation4 + $0xe0] sm:$0xff]
      %v2353 = vld [vmem:[#allocation4 + $0xe8] sm:$0xff]
      %v2354 = vld [vmem:[#allocation4 + $0xf0] sm:$0xff]
      %v2355 = vld [vmem:[#allocation4 + $0xf8] sm:$0xff]
      %v2356 = vld [vmem:[#allocation4 + $0x100] sm:$0xff]
      %v2357 = vld [vmem:[#allocation4 + $0x108] sm:$0xff]
      %v2358 = vld [vmem:[#allocation4 + $0x110] sm:$0xff]
      %v2359 = vld [vmem:[#allocation4 + $0x118] sm:$0xff]
      %v2360 = vld [vmem:[#allocation4 + $0x120] sm:$0xff]
      %v2361 = vld [vmem:[#allocation4 + $0x128] sm:$0xff]
      %v2362 = vld [vmem:[#allocation4 + $0x130] sm:$0xff]
      %v2363 = vld [vmem:[#allocation4 + $0x138] sm:$0xff]
      %v2364 = vld [vmem:[#allocation4 + $0x140] sm:$0xff]
      %v2365 = vld [vmem:[#allocation4 + $0x148] sm:$0xff]
      %v2366 = vld [vmem:[#allocation4 + $0x150] sm:$0xff]
      %v2367 = vld [vmem:[#allocation4 + $0x158] sm:$0xff]
      %v2368 = vld [vmem:[#allocation4 + $0x160] sm:$0xff]
      %v2369 = vld [vmem:[#allocation4 + $0x168] sm:$0xff]
      %v2370 = vld [vmem:[#allocation4 + $0x170] sm:$0xff]
      %v2371 = vld [vmem:[#allocation4 + $0x178] sm:$0xff]
      %v2372 = vld [vmem:[#allocation4 + $0x180] sm:$0x3]
      %v2373 = vld [vmem:[#allocation4 + $0x188] sm:$0x3]
      %v2374 = vld [vmem:[#allocation4 + $0x190] sm:$0x3]
      %v2375 = vld [vmem:[#allocation4 + $0x198] sm:$0x3]
      %vm2376 = vcmask 801792
      %v2378 = vsel %vm2376, %v2323, 0
      %v2381 = vsel %vm1893, %v2372, 0
      %v2384 = vsel %vm1893, %v2373, 0
      %v2387 = vsel %vm1893, %v2374, 0
      %v2390 = vsel %vm1893, %v2375, 0
      %2392 = vmatprep.subr.mxu0 %v2325
      %2393 = vmatpush1.msra.mxu0 %v2324
      %2394 = vmatprep.subr.mxu0 %v2329
      %2395 = vmatpush1.msra.mxu0 %v2328
      %2396 = vmatprep.subr.mxu0 %v2333
      %2397 = vmatpush1.msra.mxu0 %v2332
      %2398 = vmatprep.subr.mxu0 %v2337
      %2399 = vmatpush1.msra.mxu0 %v2336
      %2400 = vmatprep.subr.mxu0 %v2341
      %2401 = vmatpush1.msra.mxu0 %v2340
      %2402 = vmatprep.subr.mxu0 %v2345
      %2403 = vmatpush1.msra.mxu0 %v2344
      %2404 = vmatprep.subr.mxu0 %v2349
      %2405 = vmatpush1.msra.mxu0 %v2348
      %2406 = vmatprep.subr.mxu0 %v2353
      %2407 = vmatpush1.msra.mxu0 %v2352
      %2408 = vmatprep.subr.mxu0 %v2357
      %2409 = vmatpush1.msra.mxu0 %v2356
      %2410 = vmatprep.subr.mxu0 %v2361
      %2411 = vmatpush1.msra.mxu0 %v2360
      %2412 = vmatprep.subr.mxu0 %v2365
      %2413 = vmatpush1.msra.mxu0 %v2364
      %2414 = vmatprep.subr.mxu0 %v2369
      %2415 = vmatpush1.msra.mxu0 %v2368
      %2416 = vmatprep.subr.mxu0 %v2384
      %2417 = vmatpush1.msra.mxu0 %v2381
      %2418 = vmatprep.subr.mxu0 0.0
      %2419 = vmatpush1.msra.mxu0 0.0
      %2420 = vmatprep.subr.mxu0 0.0
      %2421 = vmatpush1.msra.mxu0 0.0
      %2422 = vmatprep.subr.mxu0 0.0
      %2423 = vmatpush1.msra.mxu0 0.0
      %2424 = vmatprep.subr.mxu0 0.0
      %2425 = vmatpush1.msra.mxu0 0.0
      %2426 = vmatprep.subr.mxu0 0.0
      %2427 = vmatpush1.msra.mxu0 0.0
      %2428 = vmatprep.subr.mxu0 0.0
      %2429 = vmatpush1.msra.mxu0 0.0
      %2430 = vmatprep.subr.mxu0 0.0
      %2431 = vmatpush1.msra.mxu0 0.0
      %2432 = vmatprep.subr.mxu0 0.0
      %2433 = vmatpush1.msra.mxu0 0.0
      %2434 = vmatprep.subr.mxu0 0.0
      %2435 = vmatpush1.msra.mxu0 0.0
      %2436 = vmatprep.subr.mxu0 0.0
      %2437 = vmatpush1.msra.mxu0 0.0
      %2438 = vmatprep.subr.mxu0 0.0
      %2439 = vmatpush1.msra.mxu0 0.0
      %2440 = vmatprep.subr.mxu0 0.0
      %2441 = vmatpush1.msra.mxu0 0.0
      %2442 = vmatprep.subr.mxu0 0.0
      %2443 = vmatpush1.msra.mxu0 0.0
      %2444 = vmatprep.subr.mxu0 0.0
      %2445 = vmatpush1.msra.mxu0 0.0
      %2446 = vmatprep.subr.mxu0 0.0
      %2447 = vmatpush1.msra.mxu0 0.0
      %2448 = vmatprep.subr.mxu0 0.0
      %2449 = vmatpush1.msra.mxu0 0.0
      %2450 = vmatprep.subr.mxu0 0.0
      %2451 = vmatpush1.msra.mxu0 0.0
      %2452 = vmatprep.subr.mxu0 0.0
      %2453 = vmatpush1.msra.mxu0 0.0
      %2454 = vmatprep.subr.mxu0 0.0
      %2455 = vmatpush1.msra.mxu0 0.0
      %2456 = vmatprep.mubr.f32.mxu0 0.0
      %2457 = vmatmul.mubr.f32.gmra.mrb[0].mxu0 %v2378
      %v2458 = vpop.f32.mrb[0].mxu0
      %v2459 = vadd.f32 0.0, %v2458
      %v2460 = vpop.f32.mrb[0].mxu0
      %v2461 = vadd.f32 0.0, %v2460
      %2462 = vdwg.mxu0
      %2463 = vmatprep.subr.mxu0 %v2327
      %2464 = vmatpush1.msra.mxu0 %v2326
      %2465 = vmatprep.subr.mxu0 %v2331
      %2466 = vmatpush1.msra.mxu0 %v2330
      %2467 = vmatprep.subr.mxu0 %v2335
      %2468 = vmatpush1.msra.mxu0 %v2334
      %2469 = vmatprep.subr.mxu0 %v2339
      %2470 = vmatpush1.msra.mxu0 %v2338
      %2471 = vmatprep.subr.mxu0 %v2343
      %2472 = vmatpush1.msra.mxu0 %v2342
      %2473 = vmatprep.subr.mxu0 %v2347
      %2474 = vmatpush1.msra.mxu0 %v2346
      %2475 = vmatprep.subr.mxu0 %v2351
      %2476 = vmatpush1.msra.mxu0 %v2350
      %2477 = vmatprep.subr.mxu0 %v2355
      %2478 = vmatpush1.msra.mxu0 %v2354
      %2479 = vmatprep.subr.mxu0 %v2359
      %2480 = vmatpush1.msra.mxu0 %v2358
      %2481 = vmatprep.subr.mxu0 %v2363
      %2482 = vmatpush1.msra.mxu0 %v2362
      %2483 = vmatprep.subr.mxu0 %v2367
      %2484 = vmatpush1.msra.mxu0 %v2366
      %2485 = vmatprep.subr.mxu0 %v2371
      %2486 = vmatpush1.msra.mxu0 %v2370
      %2487 = vmatprep.subr.mxu0 %v2390
      %2488 = vmatpush1.msra.mxu0 %v2387
      %2489 = vmatprep.subr.mxu0 0.0
      %2490 = vmatpush1.msra.mxu0 0.0
      %2491 = vmatprep.subr.mxu0 0.0
      %2492 = vmatpush1.msra.mxu0 0.0
      %2493 = vmatprep.subr.mxu0 0.0
      %2494 = vmatpush1.msra.mxu0 0.0
      %2495 = vmatprep.subr.mxu0 0.0
      %2496 = vmatpush1.msra.mxu0 0.0
      %2497 = vmatprep.subr.mxu0 0.0
      %2498 = vmatpush1.msra.mxu0 0.0
      %2499 = vmatprep.subr.mxu0 0.0
      %2500 = vmatpush1.msra.mxu0 0.0
      %2501 = vmatprep.subr.mxu0 0.0
      %2502 = vmatpush1.msra.mxu0 0.0
      %2503 = vmatprep.subr.mxu0 0.0
      %2504 = vmatpush1.msra.mxu0 0.0
      %2505 = vmatprep.subr.mxu0 0.0
      %2506 = vmatpush1.msra.mxu0 0.0
      %2507 = vmatprep.subr.mxu0 0.0
      %2508 = vmatpush1.msra.mxu0 0.0
      %2509 = vmatprep.subr.mxu0 0.0
      %2510 = vmatpush1.msra.mxu0 0.0
      %2511 = vmatprep.subr.mxu0 0.0
      %2512 = vmatpush1.msra.mxu0 0.0
      %2513 = vmatprep.subr.mxu0 0.0
      %2514 = vmatpush1.msra.mxu0 0.0
      %2515 = vmatprep.subr.mxu0 0.0
      %2516 = vmatpush1.msra.mxu0 0.0
      %2517 = vmatprep.subr.mxu0 0.0
      %2518 = vmatpush1.msra.mxu0 0.0
      %2519 = vmatprep.subr.mxu0 0.0
      %2520 = vmatpush1.msra.mxu0 0.0
      %2521 = vmatprep.subr.mxu0 0.0
      %2522 = vmatpush1.msra.mxu0 0.0
      %2523 = vmatprep.subr.mxu0 0.0
      %2524 = vmatpush1.msra.mxu0 0.0
      %2525 = vmatprep.subr.mxu0 0.0
      %2526 = vmatpush1.msra.mxu0 0.0
      %2527 = vmatprep.mubr.f32.mxu0 0.0
      %2528 = vmatmul.mubr.f32.gmra.mrb[0].mxu0 %v2378
      %v2529 = vpop.f32.mrb[0].mxu0
      %v2530 = vadd.f32 0.0, %v2529
      %v2531 = vpop.f32.mrb[0].mxu0
      %v2532 = vadd.f32 0.0, %v2531
      %2533 = vdwg.mxu0
      %2534 = vst [vmem:[#allocation5 + $0x10] sm:$0x7f] %v2459
      %2535 = vst [vmem:[#allocation5 + $0x18] sm:$0x7f] %v2461
      %2536 = vst [vmem:[#allocation5 + $0x20] sm:$0x7f] %v2530
      %2537 = vst [vmem:[#allocation5 + $0x28] sm:$0x7f] %v2532
      %v2538 = vld [vmem:[#allocation5] ss:$8 sm:$0xf]
      %v2539 = vld [vmem:[#allocation5] ss:$8 sm:$0x10]
      %v2540 = vor.u32 %v2538, %v2539
      %s2541 = scalar_lea.vmem [#allocation5], 9
      %v2542 = vld [vmem:[%s2541] ss:$8 sm:$0xf]
      %s2543 = scalar_lea.vmem [#allocation5], 10
      %v2544 = vld [vmem:[%s2543] ss:$8 sm:$0xf]
      %v2545 = vld [vmem:[%s2543] ss:$8 sm:$0x10]
      %v2546 = vor.u32 %v2544, %v2545
      %s2547 = scalar_lea.vmem [#allocation5], 19
      %v2548 = vld [vmem:[%s2547] ss:$8 sm:$0xf]
      %s2549 = scalar_lea.vmem [#allocation5], 20
      %v2550 = vld [vmem:[%s2549] ss:$8 sm:$0xf]
      %v2551 = vld [vmem:[%s2549] ss:$8 sm:$0x10]
      %v2552 = vor.u32 %v2550, %v2551
      %s2553 = scalar_lea.vmem [#allocation5], 29
      %v2554 = vld [vmem:[%s2553] ss:$8 sm:$0xf]
      %s2555 = scalar_lea.vmem [#allocation5], 30
      %v2556 = vld [vmem:[%s2555] ss:$8 sm:$0xf]
      %v2557 = vld [vmem:[%s2555] ss:$8 sm:$0x10]
      %v2558 = vor.u32 %v2556, %v2557
      %2560 = vrot.lane.b32.xlu0 %v2542, 64
      %v2561 = vpop.permute.xlu0 %2560
      %v2562 = vrot.slane %v2561, 7
      %vm2563 = vcmask 523264
      %v2564 = vsel %vm2563, %v2562, %v2561
      %v2566 = vadd.f32 %v2540, %v2564
      %2568 = vrot.lane.b32.xlu0 %v2548, 64
      %v2569 = vpop.permute.xlu0 %2568
      %v2570 = vrot.slane %v2569, 7
      %v2571 = vsel %vm2563, %v2570, %v2569
      %v2573 = vadd.f32 %v2546, %v2571
      %v2574 = vadd.f32 %v2566, %v2573
      %2576 = vrot.lane.b32.xlu0 %v2554, 64
      %v2577 = vpop.permute.xlu0 %2576
      %v2578 = vrot.slane %v2577, 7
      %v2579 = vsel %vm2563, %v2578, %v2577
      %v2581 = vadd.f32 %v2552, %v2579
      %s2582 = sld [smem:[#allocation6]]
      %v2583 = vstv %s2582
      %v2584 = vadd.f32 %v2558, %v2583
      %v2585 = vadd.f32 %v2581, %v2584
      %v2586 = vadd.f32 %v2574, %v2585
      %v2587 = vxor.u32 %v2586, 2147483648
      %v2588 = vmul.f32 %v2587, 1.442695
      %v2589 = vpow.pop %v2588
      %v2590 = vadd.f32 %v2589, 1.0
      %v2591 = vrcp.pop %v2590
      %v2592 = vmul.f32 1.0, %v2591
      %v2593 = vld [vmem:[%s343] sm:$0xff]
      %v2594 = vld [vmem:[%s343 + $0x8] sm:$0xff]
      %v2595 = vld [vmem:[%s343 + $0x10] sm:$0xff]
      %v2596 = vld [vmem:[%s343 + $0x18] sm:$0xff]
      %v2597 = vld [vmem:[%s343 + $0x20] sm:$0xff]
      %v2598 = vld [vmem:[%s343 + $0x28] sm:$0xff]
      %v2599 = vld [vmem:[%s343 + $0x30] sm:$0xff]
      %v2600 = vld [vmem:[%s343 + $0x38] sm:$0xff]
      %v2601 = vld [vmem:[%s343 + $0x40] sm:$0xff]
      %v2602 = vld [vmem:[%s343 + $0x48] sm:$0xff]
      %v2603 = vld [vmem:[%s343 + $0x50] sm:$0xff]
      %v2604 = vld [vmem:[%s343 + $0x58] sm:$0xff]
      %v2605 = vld [vmem:[%s343 + $0x60] sm:$0xff]
      %v2606 = vld [vmem:[%s343 + $0x68] sm:$0xff]
      %v2607 = vld [vmem:[%s343 + $0x70] sm:$0xff]
      %v2608 = vld [vmem:[%s343 + $0x78] sm:$0xff]
      %v2609 = vmul.f32 %v2593, %v614
      %v2610 = vmul.f32 %v2594, %v614
      %v2611 = vmul.f32 %v2595, %v614
      %v2612 = vmul.f32 %v2596, %v614
      %v2613 = vmul.f32 %v2597, %v619
      %v2614 = vmul.f32 %v2598, %v619
      %v2615 = vmul.f32 %v2599, %v619
      %v2616 = vmul.f32 %v2600, %v619
      %v2617 = vmul.f32 %v2601, %v624
      %v2618 = vmul.f32 %v2602, %v624
      %v2619 = vmul.f32 %v2603, %v624
      %v2620 = vmul.f32 %v2604, %v624
      %v2621 = vmul.f32 %v2605, %v629
      %v2622 = vmul.f32 %v2606, %v629
      %v2623 = vmul.f32 %v2607, %v629
      %v2624 = vmul.f32 %v2608, %v629
      %v2626 = vlaneseq
      %v2627 = vshrl.u32 %v2626, 7
      %v2628 = vsub.s32 0, %v2627
      %v2629 = vrot.slane %v2592, %v2628
      %v2630 = vlaneseq
      %v2631 = vshrl.u32 %v2630, 7
      %v2632 = vsub.s32 1, %v2631
      %v2633 = vrot.slane %v2592, %v2632
      %v2634 = vlaneseq
      %v2635 = vshrl.u32 %v2634, 7
      %v2636 = vsub.s32 2, %v2635
      %v2637 = vrot.slane %v2592, %v2636
      %v2638 = vlaneseq
      %v2639 = vshrl.u32 %v2638, 7
      %v2640 = vsub.s32 3, %v2639
      %v2641 = vrot.slane %v2592, %v2640
      %v2642 = vlaneseq
      %v2643 = vshrl.u32 %v2642, 7
      %v2644 = vsub.s32 4, %v2643
      %v2645 = vrot.slane %v2592, %v2644
      %2646 = vrot.lane.b32.xlu0 %v2629, 64
      %v2647 = vpop.permute.xlu0 %2646
      %2648 = vrot.lane.b32.xlu0 %v2633, 64
      %v2649 = vpop.permute.xlu0 %2648
      %2650 = vrot.lane.b32.xlu0 %v2637, 64
      %v2651 = vpop.permute.xlu0 %2650
      %2652 = vrot.lane.b32.xlu0 %v2641, 64
      %v2653 = vpop.permute.xlu0 %2652
      %2654 = vrot.lane.b32.xlu0 %v2645, 64
      %v2655 = vpop.permute.xlu0 %2654
      %v2656 = vsel %vm2563, %v2647, %v2649
      %v2657 = vsel %vm2563, %v2649, %v2651
      %v2658 = vsel %vm2563, %v2651, %v2653
      %v2659 = vsel %vm2563, %v2653, %v2655
      %v2664 = vmul.f32 %v2609, %v2656
      %v2665 = vmul.f32 %v2610, %v2657
      %v2666 = vmul.f32 %v2611, %v2658
      %v2667 = vmul.f32 %v2612, %v2659
      %v2668 = vmul.f32 %v2613, %v2656
      %v2669 = vmul.f32 %v2614, %v2657
      %v2670 = vmul.f32 %v2615, %v2658
      %v2671 = vmul.f32 %v2616, %v2659
      %v2672 = vmul.f32 %v2617, %v2656
      %v2673 = vmul.f32 %v2618, %v2657
      %v2674 = vmul.f32 %v2619, %v2658
      %v2675 = vmul.f32 %v2620, %v2659
      %v2676 = vmul.f32 %v2621, %v2656
      %v2677 = vmul.f32 %v2622, %v2657
      %v2678 = vmul.f32 %v2623, %v2658
      %v2679 = vmul.f32 %v2624, %v2659
      %v2680 = vld [vmem:[%s348] sm:$0xff]
      %v2681 = vld [vmem:[%s348 + $0x8] sm:$0xff]
      %v2682 = vld [vmem:[%s348 + $0x10] sm:$0xff]
      %v2683 = vld [vmem:[%s348 + $0x18] sm:$0xff]
      %v2684 = vld [vmem:[%s348 + $0x20] sm:$0xff]
      %v2685 = vld [vmem:[%s348 + $0x28] sm:$0xff]
      %v2686 = vld [vmem:[%s348 + $0x30] sm:$0xff]
      %v2687 = vld [vmem:[%s348 + $0x38] sm:$0xff]
      %v2688 = vld [vmem:[%s348 + $0x40] sm:$0xff]
      %v2689 = vld [vmem:[%s348 + $0x48] sm:$0xff]
      %v2690 = vld [vmem:[%s348 + $0x50] sm:$0xff]
      %v2691 = vld [vmem:[%s348 + $0x58] sm:$0xff]
      %v2692 = vld [vmem:[%s348 + $0x60] sm:$0xff]
      %v2693 = vld [vmem:[%s348 + $0x68] sm:$0xff]
      %v2694 = vld [vmem:[%s348 + $0x70] sm:$0xff]
      %v2695 = vld [vmem:[%s348 + $0x78] sm:$0xff]
      %v2696 = vadd.f32 %v2664, %v2680
      %v2697 = vadd.f32 %v2665, %v2681
      %v2698 = vadd.f32 %v2666, %v2682
      %v2699 = vadd.f32 %v2667, %v2683
      %v2700 = vadd.f32 %v2668, %v2684
      %v2701 = vadd.f32 %v2669, %v2685
      %v2702 = vadd.f32 %v2670, %v2686
      %v2703 = vadd.f32 %v2671, %v2687
      %v2704 = vadd.f32 %v2672, %v2688
      %v2705 = vadd.f32 %v2673, %v2689
      %v2706 = vadd.f32 %v2674, %v2690
      %v2707 = vadd.f32 %v2675, %v2691
      %v2708 = vadd.f32 %v2676, %v2692
      %v2709 = vadd.f32 %v2677, %v2693
      %v2710 = vadd.f32 %v2678, %v2694
      %v2711 = vadd.f32 %v2679, %v2695
      %2712 = vst [vmem:[%s353] sm:$0xff] %v2696
      %2713 = vst [vmem:[%s353 + $0x8] sm:$0xff] %v2697
      %2714 = vst [vmem:[%s353 + $0x10] sm:$0xff] %v2698
      %2715 = vst [vmem:[%s353 + $0x18] sm:$0xff] %v2699
      %2716 = vst [vmem:[%s353 + $0x20] sm:$0xff] %v2700
      %2717 = vst [vmem:[%s353 + $0x28] sm:$0xff] %v2701
      %2718 = vst [vmem:[%s353 + $0x30] sm:$0xff] %v2702
      %2719 = vst [vmem:[%s353 + $0x38] sm:$0xff] %v2703
      %2720 = vst [vmem:[%s353 + $0x40] sm:$0xff] %v2704
      %2721 = vst [vmem:[%s353 + $0x48] sm:$0xff] %v2705
      %2722 = vst [vmem:[%s353 + $0x50] sm:$0xff] %v2706
      %2723 = vst [vmem:[%s353 + $0x58] sm:$0xff] %v2707
      %2724 = vst [vmem:[%s353 + $0x60] sm:$0xff] %v2708
      %2725 = vst [vmem:[%s353 + $0x68] sm:$0xff] %v2709
      %2726 = vst [vmem:[%s353 + $0x70] sm:$0xff] %v2710
      %2727 = vst [vmem:[%s353 + $0x78] sm:$0xff] %v2711
      %p2728 = scmp.lt.s32.totalorder %s21, 1
      %s2729 = scalar_select %p2728, %s21, 1
      %s2730 = smul.addr %s2729, 16
      %s2731 = smul.addr %s2730, 8
      %s2732 = scalar_lea.vmem %s9, %s2731
      // Predicated region
      $region57: #{first_layer_forward.1} parent=55 // pred_check
        %p2733 = pneg %p238
      $region58: #{first_layer_forward.1} parent=55 // pred_check_branch
        %2735 = sbr.rel (%p2733) target = $region60
      $region59: #{first_layer_forward.1} parent=55 // pred_region
        _
      $region60: #{first_layer_forward.1} parent=55 // pred_fallthru
        _
    $region56: #{first_layer_forward.1} parent=5 // pred_fallthru
      _
    %p2736 = scmp.le.s32.totalorder 2, %s16
    // Predicated region
    $region61: #{first_layer_forward.1} parent=5 // pred_check
      %p2737 = pneg %p2736
    $region62: #{first_layer_forward.1} parent=5 // pred_check_branch
      %2739 = sbr.rel (%p2737) target = $region64
    $region63: #{first_layer_forward.1} parent=5 // pred_region
      %s2740 = ssub.s32 %s16, 2
      // Predicated region
      $region65: #{first_layer_forward.1} parent=63 // pred_check
        %p2741 = pneg %p244
      $region66: #{first_layer_forward.1} parent=63 // pred_check_branch
        %2743 = sbr.rel (%p2741) target = $region68
      $region67: #{first_layer_forward.1} parent=63 // pred_region
        %p2744 = scmp.lt.s32.totalorder %s22, 1
        %s2745 = scalar_select %p2744, %s22, 1
        %s2746 = smul.addr %s2745, 16
        %s2747 = smul.addr %s2746, 8
        %s2748 = scalar_lea.vmem %s9, %s2747
      $region68: #{first_layer_forward.1} parent=63 // pred_fallthru
        _
    $region64: #{first_layer_forward.1} parent=5 // pred_fallthru
      _
  $region6: #{first_layer_forward.1} parent=0 // loop_footer
    %s20 = sadd.s32 1, %s16
  $region7: #{first_layer_forward.1} parent=0 // loop_footer_branch
    %15 = sbr.rel target = $region3
  $region8: #{first_layer_forward.1} parent=0 // loop_exit
    _

</llo_original>
